<compile_context>
chip_gen: v5e
topology: v5e:2x2
jax: 0.10.0
libtpu: 0.0.40
codegen_flags: <defaults>
</compile_context>

<pallas_src>
import jax
import jax.numpy as jnp
from jax.experimental import pallas as pl
from jax.experimental.pallas import tpu as pltpu

LATENT_DIM = 64
K = 28 * 28            # 784
K_PAD = 896            # 7 * 128

# (fan_in, fan_out) of the PyTorch layers, and their lane-padded counterparts.
LOGICAL_DIMS = [(K, 512), (512, 512), (512, 128), (128, 128),
                (128, LATENT_DIM), (LATENT_DIM, LATENT_DIM)]
PADDED_DIMS = [(K_PAD, 512), (512, 512), (512, 128), (128, 128),
               (128, 128), (128, 128)]


def encoder_kernel(x_ref,
                   w1, b1, w2, b2, w3, b3, w4, b4, w5, b5, w6, b6,
                   o_ref):
    """One batch tile through the fused 6-layer MLP (bf16 MXU, f32 epilogue)."""
    def lin_relu(h_bf16, w_ref, b_ref):
        acc = jnp.dot(h_bf16, w_ref[...], preferred_element_type=jnp.float32)
        return jnp.maximum(acc + b_ref[...], 0.0)        # f32 bias + ReLU

    h = x_ref[...]                                       # bf16 (tm, K_PAD)
    h = lin_relu(h, w1, b1).astype(jnp.bfloat16)
    h = lin_relu(h, w2, b2).astype(jnp.bfloat16)
    h = lin_relu(h, w3, b3).astype(jnp.bfloat16)
    h = lin_relu(h, w4, b4).astype(jnp.bfloat16)
    h = lin_relu(h, w5, b5).astype(jnp.bfloat16)
    h = lin_relu(h, w6, b6)                              # f32 (tm, 128)
    o_ref[...] = h.astype(o_ref.dtype)                   # lane-dense 128-wide store


def init_params(key):
    """nn.Linear-style uniform init, zero-padded to lane-aligned shapes.

    Weights stored (in, out) as bf16; biases stored (1, out) as f32.
    Zero padding is semantics-preserving: padded input columns are zero and
    padded output columns get zero weight/bias -> ReLU(0) = 0.
    """
    params = []
    for (fi, fo), (fi_p, fo_p) in zip(LOGICAL_DIMS, PADDED_DIMS):
        key, kw, kb = jax.random.split(key, 3)
        bound = 1.0 / float(fi) ** 0.5
        w = jax.random.uniform(kw, (fi, fo), jnp.float32, -bound, bound)
        b = jax.random.uniform(kb, (1, fo), jnp.float32, -bound, bound)
        w_p = jnp.zeros((fi_p, fo_p), jnp.float32).at[:fi, :fo].set(w)
        b_p = jnp.zeros((1, fo_p), jnp.float32).at[:, :fo].set(b)
        params.append((w_p.astype(jnp.bfloat16), b_p))
    return params


def _round_up(x, m):
    return (x + m - 1) // m * m


def _choose_tile(batch):
    """16-aligned batch tile; adaptive size to limit pad waste at large B."""
    b16 = _round_up(batch, 16)
    if b16 <= 512:
        return b16, b16                    # single tile, no extra pad rows
    best = None
    for tm in (512, 256, 128):
        b_pad = _round_up(b16, tm)
        waste = (b_pad - batch) / b_pad    # padded rows do full 6-layer work
        steps = b_pad // tm
        # Priority: acceptable pad-waste, then minimal waste among the rest,
        # then even step count (v7x dual-TC balance), then the bigger tile.
        key = (waste > 0.125, waste if waste > 0.125 else 0.0, steps % 2, -tm)
        if best is None or key < best[0]:
            best = (key, tm, b_pad)
    return best[1], best[2]


def _vmem_limit_bytes(tm, params):
    """Right-sized scoped VMEM: resident weights (single-buffered) +
    double-buffered I/O tiles + activation scratch + fixed headroom."""
    weight_bytes = sum(int(w.size) * w.dtype.itemsize +
                       int(b.size) * b.dtype.itemsize for (w, b) in params)
    io_bytes = 2 * tm * K_PAD * 2 + 2 * tm * 128 * 2     # in/out, 2 buffers each
    act_bytes = 2 * tm * 512 * 4                         # f32 intermediates
    return min(weight_bytes + io_bytes + act_bytes + (8 << 20), 48 << 20)


def encoder_forward(x_nchw, params):
    B = x_nchw.shape[0]
    tm, b_pad = _choose_tile(B)

    # nn.Flatten() -> bf16 cast -> zero-pad (batch rows and K -> 896), in bf16.
    x_flat = x_nchw.reshape(B, -1).astype(jnp.bfloat16)
    x_flat = jnp.pad(x_flat, ((0, b_pad - B), (0, K_PAD - K)))

    flat_args = [x_flat]
    in_specs = [pl.BlockSpec((tm, K_PAD), lambda i: (i, 0))]
    resident = pl.Buffered(1)   # constant-index blocks: no point double-buffering
    for (w, b) in params:
        flat_args.extend([w, b])
        in_specs.append(pl.BlockSpec(w.shape, lambda i: (0, 0),
                                     pipeline_mode=resident))
        in_specs.append(pl.BlockSpec(b.shape, lambda i: (0, 0),
                                     pipeline_mode=resident))

    out_specs = pl.BlockSpec((tm, 128), lambda i: (i, 0))

    flops = 2 * b_pad * sum(fi * fo for fi, fo in PADDED_DIMS)
    bytes_accessed = (x_flat.size * 2
                      + sum(w.size * 2 + b.size * 4 for (w, b) in params)
                      + b_pad * 128 * 2)
    cost = pl.CostEstimate(flops=flops, transcendentals=0,
                           bytes_accessed=bytes_accessed)

    out = pl.pallas_call(
        encoder_kernel,
        out_shape=jax.ShapeDtypeStruct((b_pad, 128), jnp.bfloat16),
        grid=(b_pad // tm,),
        in_specs=in_specs,
        out_specs=out_specs,
        compiler_params=pltpu.CompilerParams(
            dimension_semantics=("parallel",),
            vmem_limit_bytes=_vmem_limit_bytes(tm, params)),
        cost_estimate=cost,
    )(*flat_args)

    # Latent returned in bf16 (halves writeback; downstream consumers recast
    # anyway); real 64 latent columns sliced from the lane-padded output.
    return out[:B, :LATENT_DIM]


def encoder_reference(x_nchw, params):
    """Pure-JAX reference using the exact same padded bf16 params."""
    B = x_nchw.shape[0]
    h = x_nchw.reshape(B, -1).astype(jnp.bfloat16)
    h = jnp.pad(h, ((0, 0), (0, K_PAD - K)))
    acc = None
    for (w, b) in params:
        acc = jnp.maximum(
            jnp.dot(h, w, preferred_element_type=jnp.float32) + b, 0.0)
        h = acc.astype(jnp.bfloat16)
    return acc[:, :LATENT_DIM]


if __name__ == "__main__":
    key = jax.random.PRNGKey(0)
    key, kx = jax.random.split(key)

    B = 8
    x = jax.random.normal(kx, (B, 1, 28, 28), dtype=jnp.float32)   # NCHW MNIST
    params = init_params(key)

    latent = encoder_forward(x, params)
    latent = jax.block_until_ready(latent)

    ref = encoder_reference(x, params)
    assert latent.shape == (B, LATENT_DIM)
    lat_f32 = latent.astype(jnp.float32)
    assert jnp.allclose(lat_f32, ref, atol=2e-2, rtol=2e-2), (
        float(jnp.max(jnp.abs(lat_f32 - ref))))

    print("KERNEL_OK")
</pallas_src>

<mosaic_0001>
module attributes {stable_mosaic.version = 11 : i64} {
  func.func @encoder_kernel(%arg0: i32, %arg1: memref<16x896xbf16, #tpu.memory_space<vmem>>, %arg2: memref<896x512xbf16, #tpu.memory_space<vmem>>, %arg3: memref<1x512xf32, #tpu.memory_space<vmem>>, %arg4: memref<512x512xbf16, #tpu.memory_space<vmem>>, %arg5: memref<1x512xf32, #tpu.memory_space<vmem>>, %arg6: memref<512x128xbf16, #tpu.memory_space<vmem>>, %arg7: memref<1x128xf32, #tpu.memory_space<vmem>>, %arg8: memref<128x128xbf16, #tpu.memory_space<vmem>>, %arg9: memref<1x128xf32, #tpu.memory_space<vmem>>, %arg10: memref<128x128xbf16, #tpu.memory_space<vmem>>, %arg11: memref<1x128xf32, #tpu.memory_space<vmem>>, %arg12: memref<128x128xbf16, #tpu.memory_space<vmem>>, %arg13: memref<1x128xf32, #tpu.memory_space<vmem>>, %arg14: memref<16x128xbf16, #tpu.memory_space<vmem>>) attributes {dimension_semantics = [#tpu.dimension_semantics<parallel>], iteration_bounds = array<i64: 1>, scalar_prefetch = 0 : i64, scratch_operands = 0 : i64, tpu.core_type = #tpu.core_type<tc>, window_params = [{transform_indices = @transform_0, window_bounds = array<i64: 16, 896>}, {pipeline_mode = #tpu.pipeline_mode<synchronous>, transform_indices = @transform_1, window_bounds = array<i64: 896, 512>}, {pipeline_mode = #tpu.pipeline_mode<synchronous>, transform_indices = @transform_2, window_bounds = array<i64: 1, 512>}, {pipeline_mode = #tpu.pipeline_mode<synchronous>, transform_indices = @transform_3, window_bounds = array<i64: 512, 512>}, {pipeline_mode = #tpu.pipeline_mode<synchronous>, transform_indices = @transform_4, window_bounds = array<i64: 1, 512>}, {pipeline_mode = #tpu.pipeline_mode<synchronous>, transform_indices = @transform_5, window_bounds = array<i64: 512, 128>}, {pipeline_mode = #tpu.pipeline_mode<synchronous>, transform_indices = @transform_6, window_bounds = array<i64: 1, 128>}, {pipeline_mode = #tpu.pipeline_mode<synchronous>, transform_indices = @transform_7, window_bounds = array<i64: 128, 128>}, {pipeline_mode = #tpu.pipeline_mode<synchronous>, transform_indices = @transform_8, window_bounds = array<i64: 1, 128>}, {pipeline_mode = #tpu.pipeline_mode<synchronous>, transform_indices = @transform_9, window_bounds = array<i64: 128, 128>}, {pipeline_mode = #tpu.pipeline_mode<synchronous>, transform_indices = @transform_10, window_bounds = array<i64: 1, 128>}, {pipeline_mode = #tpu.pipeline_mode<synchronous>, transform_indices = @transform_11, window_bounds = array<i64: 128, 128>}, {pipeline_mode = #tpu.pipeline_mode<synchronous>, transform_indices = @transform_12, window_bounds = array<i64: 1, 128>}, {transform_indices = @transform_13, window_bounds = array<i64: 16, 128>}]} {
    %c0 = arith.constant 0 : index
    %c0_0 = arith.constant 0 : index
    %0 = vector.load %arg1[%c0, %c0_0] : memref<16x896xbf16, #tpu.memory_space<vmem>>, vector<16x896xbf16>
    %c0_1 = arith.constant 0 : index
    %c0_2 = arith.constant 0 : index
    %1 = vector.load %arg2[%c0_1, %c0_2] : memref<896x512xbf16, #tpu.memory_space<vmem>>, vector<896x512xbf16>
    %cst = arith.constant dense<0.000000e+00> : vector<16x512xf32>
    %2 = tpu.matmul %0, %1, %cst {dimension_numbers = #tpu.dot_dimension_numbers<[1], [0], [0], [1], [0, 0, 1, 1], [], []>} : vector<16x896xbf16>, vector<896x512xbf16>, vector<16x512xf32> -> vector<16x512xf32>
    %c0_3 = arith.constant 0 : index
    %c0_4 = arith.constant 0 : index
    %3 = vector.load %arg3[%c0_3, %c0_4] : memref<1x512xf32, #tpu.memory_space<vmem>>, vector<1x512xf32>
    %4 = vector.broadcast %3 : vector<1x512xf32> to vector<16x512xf32>
    %5 = arith.addf %2, %4 : vector<16x512xf32>
    %cst_5 = arith.constant 0.000000e+00 : f32
    %6 = vector.broadcast %cst_5 : f32 to vector<16x512xf32>
    %7 = arith.maximumf %5, %6 : vector<16x512xf32>
    %8 = arith.truncf %7 : vector<16x512xf32> to vector<16x512xbf16>
    %c0_6 = arith.constant 0 : index
    %c0_7 = arith.constant 0 : index
    %9 = vector.load %arg4[%c0_6, %c0_7] : memref<512x512xbf16, #tpu.memory_space<vmem>>, vector<512x512xbf16>
    %cst_8 = arith.constant dense<0.000000e+00> : vector<16x512xf32>
    %10 = tpu.matmul %8, %9, %cst_8 {dimension_numbers = #tpu.dot_dimension_numbers<[1], [0], [0], [1], [0, 0, 1, 1], [], []>} : vector<16x512xbf16>, vector<512x512xbf16>, vector<16x512xf32> -> vector<16x512xf32>
    %c0_9 = arith.constant 0 : index
    %c0_10 = arith.constant 0 : index
    %11 = vector.load %arg5[%c0_9, %c0_10] : memref<1x512xf32, #tpu.memory_space<vmem>>, vector<1x512xf32>
    %12 = vector.broadcast %11 : vector<1x512xf32> to vector<16x512xf32>
    %13 = arith.addf %10, %12 : vector<16x512xf32>
    %cst_11 = arith.constant 0.000000e+00 : f32
    %14 = vector.broadcast %cst_11 : f32 to vector<16x512xf32>
    %15 = arith.maximumf %13, %14 : vector<16x512xf32>
    %16 = arith.truncf %15 : vector<16x512xf32> to vector<16x512xbf16>
    %c0_12 = arith.constant 0 : index
    %c0_13 = arith.constant 0 : index
    %17 = vector.load %arg6[%c0_12, %c0_13] : memref<512x128xbf16, #tpu.memory_space<vmem>>, vector<512x128xbf16>
    %cst_14 = arith.constant dense<0.000000e+00> : vector<16x128xf32>
    %18 = tpu.matmul %16, %17, %cst_14 {dimension_numbers = #tpu.dot_dimension_numbers<[1], [0], [0], [1], [0, 0, 1, 1], [], []>} : vector<16x512xbf16>, vector<512x128xbf16>, vector<16x128xf32> -> vector<16x128xf32>
    %c0_15 = arith.constant 0 : index
    %c0_16 = arith.constant 0 : index
    %19 = vector.load %arg7[%c0_15, %c0_16] : memref<1x128xf32, #tpu.memory_space<vmem>>, vector<1x128xf32>
    %20 = vector.broadcast %19 : vector<1x128xf32> to vector<16x128xf32>
    %21 = arith.addf %18, %20 : vector<16x128xf32>
    %cst_17 = arith.constant 0.000000e+00 : f32
    %22 = vector.broadcast %cst_17 : f32 to vector<16x128xf32>
    %23 = arith.maximumf %21, %22 : vector<16x128xf32>
    %24 = arith.truncf %23 : vector<16x128xf32> to vector<16x128xbf16>
    %c0_18 = arith.constant 0 : index
    %c0_19 = arith.constant 0 : index
    %25 = vector.load %arg8[%c0_18, %c0_19] : memref<128x128xbf16, #tpu.memory_space<vmem>>, vector<128x128xbf16>
    %cst_20 = arith.constant dense<0.000000e+00> : vector<16x128xf32>
    %26 = tpu.matmul %24, %25, %cst_20 {dimension_numbers = #tpu.dot_dimension_numbers<[1], [0], [0], [1], [0, 0, 1, 1], [], []>} : vector<16x128xbf16>, vector<128x128xbf16>, vector<16x128xf32> -> vector<16x128xf32>
    %c0_21 = arith.constant 0 : index
    %c0_22 = arith.constant 0 : index
    %27 = vector.load %arg9[%c0_21, %c0_22] : memref<1x128xf32, #tpu.memory_space<vmem>>, vector<1x128xf32>
    %28 = vector.broadcast %27 : vector<1x128xf32> to vector<16x128xf32>
    %29 = arith.addf %26, %28 : vector<16x128xf32>
    %cst_23 = arith.constant 0.000000e+00 : f32
    %30 = vector.broadcast %cst_23 : f32 to vector<16x128xf32>
    %31 = arith.maximumf %29, %30 : vector<16x128xf32>
    %32 = arith.truncf %31 : vector<16x128xf32> to vector<16x128xbf16>
    %c0_24 = arith.constant 0 : index
    %c0_25 = arith.constant 0 : index
    %33 = vector.load %arg10[%c0_24, %c0_25] : memref<128x128xbf16, #tpu.memory_space<vmem>>, vector<128x128xbf16>
    %cst_26 = arith.constant dense<0.000000e+00> : vector<16x128xf32>
    %34 = tpu.matmul %32, %33, %cst_26 {dimension_numbers = #tpu.dot_dimension_numbers<[1], [0], [0], [1], [0, 0, 1, 1], [], []>} : vector<16x128xbf16>, vector<128x128xbf16>, vector<16x128xf32> -> vector<16x128xf32>
    %c0_27 = arith.constant 0 : index
    %c0_28 = arith.constant 0 : index
    %35 = vector.load %arg11[%c0_27, %c0_28] : memref<1x128xf32, #tpu.memory_space<vmem>>, vector<1x128xf32>
    %36 = vector.broadcast %35 : vector<1x128xf32> to vector<16x128xf32>
    %37 = arith.addf %34, %36 : vector<16x128xf32>
    %cst_29 = arith.constant 0.000000e+00 : f32
    %38 = vector.broadcast %cst_29 : f32 to vector<16x128xf32>
    %39 = arith.maximumf %37, %38 : vector<16x128xf32>
    %40 = arith.truncf %39 : vector<16x128xf32> to vector<16x128xbf16>
    %c0_30 = arith.constant 0 : index
    %c0_31 = arith.constant 0 : index
    %41 = vector.load %arg12[%c0_30, %c0_31] : memref<128x128xbf16, #tpu.memory_space<vmem>>, vector<128x128xbf16>
    %cst_32 = arith.constant dense<0.000000e+00> : vector<16x128xf32>
    %42 = tpu.matmul %40, %41, %cst_32 {dimension_numbers = #tpu.dot_dimension_numbers<[1], [0], [0], [1], [0, 0, 1, 1], [], []>} : vector<16x128xbf16>, vector<128x128xbf16>, vector<16x128xf32> -> vector<16x128xf32>
    %c0_33 = arith.constant 0 : index
    %c0_34 = arith.constant 0 : index
    %43 = vector.load %arg13[%c0_33, %c0_34] : memref<1x128xf32, #tpu.memory_space<vmem>>, vector<1x128xf32>
    %44 = vector.broadcast %43 : vector<1x128xf32> to vector<16x128xf32>
    %45 = arith.addf %42, %44 : vector<16x128xf32>
    %cst_35 = arith.constant 0.000000e+00 : f32
    %46 = vector.broadcast %cst_35 : f32 to vector<16x128xf32>
    %47 = arith.maximumf %45, %46 : vector<16x128xf32>
    %48 = arith.truncf %47 : vector<16x128xf32> to vector<16x128xbf16>
    %c0_36 = arith.constant 0 : index
    %c0_37 = arith.constant 0 : index
    %49 = vector.load %arg14[%c0_36, %c0_37] : memref<16x128xbf16, #tpu.memory_space<vmem>>, vector<16x128xbf16>
    tpu.vector_store %arg14[%c0_36, %c0_37], %48 {strides = array<i32>} : memref<16x128xbf16, #tpu.memory_space<vmem>>, vector<16x128xbf16>,
    return
  }
  func.func @transform_0(%arg0: i32) -> (i32, i32) {
    %c0_i32 = arith.constant 0 : i32
    %c0_i32_0 = arith.constant 0 : i32
    return %arg0, %c0_i32 : i32, i32
  }
  func.func @transform_1(%arg0: i32) -> (i32, i32) {
    %c0_i32 = arith.constant 0 : i32
    %c0_i32_0 = arith.constant 0 : i32
    %c0_i32_1 = arith.constant 0 : i32
    return %c0_i32, %c0_i32_0 : i32, i32
  }
  func.func @transform_2(%arg0: i32) -> (i32, i32) {
    %c0_i32 = arith.constant 0 : i32
    %c0_i32_0 = arith.constant 0 : i32
    %c0_i32_1 = arith.constant 0 : i32
    return %c0_i32, %c0_i32_0 : i32, i32
  }
  func.func @transform_3(%arg0: i32) -> (i32, i32) {
    %c0_i32 = arith.constant 0 : i32
    %c0_i32_0 = arith.constant 0 : i32
    %c0_i32_1 = arith.constant 0 : i32
    return %c0_i32, %c0_i32_0 : i32, i32
  }
  func.func @transform_4(%arg0: i32) -> (i32, i32) {
    %c0_i32 = arith.constant 0 : i32
    %c0_i32_0 = arith.constant 0 : i32
    %c0_i32_1 = arith.constant 0 : i32
    return %c0_i32, %c0_i32_0 : i32, i32
  }
  func.func @transform_5(%arg0: i32) -> (i32, i32) {
    %c0_i32 = arith.constant 0 : i32
    %c0_i32_0 = arith.constant 0 : i32
    %c0_i32_1 = arith.constant 0 : i32
    return %c0_i32, %c0_i32_0 : i32, i32
  }
  func.func @transform_6(%arg0: i32) -> (i32, i32) {
    %c0_i32 = arith.constant 0 : i32
    %c0_i32_0 = arith.constant 0 : i32
    %c0_i32_1 = arith.constant 0 : i32
    return %c0_i32, %c0_i32_0 : i32, i32
  }
  func.func @transform_7(%arg0: i32) -> (i32, i32) {
    %c0_i32 = arith.constant 0 : i32
    %c0_i32_0 = arith.constant 0 : i32
    %c0_i32_1 = arith.constant 0 : i32
    return %c0_i32, %c0_i32_0 : i32, i32
  }
  func.func @transform_8(%arg0: i32) -> (i32, i32) {
    %c0_i32 = arith.constant 0 : i32
    %c0_i32_0 = arith.constant 0 : i32
    %c0_i32_1 = arith.constant 0 : i32
    return %c0_i32, %c0_i32_0 : i32, i32
  }
  func.func @transform_9(%arg0: i32) -> (i32, i32) {
    %c0_i32 = arith.constant 0 : i32
    %c0_i32_0 = arith.constant 0 : i32
    %c0_i32_1 = arith.constant 0 : i32
    return %c0_i32, %c0_i32_0 : i32, i32
  }
  func.func @transform_10(%arg0: i32) -> (i32, i32) {
    %c0_i32 = arith.constant 0 : i32
    %c0_i32_0 = arith.constant 0 : i32
    %c0_i32_1 = arith.constant 0 : i32
    return %c0_i32, %c0_i32_0 : i32, i32
  }
  func.func @transform_11(%arg0: i32) -> (i32, i32) {
    %c0_i32 = arith.constant 0 : i32
    %c0_i32_0 = arith.constant 0 : i32
    %c0_i32_1 = arith.constant 0 : i32
    return %c0_i32, %c0_i32_0 : i32, i32
  }
  func.func @transform_12(%arg0: i32) -> (i32, i32) {
    %c0_i32 = arith.constant 0 : i32
    %c0_i32_0 = arith.constant 0 : i32
    %c0_i32_1 = arith.constant 0 : i32
    return %c0_i32, %c0_i32_0 : i32, i32
  }
  func.func @transform_13(%arg0: i32) -> (i32, i32) {
    %c0_i32 = arith.constant 0 : i32
    %c0_i32_0 = arith.constant 0 : i32
    return %arg0, %c0_i32 : i32, i32
  }
}

</mosaic_0001>

<llo_original>
// kernel: tpu_custom_call.1
$region0: #{tpu_custom_call.1}
  #allocation0 [shape = 'u32[]', space=smem, size = 0x4, offset = 0x4, fixed_abs, tag = 'smem constant byte address 0x4 - core index']
  #allocation1 [shape = 'u32[72,128]{1,0:T(1,128)}', space=vmem, size = 0x9000, scoped, tag = 'internal scratch']
  %s0 = inlined_call_operand.hbm [shape: bf16[16,896], index: 0, kind: input, shape index: {}]
  %s1 = inlined_call_operand.hbm [shape: bf16[896,512], index: 1, kind: input, shape index: {}]
  %s2 = inlined_call_operand.hbm [shape: f32[1,512], index: 2, kind: input, shape index: {}]
  %s3 = inlined_call_operand.hbm [shape: bf16[512,512], index: 3, kind: input, shape index: {}]
  %s4 = inlined_call_operand.hbm [shape: f32[1,512], index: 4, kind: input, shape index: {}]
  %s5 = inlined_call_operand.hbm [shape: bf16[512,128], index: 5, kind: input, shape index: {}]
  %s6 = inlined_call_operand.vmem [shape: f32[1,128], index: 6, kind: input, shape index: {}]
  %s7 = inlined_call_operand.hbm [shape: bf16[128,128], index: 7, kind: input, shape index: {}]
  %s8 = inlined_call_operand.vmem [shape: f32[1,128], index: 8, kind: input, shape index: {}]
  %s9 = inlined_call_operand.hbm [shape: bf16[128,128], index: 9, kind: input, shape index: {}]
  %s10 = inlined_call_operand.vmem [shape: f32[1,128], index: 10, kind: input, shape index: {}]
  %s11 = inlined_call_operand.hbm [shape: bf16[128,128], index: 11, kind: input, shape index: {}]
  %s12 = inlined_call_operand.vmem [shape: f32[1,128], index: 12, kind: input, shape index: {}]
  %s13 = inlined_call_operand.hbm [shape: bf16[16,128], index: 13, kind: output, shape index: {}]
  %s14 = sld [smem:[#allocation0]]
  $region98: #{tpu_custom_call.1} parent=0
    _
  %s16 = ssub.s32 1, %s14
  %s17 = scalar_select 0, %s16, %s14
  $region1: #{tpu_custom_call.1} parent=0
    #allocation2 [shape = 'u8[28672]{0}', space=vmem, size = 0x7000, scoped, tag = 'input window, operand 0, single buffered']
    #allocation3 [shape = 's32[1]{0}', space=sflag, size = 0x4, scoped, tag = 'scoped memory for tpu_custom_call.1']
    #allocation4 [shape = 's32[1]{0}', space=sflag, size = 0x4, scoped, tag = 'scoped memory for tpu_custom_call.1']
    #allocation5 [shape = 'u8[917504]{0}', space=vmem, size = 0xe0000, scoped, tag = 'input window, operand 1, single buffered']
    #allocation6 [shape = 's32[1]{0}', space=sflag, size = 0x4, scoped, tag = 'scoped memory for tpu_custom_call.1']
    #allocation7 [shape = 'u8[2048]{0}', space=vmem, size = 0x800, scoped, tag = 'input window, operand 2, single buffered']
    #allocation8 [shape = 'u8[524288]{0}', space=vmem, size = 0x80000, scoped, tag = 'input window, operand 3, single buffered']
    #allocation9 [shape = 's32[1]{0}', space=sflag, size = 0x4, scoped, tag = 'scoped memory for tpu_custom_call.1']
    #allocation10 [shape = 'u8[2048]{0}', space=vmem, size = 0x800, scoped, tag = 'input window, operand 4, single buffered']
    #allocation11 [shape = 'u8[131072]{0}', space=vmem, size = 0x20000, scoped, tag = 'input window, operand 5, single buffered']
    #allocation12 [shape = 's32[1]{0}', space=sflag, size = 0x4, scoped, tag = 'scoped memory for tpu_custom_call.1']
    #allocation13 [shape = 'u8[32768]{0}', space=vmem, size = 0x8000, scoped, tag = 'input window, operand 7, single buffered']
    #allocation14 [shape = 'u8[32768]{0}', space=vmem, size = 0x8000, scoped, tag = 'input window, operand 9, single buffered']
    #allocation15 [shape = 's32[1]{0}', space=sflag, size = 0x4, scoped, tag = 'scoped memory for tpu_custom_call.1']
    #allocation16 [shape = 'u8[32768]{0}', space=vmem, size = 0x8000, scoped, tag = 'input window, operand 11, single buffered']
    #allocation17 [shape = 'u8[4096]{0}', space=vmem, size = 0x1000, scoped, tag = 'output window, operand 0, single buffered']
    %18 = vsyncpa [#allocation3], 0
    %19 = vsyncpa [#allocation6], 0
    %20 = vsyncpa [#allocation9], 0
    %21 = vsyncpa [#allocation12], 0
    %22 = vsyncpa [#allocation15], 0
    %23 = vsyncpa [#allocation4], 0
    // Predicated region
    $region2: #{tpu_custom_call.1} parent=1 // pred_check
      _
    $region3: #{tpu_custom_call.1} parent=1 // pred_check_branch
      %25 = sbr.rel (0) target = $region5
    $region4: #{tpu_custom_call.1} parent=1 // pred_region
      %27 = vsyncadd [#allocation3], 0
      %s28 = sshll.u32 %s0, 4
      %s29 = int_to_ptr.hbm [resolvable:$true] %s28
      %s30 = sshll.u32 [#allocation2], 4
      %s31 = int_to_ptr.vmem [resolvable:$true] %s30
      %36 = dma.hbm_to_vmem [thread:$0]  %s29, 896, %s31, [#allocation3], 448, 448, 28
    $region5: #{tpu_custom_call.1} parent=1 // pred_fallthru
      _
    // Predicated region
    $region6: #{tpu_custom_call.1} parent=1 // pred_check
      _
    $region7: #{tpu_custom_call.1} parent=1 // pred_check_branch
      %38 = sbr.rel (0) target = $region9
    $region8: #{tpu_custom_call.1} parent=1 // pred_region
      %40 = vsyncadd [#allocation6], 0
      %s41 = sshll.u32 %s1, 4
      %s42 = int_to_ptr.hbm [resolvable:$true] %s41
      %s43 = sshll.u32 [#allocation5], 4
      %s44 = int_to_ptr.vmem [resolvable:$true] %s43
      %49 = dma.hbm_to_vmem [thread:$0]  %s42, 28672, %s44, [#allocation6], 256, 256, 16
    $region9: #{tpu_custom_call.1} parent=1 // pred_fallthru
      _
    // Predicated region
    $region10: #{tpu_custom_call.1} parent=1 // pred_check
      _
    $region11: #{tpu_custom_call.1} parent=1 // pred_check_branch
      %51 = sbr.rel (0) target = $region13
    $region12: #{tpu_custom_call.1} parent=1 // pred_region
      %53 = vsyncadd [#allocation6], 0
      %s55 = sshll.u32 %s2, 4
      %s56 = int_to_ptr.hbm [resolvable:$true] %s55
      %s57 = sshll.u32 [#allocation7], 4
      %s58 = int_to_ptr.vmem [resolvable:$true] %s57
      %60 = dma.hbm_to_vmem [thread:$0]  %s56, 64, %s58, [#allocation6]
    $region13: #{tpu_custom_call.1} parent=1 // pred_fallthru
      _
    // Predicated region
    $region14: #{tpu_custom_call.1} parent=1 // pred_check
      _
    $region15: #{tpu_custom_call.1} parent=1 // pred_check_branch
      %62 = sbr.rel (0) target = $region17
    $region16: #{tpu_custom_call.1} parent=1 // pred_region
      %64 = vsyncadd [#allocation9], 0
      %s65 = sshll.u32 %s3, 4
      %s66 = int_to_ptr.hbm [resolvable:$true] %s65
      %s67 = sshll.u32 [#allocation8], 4
      %s68 = int_to_ptr.vmem [resolvable:$true] %s67
      %73 = dma.hbm_to_vmem [thread:$0]  %s66, 16384, %s68, [#allocation9], 256, 256, 16
    $region17: #{tpu_custom_call.1} parent=1 // pred_fallthru
      _
    // Predicated region
    $region18: #{tpu_custom_call.1} parent=1 // pred_check
      _
    $region19: #{tpu_custom_call.1} parent=1 // pred_check_branch
      %75 = sbr.rel (0) target = $region21
    $region20: #{tpu_custom_call.1} parent=1 // pred_region
      %77 = vsyncadd [#allocation9], 0
      %s79 = sshll.u32 %s4, 4
      %s80 = int_to_ptr.hbm [resolvable:$true] %s79
      %s81 = sshll.u32 [#allocation10], 4
      %s82 = int_to_ptr.vmem [resolvable:$true] %s81
      %84 = dma.hbm_to_vmem [thread:$0]  %s80, 64, %s82, [#allocation9]
    $region21: #{tpu_custom_call.1} parent=1 // pred_fallthru
      _
    // Predicated region
    $region22: #{tpu_custom_call.1} parent=1 // pred_check
      _
    $region23: #{tpu_custom_call.1} parent=1 // pred_check_branch
      %86 = sbr.rel (0) target = $region25
    $region24: #{tpu_custom_call.1} parent=1 // pred_region
      %88 = vsyncadd [#allocation12], 0
      %s89 = sshll.u32 %s5, 4
      %s90 = int_to_ptr.hbm [resolvable:$true] %s89
      %s91 = sshll.u32 [#allocation11], 4
      %s92 = int_to_ptr.vmem [resolvable:$true] %s91
      %97 = dma.hbm_to_vmem [thread:$0]  %s90, 4096, %s92, [#allocation12], 64, 64, 4
    $region25: #{tpu_custom_call.1} parent=1 // pred_fallthru
      _
    // Predicated region
    $region26: #{tpu_custom_call.1} parent=1 // pred_check
      _
    $region27: #{tpu_custom_call.1} parent=1 // pred_check_branch
      %99 = sbr.rel (0) target = $region29
    $region28: #{tpu_custom_call.1} parent=1 // pred_region
      _
    $region29: #{tpu_custom_call.1} parent=1 // pred_fallthru
      _
    // Predicated region
    $region30: #{tpu_custom_call.1} parent=1 // pred_check
      _
    $region31: #{tpu_custom_call.1} parent=1 // pred_check_branch
      %101 = sbr.rel (0) target = $region33
    $region32: #{tpu_custom_call.1} parent=1 // pred_region
      %103 = vsyncadd [#allocation12], 0
      %s104 = sshll.u32 %s7, 4
      %s105 = int_to_ptr.hbm [resolvable:$true] %s104
      %s106 = sshll.u32 [#allocation13], 4
      %s107 = int_to_ptr.vmem [resolvable:$true] %s106
      %112 = dma.hbm_to_vmem [thread:$0]  %s105, 1024, %s107, [#allocation12], 64, 64, 4
    $region33: #{tpu_custom_call.1} parent=1 // pred_fallthru
      _
    // Predicated region
    $region34: #{tpu_custom_call.1} parent=1 // pred_check
      _
    $region35: #{tpu_custom_call.1} parent=1 // pred_check_branch
      %114 = sbr.rel (0) target = $region37
    $region36: #{tpu_custom_call.1} parent=1 // pred_region
      _
    $region37: #{tpu_custom_call.1} parent=1 // pred_fallthru
      _
    // Predicated region
    $region38: #{tpu_custom_call.1} parent=1 // pred_check
      _
    $region39: #{tpu_custom_call.1} parent=1 // pred_check_branch
      %116 = sbr.rel (0) target = $region41
    $region40: #{tpu_custom_call.1} parent=1 // pred_region
      %118 = vsyncadd [#allocation15], 0
      %s119 = sshll.u32 %s9, 4
      %s120 = int_to_ptr.hbm [resolvable:$true] %s119
      %s121 = sshll.u32 [#allocation14], 4
      %s122 = int_to_ptr.vmem [resolvable:$true] %s121
      %127 = dma.hbm_to_vmem [thread:$0]  %s120, 1024, %s122, [#allocation15], 64, 64, 4
    $region41: #{tpu_custom_call.1} parent=1 // pred_fallthru
      _
    // Predicated region
    $region42: #{tpu_custom_call.1} parent=1 // pred_check
      _
    $region43: #{tpu_custom_call.1} parent=1 // pred_check_branch
      %129 = sbr.rel (0) target = $region45
    $region44: #{tpu_custom_call.1} parent=1 // pred_region
      _
    $region45: #{tpu_custom_call.1} parent=1 // pred_fallthru
      _
    // Predicated region
    $region46: #{tpu_custom_call.1} parent=1 // pred_check
      _
    $region47: #{tpu_custom_call.1} parent=1 // pred_check_branch
      %131 = sbr.rel (0) target = $region49
    $region48: #{tpu_custom_call.1} parent=1 // pred_region
      %133 = vsyncadd [#allocation15], 0
      %s134 = sshll.u32 %s11, 4
      %s135 = int_to_ptr.hbm [resolvable:$true] %s134
      %s136 = sshll.u32 [#allocation16], 4
      %s137 = int_to_ptr.vmem [resolvable:$true] %s136
      %142 = dma.hbm_to_vmem [thread:$0]  %s135, 1024, %s137, [#allocation15], 64, 64, 4
    $region49: #{tpu_custom_call.1} parent=1 // pred_fallthru
      _
    // Predicated region
    $region50: #{tpu_custom_call.1} parent=1 // pred_check
      _
    $region51: #{tpu_custom_call.1} parent=1 // pred_check_branch
      %144 = sbr.rel (0) target = $region53
    $region52: #{tpu_custom_call.1} parent=1 // pred_region
      _
    $region53: #{tpu_custom_call.1} parent=1 // pred_fallthru
      _
    // Predicated region
    $region54: #{tpu_custom_call.1} parent=1 // pred_check
      _
    $region55: #{tpu_custom_call.1} parent=1 // pred_check_branch
      %146 = sbr.rel (0) target = $region57
    $region56: #{tpu_custom_call.1} parent=1 // pred_region
      %148 = dma.done [#allocation3], 896
    $region57: #{tpu_custom_call.1} parent=1 // pred_fallthru
      _
    // Predicated region
    $region58: #{tpu_custom_call.1} parent=1 // pred_check
      _
    $region59: #{tpu_custom_call.1} parent=1 // pred_check_branch
      %150 = sbr.rel (0) target = $region61
    $region60: #{tpu_custom_call.1} parent=1 // pred_region
      %152 = dma.done [#allocation6], 28672
    $region61: #{tpu_custom_call.1} parent=1 // pred_fallthru
      _
    // Predicated region
    $region62: #{tpu_custom_call.1} parent=1 // pred_check
      _
    $region63: #{tpu_custom_call.1} parent=1 // pred_check_branch
      %154 = sbr.rel (0) target = $region65
    $region64: #{tpu_custom_call.1} parent=1 // pred_region
      %156 = dma.done [#allocation6], 64
    $region65: #{tpu_custom_call.1} parent=1 // pred_fallthru
      _
    // Predicated region
    $region66: #{tpu_custom_call.1} parent=1 // pred_check
      _
    $region67: #{tpu_custom_call.1} parent=1 // pred_check_branch
      %158 = sbr.rel (0) target = $region69
    $region68: #{tpu_custom_call.1} parent=1 // pred_region
      %160 = dma.done [#allocation9], 16384
    $region69: #{tpu_custom_call.1} parent=1 // pred_fallthru
      _
    // Predicated region
    $region70: #{tpu_custom_call.1} parent=1 // pred_check
      _
    $region71: #{tpu_custom_call.1} parent=1 // pred_check_branch
      %162 = sbr.rel (0) target = $region73
    $region72: #{tpu_custom_call.1} parent=1 // pred_region
      %164 = dma.done [#allocation9], 64
    $region73: #{tpu_custom_call.1} parent=1 // pred_fallthru
      _
    // Predicated region
    $region74: #{tpu_custom_call.1} parent=1 // pred_check
      _
    $region75: #{tpu_custom_call.1} parent=1 // pred_check_branch
      %166 = sbr.rel (0) target = $region77
    $region76: #{tpu_custom_call.1} parent=1 // pred_region
      %168 = dma.done [#allocation12], 4096
    $region77: #{tpu_custom_call.1} parent=1 // pred_fallthru
      _
    // Predicated region
    $region78: #{tpu_custom_call.1} parent=1 // pred_check
      _
    $region79: #{tpu_custom_call.1} parent=1 // pred_check_branch
      %170 = sbr.rel (0) target = $region81
    $region80: #{tpu_custom_call.1} parent=1 // pred_region
      %172 = dma.done [#allocation12], 1024
    $region81: #{tpu_custom_call.1} parent=1 // pred_fallthru
      _
    // Predicated region
    $region82: #{tpu_custom_call.1} parent=1 // pred_check
      _
    $region83: #{tpu_custom_call.1} parent=1 // pred_check_branch
      %174 = sbr.rel (0) target = $region85
    $region84: #{tpu_custom_call.1} parent=1 // pred_region
      %176 = dma.done [#allocation15], 1024
    $region85: #{tpu_custom_call.1} parent=1 // pred_fallthru
      _
    // Predicated region
    $region86: #{tpu_custom_call.1} parent=1 // pred_check
      _
    $region87: #{tpu_custom_call.1} parent=1 // pred_check_branch
      %178 = sbr.rel (0) target = $region89
    $region88: #{tpu_custom_call.1} parent=1 // pred_region
      %180 = dma.done [#allocation15], 1024
    $region89: #{tpu_custom_call.1} parent=1 // pred_fallthru
      _
    %v181 = vld [vmem:[#allocation2] sm:$0xff]
    %v182 = vld [vmem:[#allocation2 + $0x8] sm:$0xff]
    %v183 = vld [vmem:[#allocation2 + $0x10] sm:$0xff]
    %v184 = vld [vmem:[#allocation2 + $0x18] sm:$0xf]
    %v185 = vld [vmem:[#allocation2 + $0x1c] sm:$0xff]
    %v186 = vld [vmem:[#allocation2 + $0x24] sm:$0xff]
    %v187 = vld [vmem:[#allocation2 + $0x2c] sm:$0xff]
    %v188 = vld [vmem:[#allocation2 + $0x34] sm:$0xf]
    %v189 = vld [vmem:[#allocation5] sm:$0xff]
    %v190 = vld [vmem:[#allocation5 + $0x8] sm:$0xff]
    %v191 = vld [vmem:[#allocation5 + $0x10] sm:$0xff]
    %v192 = vld [vmem:[#allocation5 + $0x18] sm:$0xff]
    %v193 = vld [vmem:[#allocation5 + $0x20] sm:$0xff]
    %v194 = vld [vmem:[#allocation5 + $0x28] sm:$0xff]
    %v195 = vld [vmem:[#allocation5 + $0x30] sm:$0xff]
    %v196 = vld [vmem:[#allocation5 + $0x38] sm:$0xff]
    %v197 = vld [vmem:[#allocation5 + $0x40] sm:$0xff]
    %v198 = vld [vmem:[#allocation5 + $0x48] sm:$0xff]
    %v199 = vld [vmem:[#allocation5 + $0x50] sm:$0xff]
    %v200 = vld [vmem:[#allocation5 + $0x58] sm:$0xff]
    %v201 = vld [vmem:[#allocation5 + $0x60] sm:$0xff]
    %v202 = vld [vmem:[#allocation5 + $0x68] sm:$0xff]
    %v203 = vld [vmem:[#allocation5 + $0x70] sm:$0xff]
    %v204 = vld [vmem:[#allocation5 + $0x78] sm:$0xff]
    %v205 = vld [vmem:[#allocation5 + $0x80] sm:$0xff]
    %v206 = vld [vmem:[#allocation5 + $0x88] sm:$0xff]
    %v207 = vld [vmem:[#allocation5 + $0x90] sm:$0xff]
    %v208 = vld [vmem:[#allocation5 + $0x98] sm:$0xff]
    %v209 = vld [vmem:[#allocation5 + $0xa0] sm:$0xff]
    %v210 = vld [vmem:[#allocation5 + $0xa8] sm:$0xff]
    %v211 = vld [vmem:[#allocation5 + $0xb0] sm:$0xff]
    %v212 = vld [vmem:[#allocation5 + $0xb8] sm:$0xff]
    %v213 = vld [vmem:[#allocation5 + $0xc0] sm:$0xff]
    %v214 = vld [vmem:[#allocation5 + $0xc8] sm:$0xff]
    %v215 = vld [vmem:[#allocation5 + $0xd0] sm:$0xff]
    %v216 = vld [vmem:[#allocation5 + $0xd8] sm:$0xff]
    %v217 = vld [vmem:[#allocation5 + $0xe0] sm:$0xff]
    %v218 = vld [vmem:[#allocation5 + $0xe8] sm:$0xff]
    %v219 = vld [vmem:[#allocation5 + $0xf0] sm:$0xff]
    %v220 = vld [vmem:[#allocation5 + $0xf8] sm:$0xff]
    %v221 = vld [vmem:[#allocation5 + $0x100] sm:$0xff]
    %v222 = vld [vmem:[#allocation5 + $0x108] sm:$0xff]
    %v223 = vld [vmem:[#allocation5 + $0x110] sm:$0xff]
    %v224 = vld [vmem:[#allocation5 + $0x118] sm:$0xff]
    %v225 = vld [vmem:[#allocation5 + $0x120] sm:$0xff]
    %v226 = vld [vmem:[#allocation5 + $0x128] sm:$0xff]
    %v227 = vld [vmem:[#allocation5 + $0x130] sm:$0xff]
    %v228 = vld [vmem:[#allocation5 + $0x138] sm:$0xff]
    %v229 = vld [vmem:[#allocation5 + $0x140] sm:$0xff]
    %v230 = vld [vmem:[#allocation5 + $0x148] sm:$0xff]
    %v231 = vld [vmem:[#allocation5 + $0x150] sm:$0xff]
    %v232 = vld [vmem:[#allocation5 + $0x158] sm:$0xff]
    %v233 = vld [vmem:[#allocation5 + $0x160] sm:$0xff]
    %v234 = vld [vmem:[#allocation5 + $0x168] sm:$0xff]
    %v235 = vld [vmem:[#allocation5 + $0x170] sm:$0xff]
    %v236 = vld [vmem:[#allocation5 + $0x178] sm:$0xff]
    %v237 = vld [vmem:[#allocation5 + $0x180] sm:$0xff]
    %v238 = vld [vmem:[#allocation5 + $0x188] sm:$0xff]
    %v239 = vld [vmem:[#allocation5 + $0x190] sm:$0xff]
    %v240 = vld [vmem:[#allocation5 + $0x198] sm:$0xff]
    %v241 = vld [vmem:[#allocation5 + $0x1a0] sm:$0xff]
    %v242 = vld [vmem:[#allocation5 + $0x1a8] sm:$0xff]
    %v243 = vld [vmem:[#allocation5 + $0x1b0] sm:$0xff]
    %v244 = vld [vmem:[#allocation5 + $0x1b8] sm:$0xff]
    %v245 = vld [vmem:[#allocation5 + $0x1c0] sm:$0xff]
    %v246 = vld [vmem:[#allocation5 + $0x1c8] sm:$0xff]
    %v247 = vld [vmem:[#allocation5 + $0x1d0] sm:$0xff]
    %v248 = vld [vmem:[#allocation5 + $0x1d8] sm:$0xff]
    %v249 = vld [vmem:[#allocation5 + $0x1e0] sm:$0xff]
    %v250 = vld [vmem:[#allocation5 + $0x1e8] sm:$0xff]
    %v251 = vld [vmem:[#allocation5 + $0x1f0] sm:$0xff]
    %v252 = vld [vmem:[#allocation5 + $0x1f8] sm:$0xff]
    %v253 = vld [vmem:[#allocation5 + $0x200] sm:$0xff]
    %v254 = vld [vmem:[#allocation5 + $0x208] sm:$0xff]
    %v255 = vld [vmem:[#allocation5 + $0x210] sm:$0xff]
    %v256 = vld [vmem:[#allocation5 + $0x218] sm:$0xff]
    %v257 = vld [vmem:[#allocation5 + $0x220] sm:$0xff]
    %v258 = vld [vmem:[#allocation5 + $0x228] sm:$0xff]
    %v259 = vld [vmem:[#allocation5 + $0x230] sm:$0xff]
    %v260 = vld [vmem:[#allocation5 + $0x238] sm:$0xff]
    %v261 = vld [vmem:[#allocation5 + $0x240] sm:$0xff]
    %v262 = vld [vmem:[#allocation5 + $0x248] sm:$0xff]
    %v263 = vld [vmem:[#allocation5 + $0x250] sm:$0xff]
    %v264 = vld [vmem:[#allocation5 + $0x258] sm:$0xff]
    %v265 = vld [vmem:[#allocation5 + $0x260] sm:$0xff]
    %v266 = vld [vmem:[#allocation5 + $0x268] sm:$0xff]
    %v267 = vld [vmem:[#allocation5 + $0x270] sm:$0xff]
    %v268 = vld [vmem:[#allocation5 + $0x278] sm:$0xff]
    %v269 = vld [vmem:[#allocation5 + $0x280] sm:$0xff]
    %v270 = vld [vmem:[#allocation5 + $0x288] sm:$0xff]
    %v271 = vld [vmem:[#allocation5 + $0x290] sm:$0xff]
    %v272 = vld [vmem:[#allocation5 + $0x298] sm:$0xff]
    %v273 = vld [vmem:[#allocation5 + $0x2a0] sm:$0xff]
    %v274 = vld [vmem:[#allocation5 + $0x2a8] sm:$0xff]
    %v275 = vld [vmem:[#allocation5 + $0x2b0] sm:$0xff]
    %v276 = vld [vmem:[#allocation5 + $0x2b8] sm:$0xff]
    %v277 = vld [vmem:[#allocation5 + $0x2c0] sm:$0xff]
    %v278 = vld [vmem:[#allocation5 + $0x2c8] sm:$0xff]
    %v279 = vld [vmem:[#allocation5 + $0x2d0] sm:$0xff]
    %v280 = vld [vmem:[#allocation5 + $0x2d8] sm:$0xff]
    %v281 = vld [vmem:[#allocation5 + $0x2e0] sm:$0xff]
    %v282 = vld [vmem:[#allocation5 + $0x2e8] sm:$0xff]
    %v283 = vld [vmem:[#allocation5 + $0x2f0] sm:$0xff]
    %v284 = vld [vmem:[#allocation5 + $0x2f8] sm:$0xff]
    %v285 = vld [vmem:[#allocation5 + $0x300] sm:$0xff]
    %v286 = vld [vmem:[#allocation5 + $0x308] sm:$0xff]
    %v287 = vld [vmem:[#allocation5 + $0x310] sm:$0xff]
    %v288 = vld [vmem:[#allocation5 + $0x318] sm:$0xff]
    %v289 = vld [vmem:[#allocation5 + $0x320] sm:$0xff]
    %v290 = vld [vmem:[#allocation5 + $0x328] sm:$0xff]
    %v291 = vld [vmem:[#allocation5 + $0x330] sm:$0xff]
    %v292 = vld [vmem:[#allocation5 + $0x338] sm:$0xff]
    %v293 = vld [vmem:[#allocation5 + $0x340] sm:$0xff]
    %v294 = vld [vmem:[#allocation5 + $0x348] sm:$0xff]
    %v295 = vld [vmem:[#allocation5 + $0x350] sm:$0xff]
    %v296 = vld [vmem:[#allocation5 + $0x358] sm:$0xff]
    %v297 = vld [vmem:[#allocation5 + $0x360] sm:$0xff]
    %v298 = vld [vmem:[#allocation5 + $0x368] sm:$0xff]
    %v299 = vld [vmem:[#allocation5 + $0x370] sm:$0xff]
    %v300 = vld [vmem:[#allocation5 + $0x378] sm:$0xff]
    %v301 = vld [vmem:[#allocation5 + $0x380] sm:$0xff]
    %v302 = vld [vmem:[#allocation5 + $0x388] sm:$0xff]
    %v303 = vld [vmem:[#allocation5 + $0x390] sm:$0xff]
    %v304 = vld [vmem:[#allocation5 + $0x398] sm:$0xff]
    %v305 = vld [vmem:[#allocation5 + $0x3a0] sm:$0xff]
    %v306 = vld [vmem:[#allocation5 + $0x3a8] sm:$0xff]
    %v307 = vld [vmem:[#allocation5 + $0x3b0] sm:$0xff]
    %v308 = vld [vmem:[#allocation5 + $0x3b8] sm:$0xff]
    %v309 = vld [vmem:[#allocation5 + $0x3c0] sm:$0xff]
    %v310 = vld [vmem:[#allocation5 + $0x3c8] sm:$0xff]
    %v311 = vld [vmem:[#allocation5 + $0x3d0] sm:$0xff]
    %v312 = vld [vmem:[#allocation5 + $0x3d8] sm:$0xff]
    %v313 = vld [vmem:[#allocation5 + $0x3e0] sm:$0xff]
    %v314 = vld [vmem:[#allocation5 + $0x3e8] sm:$0xff]
    %v315 = vld [vmem:[#allocation5 + $0x3f0] sm:$0xff]
    %v316 = vld [vmem:[#allocation5 + $0x3f8] sm:$0xff]
    %v317 = vld [vmem:[#allocation5 + $0x400] sm:$0xff]
    %v318 = vld [vmem:[#allocation5 + $0x408] sm:$0xff]
    %v319 = vld [vmem:[#allocation5 + $0x410] sm:$0xff]
    %v320 = vld [vmem:[#allocation5 + $0x418] sm:$0xff]
    %v321 = vld [vmem:[#allocation5 + $0x420] sm:$0xff]
    %v322 = vld [vmem:[#allocation5 + $0x428] sm:$0xff]
    %v323 = vld [vmem:[#allocation5 + $0x430] sm:$0xff]
    %v324 = vld [vmem:[#allocation5 + $0x438] sm:$0xff]
    %v325 = vld [vmem:[#allocation5 + $0x440] sm:$0xff]
    %v326 = vld [vmem:[#allocation5 + $0x448] sm:$0xff]
    %v327 = vld [vmem:[#allocation5 + $0x450] sm:$0xff]
    %v328 = vld [vmem:[#allocation5 + $0x458] sm:$0xff]
    %v329 = vld [vmem:[#allocation5 + $0x460] sm:$0xff]
    %v330 = vld [vmem:[#allocation5 + $0x468] sm:$0xff]
    %v331 = vld [vmem:[#allocation5 + $0x470] sm:$0xff]
    %v332 = vld [vmem:[#allocation5 + $0x478] sm:$0xff]
    %v333 = vld [vmem:[#allocation5 + $0x480] sm:$0xff]
    %v334 = vld [vmem:[#allocation5 + $0x488] sm:$0xff]
    %v335 = vld [vmem:[#allocation5 + $0x490] sm:$0xff]
    %v336 = vld [vmem:[#allocation5 + $0x498] sm:$0xff]
    %v337 = vld [vmem:[#allocation5 + $0x4a0] sm:$0xff]
    %v338 = vld [vmem:[#allocation5 + $0x4a8] sm:$0xff]
    %v339 = vld [vmem:[#allocation5 + $0x4b0] sm:$0xff]
    %v340 = vld [vmem:[#allocation5 + $0x4b8] sm:$0xff]
    %v341 = vld [vmem:[#allocation5 + $0x4c0] sm:$0xff]
    %v342 = vld [vmem:[#allocation5 + $0x4c8] sm:$0xff]
    %v343 = vld [vmem:[#allocation5 + $0x4d0] sm:$0xff]
    %v344 = vld [vmem:[#allocation5 + $0x4d8] sm:$0xff]
    %v345 = vld [vmem:[#allocation5 + $0x4e0] sm:$0xff]
    %v346 = vld [vmem:[#allocation5 + $0x4e8] sm:$0xff]
    %v347 = vld [vmem:[#allocation5 + $0x4f0] sm:$0xff]
    %v348 = vld [vmem:[#allocation5 + $0x4f8] sm:$0xff]
    %v349 = vld [vmem:[#allocation5 + $0x500] sm:$0xff]
    %v350 = vld [vmem:[#allocation5 + $0x508] sm:$0xff]
    %v351 = vld [vmem:[#allocation5 + $0x510] sm:$0xff]
    %v352 = vld [vmem:[#allocation5 + $0x518] sm:$0xff]
    %v353 = vld [vmem:[#allocation5 + $0x520] sm:$0xff]
    %v354 = vld [vmem:[#allocation5 + $0x528] sm:$0xff]
    %v355 = vld [vmem:[#allocation5 + $0x530] sm:$0xff]
    %v356 = vld [vmem:[#allocation5 + $0x538] sm:$0xff]
    %v357 = vld [vmem:[#allocation5 + $0x540] sm:$0xff]
    %v358 = vld [vmem:[#allocation5 + $0x548] sm:$0xff]
    %v359 = vld [vmem:[#allocation5 + $0x550] sm:$0xff]
    %v360 = vld [vmem:[#allocation5 + $0x558] sm:$0xff]
    %v361 = vld [vmem:[#allocation5 + $0x560] sm:$0xff]
    %v362 = vld [vmem:[#allocation5 + $0x568] sm:$0xff]
    %v363 = vld [vmem:[#allocation5 + $0x570] sm:$0xff]
    %v364 = vld [vmem:[#allocation5 + $0x578] sm:$0xff]
    %v365 = vld [vmem:[#allocation5 + $0x580] sm:$0xff]
    %v366 = vld [vmem:[#allocation5 + $0x588] sm:$0xff]
    %v367 = vld [vmem:[#allocation5 + $0x590] sm:$0xff]
    %v368 = vld [vmem:[#allocation5 + $0x598] sm:$0xff]
    %v369 = vld [vmem:[#allocation5 + $0x5a0] sm:$0xff]
    %v370 = vld [vmem:[#allocation5 + $0x5a8] sm:$0xff]
    %v371 = vld [vmem:[#allocation5 + $0x5b0] sm:$0xff]
    %v372 = vld [vmem:[#allocation5 + $0x5b8] sm:$0xff]
    %v373 = vld [vmem:[#allocation5 + $0x5c0] sm:$0xff]
    %v374 = vld [vmem:[#allocation5 + $0x5c8] sm:$0xff]
    %v375 = vld [vmem:[#allocation5 + $0x5d0] sm:$0xff]
    %v376 = vld [vmem:[#allocation5 + $0x5d8] sm:$0xff]
    %v377 = vld [vmem:[#allocation5 + $0x5e0] sm:$0xff]
    %v378 = vld [vmem:[#allocation5 + $0x5e8] sm:$0xff]
    %v379 = vld [vmem:[#allocation5 + $0x5f0] sm:$0xff]
    %v380 = vld [vmem:[#allocation5 + $0x5f8] sm:$0xff]
    %v381 = vld [vmem:[#allocation5 + $0x600] sm:$0xff]
    %v382 = vld [vmem:[#allocation5 + $0x608] sm:$0xff]
    %v383 = vld [vmem:[#allocation5 + $0x610] sm:$0xff]
    %v384 = vld [vmem:[#allocation5 + $0x618] sm:$0xff]
    %v385 = vld [vmem:[#allocation5 + $0x620] sm:$0xff]
    %v386 = vld [vmem:[#allocation5 + $0x628] sm:$0xff]
    %v387 = vld [vmem:[#allocation5 + $0x630] sm:$0xff]
    %v388 = vld [vmem:[#allocation5 + $0x638] sm:$0xff]
    %v389 = vld [vmem:[#allocation5 + $0x640] sm:$0xff]
    %v390 = vld [vmem:[#allocation5 + $0x648] sm:$0xff]
    %v391 = vld [vmem:[#allocation5 + $0x650] sm:$0xff]
    %v392 = vld [vmem:[#allocation5 + $0x658] sm:$0xff]
    %v393 = vld [vmem:[#allocation5 + $0x660] sm:$0xff]
    %v394 = vld [vmem:[#allocation5 + $0x668] sm:$0xff]
    %v395 = vld [vmem:[#allocation5 + $0x670] sm:$0xff]
    %v396 = vld [vmem:[#allocation5 + $0x678] sm:$0xff]
    %v397 = vld [vmem:[#allocation5 + $0x680] sm:$0xff]
    %v398 = vld [vmem:[#allocation5 + $0x688] sm:$0xff]
    %v399 = vld [vmem:[#allocation5 + $0x690] sm:$0xff]
    %v400 = vld [vmem:[#allocation5 + $0x698] sm:$0xff]
    %v401 = vld [vmem:[#allocation5 + $0x6a0] sm:$0xff]
    %v402 = vld [vmem:[#allocation5 + $0x6a8] sm:$0xff]
    %v403 = vld [vmem:[#allocation5 + $0x6b0] sm:$0xff]
    %v404 = vld [vmem:[#allocation5 + $0x6b8] sm:$0xff]
    %v405 = vld [vmem:[#allocation5 + $0x6c0] sm:$0xff]
    %v406 = vld [vmem:[#allocation5 + $0x6c8] sm:$0xff]
    %v407 = vld [vmem:[#allocation5 + $0x6d0] sm:$0xff]
    %v408 = vld [vmem:[#allocation5 + $0x6d8] sm:$0xff]
    %v409 = vld [vmem:[#allocation5 + $0x6e0] sm:$0xff]
    %v410 = vld [vmem:[#allocation5 + $0x6e8] sm:$0xff]
    %v411 = vld [vmem:[#allocation5 + $0x6f0] sm:$0xff]
    %v412 = vld [vmem:[#allocation5 + $0x6f8] sm:$0xff]
    %v413 = vld [vmem:[#allocation7] sm:$0xf]
    %v415 = vperm.slane %v413, 0
    %v416 = vperm.slane %v413, 1
    %v417 = vperm.slane %v413, 2
    %v418 = vperm.slane %v413, 3
    %v431 = vunpack.c.l.b16 %v181
    %v432 = vunpack.c.h.b16 %v181
    %v433 = vunpack.c.l.b16 %v182
    %v434 = vunpack.c.h.b16 %v182
    %v435 = vunpack.c.l.b16 %v183
    %v436 = vunpack.c.h.b16 %v183
    %v437 = vunpack.c.l.b16 %v184
    %v438 = vunpack.c.l.b16 %v185
    %v439 = vunpack.c.h.b16 %v185
    %v440 = vunpack.c.l.b16 %v186
    %v441 = vunpack.c.h.b16 %v186
    %v442 = vunpack.c.l.b16 %v187
    %v443 = vunpack.c.h.b16 %v187
    %v444 = vunpack.c.l.b16 %v188
    %v445 = vpack.c.b16 %v438, %v431
    %v446 = vpack.c.b16 %v439, %v432
    %v447 = vpack.c.b16 %v440, %v433
    %v448 = vpack.c.b16 %v441, %v434
    %v449 = vpack.c.b16 %v442, %v435
    %v450 = vpack.c.b16 %v443, %v436
    %v451 = vpack.c.b16 %v444, %v437
    %v683 = vunpack.c.l.b16 %v189
    %v684 = vunpack.c.h.b16 %v189
    %v685 = vunpack.c.l.b16 %v190
    %v686 = vunpack.c.h.b16 %v190
    %v687 = vunpack.c.l.b16 %v191
    %v688 = vunpack.c.h.b16 %v191
    %v689 = vunpack.c.l.b16 %v192
    %v690 = vunpack.c.h.b16 %v192
    %v691 = vunpack.c.l.b16 %v193
    %v692 = vunpack.c.h.b16 %v193
    %v693 = vunpack.c.l.b16 %v194
    %v694 = vunpack.c.h.b16 %v194
    %v695 = vunpack.c.l.b16 %v195
    %v696 = vunpack.c.h.b16 %v195
    %v697 = vunpack.c.l.b16 %v196
    %v698 = vunpack.c.h.b16 %v196
    %v699 = vunpack.c.l.b16 %v197
    %v700 = vunpack.c.h.b16 %v197
    %v701 = vunpack.c.l.b16 %v198
    %v702 = vunpack.c.h.b16 %v198
    %v703 = vunpack.c.l.b16 %v199
    %v704 = vunpack.c.h.b16 %v199
    %v705 = vunpack.c.l.b16 %v200
    %v706 = vunpack.c.h.b16 %v200
    %v707 = vunpack.c.l.b16 %v201
    %v708 = vunpack.c.h.b16 %v201
    %v709 = vunpack.c.l.b16 %v202
    %v710 = vunpack.c.h.b16 %v202
    %v711 = vunpack.c.l.b16 %v203
    %v712 = vunpack.c.h.b16 %v203
    %v713 = vunpack.c.l.b16 %v204
    %v714 = vunpack.c.h.b16 %v204
    %v715 = vunpack.c.l.b16 %v205
    %v716 = vunpack.c.h.b16 %v205
    %v717 = vunpack.c.l.b16 %v206
    %v718 = vunpack.c.h.b16 %v206
    %v719 = vunpack.c.l.b16 %v207
    %v720 = vunpack.c.h.b16 %v207
    %v721 = vunpack.c.l.b16 %v208
    %v722 = vunpack.c.h.b16 %v208
    %v723 = vunpack.c.l.b16 %v209
    %v724 = vunpack.c.h.b16 %v209
    %v725 = vunpack.c.l.b16 %v210
    %v726 = vunpack.c.h.b16 %v210
    %v727 = vunpack.c.l.b16 %v211
    %v728 = vunpack.c.h.b16 %v211
    %v729 = vunpack.c.l.b16 %v212
    %v730 = vunpack.c.h.b16 %v212
    %v731 = vunpack.c.l.b16 %v213
    %v732 = vunpack.c.h.b16 %v213
    %v733 = vunpack.c.l.b16 %v214
    %v734 = vunpack.c.h.b16 %v214
    %v735 = vunpack.c.l.b16 %v215
    %v736 = vunpack.c.h.b16 %v215
    %v737 = vunpack.c.l.b16 %v216
    %v738 = vunpack.c.h.b16 %v216
    %v739 = vunpack.c.l.b16 %v217
    %v740 = vunpack.c.h.b16 %v217
    %v741 = vunpack.c.l.b16 %v218
    %v742 = vunpack.c.h.b16 %v218
    %v743 = vunpack.c.l.b16 %v219
    %v744 = vunpack.c.h.b16 %v219
    %v745 = vunpack.c.l.b16 %v220
    %v746 = vunpack.c.h.b16 %v220
    %v747 = vunpack.c.l.b16 %v221
    %v748 = vunpack.c.h.b16 %v221
    %v749 = vunpack.c.l.b16 %v222
    %v750 = vunpack.c.h.b16 %v222
    %v751 = vunpack.c.l.b16 %v223
    %v752 = vunpack.c.h.b16 %v223
    %v753 = vunpack.c.l.b16 %v224
    %v754 = vunpack.c.h.b16 %v224
    %v755 = vunpack.c.l.b16 %v225
    %v756 = vunpack.c.h.b16 %v225
    %v757 = vunpack.c.l.b16 %v226
    %v758 = vunpack.c.h.b16 %v226
    %v759 = vunpack.c.l.b16 %v227
    %v760 = vunpack.c.h.b16 %v227
    %v761 = vunpack.c.l.b16 %v228
    %v762 = vunpack.c.h.b16 %v228
    %v763 = vunpack.c.l.b16 %v229
    %v764 = vunpack.c.h.b16 %v229
    %v765 = vunpack.c.l.b16 %v230
    %v766 = vunpack.c.h.b16 %v230
    %v767 = vunpack.c.l.b16 %v231
    %v768 = vunpack.c.h.b16 %v231
    %v769 = vunpack.c.l.b16 %v232
    %v770 = vunpack.c.h.b16 %v232
    %v771 = vunpack.c.l.b16 %v233
    %v772 = vunpack.c.h.b16 %v233
    %v773 = vunpack.c.l.b16 %v234
    %v774 = vunpack.c.h.b16 %v234
    %v775 = vunpack.c.l.b16 %v235
    %v776 = vunpack.c.h.b16 %v235
    %v777 = vunpack.c.l.b16 %v236
    %v778 = vunpack.c.h.b16 %v236
    %v779 = vunpack.c.l.b16 %v237
    %v780 = vunpack.c.h.b16 %v237
    %v781 = vunpack.c.l.b16 %v238
    %v782 = vunpack.c.h.b16 %v238
    %v783 = vunpack.c.l.b16 %v239
    %v784 = vunpack.c.h.b16 %v239
    %v785 = vunpack.c.l.b16 %v240
    %v786 = vunpack.c.h.b16 %v240
    %v787 = vunpack.c.l.b16 %v241
    %v788 = vunpack.c.h.b16 %v241
    %v789 = vunpack.c.l.b16 %v242
    %v790 = vunpack.c.h.b16 %v242
    %v791 = vunpack.c.l.b16 %v243
    %v792 = vunpack.c.h.b16 %v243
    %v793 = vunpack.c.l.b16 %v244
    %v794 = vunpack.c.h.b16 %v244
    %v795 = vunpack.c.l.b16 %v245
    %v796 = vunpack.c.h.b16 %v245
    %v797 = vunpack.c.l.b16 %v246
    %v798 = vunpack.c.h.b16 %v246
    %v799 = vunpack.c.l.b16 %v247
    %v800 = vunpack.c.h.b16 %v247
    %v801 = vunpack.c.l.b16 %v248
    %v802 = vunpack.c.h.b16 %v248
    %v803 = vunpack.c.l.b16 %v249
    %v804 = vunpack.c.h.b16 %v249
    %v805 = vunpack.c.l.b16 %v250
    %v806 = vunpack.c.h.b16 %v250
    %v807 = vunpack.c.l.b16 %v251
    %v808 = vunpack.c.h.b16 %v251
    %v809 = vunpack.c.l.b16 %v252
    %v810 = vunpack.c.h.b16 %v252
    %v811 = vunpack.c.l.b16 %v253
    %v812 = vunpack.c.h.b16 %v253
    %v813 = vunpack.c.l.b16 %v254
    %v814 = vunpack.c.h.b16 %v254
    %v815 = vunpack.c.l.b16 %v255
    %v816 = vunpack.c.h.b16 %v255
    %v817 = vunpack.c.l.b16 %v256
    %v818 = vunpack.c.h.b16 %v256
    %v819 = vunpack.c.l.b16 %v257
    %v820 = vunpack.c.h.b16 %v257
    %v821 = vunpack.c.l.b16 %v258
    %v822 = vunpack.c.h.b16 %v258
    %v823 = vunpack.c.l.b16 %v259
    %v824 = vunpack.c.h.b16 %v259
    %v825 = vunpack.c.l.b16 %v260
    %v826 = vunpack.c.h.b16 %v260
    %v827 = vunpack.c.l.b16 %v261
    %v828 = vunpack.c.h.b16 %v261
    %v829 = vunpack.c.l.b16 %v262
    %v830 = vunpack.c.h.b16 %v262
    %v831 = vunpack.c.l.b16 %v263
    %v832 = vunpack.c.h.b16 %v263
    %v833 = vunpack.c.l.b16 %v264
    %v834 = vunpack.c.h.b16 %v264
    %v835 = vunpack.c.l.b16 %v265
    %v836 = vunpack.c.h.b16 %v265
    %v837 = vunpack.c.l.b16 %v266
    %v838 = vunpack.c.h.b16 %v266
    %v839 = vunpack.c.l.b16 %v267
    %v840 = vunpack.c.h.b16 %v267
    %v841 = vunpack.c.l.b16 %v268
    %v842 = vunpack.c.h.b16 %v268
    %v843 = vunpack.c.l.b16 %v269
    %v844 = vunpack.c.h.b16 %v269
    %v845 = vunpack.c.l.b16 %v270
    %v846 = vunpack.c.h.b16 %v270
    %v847 = vunpack.c.l.b16 %v271
    %v848 = vunpack.c.h.b16 %v271
    %v849 = vunpack.c.l.b16 %v272
    %v850 = vunpack.c.h.b16 %v272
    %v851 = vunpack.c.l.b16 %v273
    %v852 = vunpack.c.h.b16 %v273
    %v853 = vunpack.c.l.b16 %v274
    %v854 = vunpack.c.h.b16 %v274
    %v855 = vunpack.c.l.b16 %v275
    %v856 = vunpack.c.h.b16 %v275
    %v857 = vunpack.c.l.b16 %v276
    %v858 = vunpack.c.h.b16 %v276
    %v859 = vunpack.c.l.b16 %v277
    %v860 = vunpack.c.h.b16 %v277
    %v861 = vunpack.c.l.b16 %v278
    %v862 = vunpack.c.h.b16 %v278
    %v863 = vunpack.c.l.b16 %v279
    %v864 = vunpack.c.h.b16 %v279
    %v865 = vunpack.c.l.b16 %v280
    %v866 = vunpack.c.h.b16 %v280
    %v867 = vunpack.c.l.b16 %v281
    %v868 = vunpack.c.h.b16 %v281
    %v869 = vunpack.c.l.b16 %v282
    %v870 = vunpack.c.h.b16 %v282
    %v871 = vunpack.c.l.b16 %v283
    %v872 = vunpack.c.h.b16 %v283
    %v873 = vunpack.c.l.b16 %v284
    %v874 = vunpack.c.h.b16 %v284
    %v875 = vunpack.c.l.b16 %v285
    %v876 = vunpack.c.h.b16 %v285
    %v877 = vunpack.c.l.b16 %v286
    %v878 = vunpack.c.h.b16 %v286
    %v879 = vunpack.c.l.b16 %v287
    %v880 = vunpack.c.h.b16 %v287
    %v881 = vunpack.c.l.b16 %v288
    %v882 = vunpack.c.h.b16 %v288
    %v883 = vunpack.c.l.b16 %v289
    %v884 = vunpack.c.h.b16 %v289
    %v885 = vunpack.c.l.b16 %v290
    %v886 = vunpack.c.h.b16 %v290
    %v887 = vunpack.c.l.b16 %v291
    %v888 = vunpack.c.h.b16 %v291
    %v889 = vunpack.c.l.b16 %v292
    %v890 = vunpack.c.h.b16 %v292
    %v891 = vunpack.c.l.b16 %v293
    %v892 = vunpack.c.h.b16 %v293
    %v893 = vunpack.c.l.b16 %v294
    %v894 = vunpack.c.h.b16 %v294
    %v895 = vunpack.c.l.b16 %v295
    %v896 = vunpack.c.h.b16 %v295
    %v897 = vunpack.c.l.b16 %v296
    %v898 = vunpack.c.h.b16 %v296
    %v899 = vunpack.c.l.b16 %v297
    %v900 = vunpack.c.h.b16 %v297
    %v901 = vunpack.c.l.b16 %v298
    %v902 = vunpack.c.h.b16 %v298
    %v903 = vunpack.c.l.b16 %v299
    %v904 = vunpack.c.h.b16 %v299
    %v905 = vunpack.c.l.b16 %v300
    %v906 = vunpack.c.h.b16 %v300
    %v907 = vunpack.c.l.b16 %v301
    %v908 = vunpack.c.h.b16 %v301
    %v909 = vunpack.c.l.b16 %v302
    %v910 = vunpack.c.h.b16 %v302
    %v911 = vunpack.c.l.b16 %v303
    %v912 = vunpack.c.h.b16 %v303
    %v913 = vunpack.c.l.b16 %v304
    %v914 = vunpack.c.h.b16 %v304
    %v915 = vunpack.c.l.b16 %v305
    %v916 = vunpack.c.h.b16 %v305
    %v917 = vunpack.c.l.b16 %v306
    %v918 = vunpack.c.h.b16 %v306
    %v919 = vunpack.c.l.b16 %v307
    %v920 = vunpack.c.h.b16 %v307
    %v921 = vunpack.c.l.b16 %v308
    %v922 = vunpack.c.h.b16 %v308
    %v923 = vunpack.c.l.b16 %v309
    %v924 = vunpack.c.h.b16 %v309
    %v925 = vunpack.c.l.b16 %v310
    %v926 = vunpack.c.h.b16 %v310
    %v927 = vunpack.c.l.b16 %v311
    %v928 = vunpack.c.h.b16 %v311
    %v929 = vunpack.c.l.b16 %v312
    %v930 = vunpack.c.h.b16 %v312
    %v931 = vunpack.c.l.b16 %v313
    %v932 = vunpack.c.h.b16 %v313
    %v933 = vunpack.c.l.b16 %v314
    %v934 = vunpack.c.h.b16 %v314
    %v935 = vunpack.c.l.b16 %v315
    %v936 = vunpack.c.h.b16 %v315
    %v937 = vunpack.c.l.b16 %v316
    %v938 = vunpack.c.h.b16 %v316
    %v939 = vunpack.c.l.b16 %v317
    %v940 = vunpack.c.h.b16 %v317
    %v941 = vunpack.c.l.b16 %v318
    %v942 = vunpack.c.h.b16 %v318
    %v943 = vunpack.c.l.b16 %v319
    %v944 = vunpack.c.h.b16 %v319
    %v945 = vunpack.c.l.b16 %v320
    %v946 = vunpack.c.h.b16 %v320
    %v947 = vunpack.c.l.b16 %v321
    %v948 = vunpack.c.h.b16 %v321
    %v949 = vunpack.c.l.b16 %v322
    %v950 = vunpack.c.h.b16 %v322
    %v951 = vunpack.c.l.b16 %v323
    %v952 = vunpack.c.h.b16 %v323
    %v953 = vunpack.c.l.b16 %v324
    %v954 = vunpack.c.h.b16 %v324
    %v955 = vunpack.c.l.b16 %v325
    %v956 = vunpack.c.h.b16 %v325
    %v957 = vunpack.c.l.b16 %v326
    %v958 = vunpack.c.h.b16 %v326
    %v959 = vunpack.c.l.b16 %v327
    %v960 = vunpack.c.h.b16 %v327
    %v961 = vunpack.c.l.b16 %v328
    %v962 = vunpack.c.h.b16 %v328
    %v963 = vunpack.c.l.b16 %v329
    %v964 = vunpack.c.h.b16 %v329
    %v965 = vunpack.c.l.b16 %v330
    %v966 = vunpack.c.h.b16 %v330
    %v967 = vunpack.c.l.b16 %v331
    %v968 = vunpack.c.h.b16 %v331
    %v969 = vunpack.c.l.b16 %v332
    %v970 = vunpack.c.h.b16 %v332
    %v971 = vunpack.c.l.b16 %v333
    %v972 = vunpack.c.h.b16 %v333
    %v973 = vunpack.c.l.b16 %v334
    %v974 = vunpack.c.h.b16 %v334
    %v975 = vunpack.c.l.b16 %v335
    %v976 = vunpack.c.h.b16 %v335
    %v977 = vunpack.c.l.b16 %v336
    %v978 = vunpack.c.h.b16 %v336
    %v979 = vunpack.c.l.b16 %v337
    %v980 = vunpack.c.h.b16 %v337
    %v981 = vunpack.c.l.b16 %v338
    %v982 = vunpack.c.h.b16 %v338
    %v983 = vunpack.c.l.b16 %v339
    %v984 = vunpack.c.h.b16 %v339
    %v985 = vunpack.c.l.b16 %v340
    %v986 = vunpack.c.h.b16 %v340
    %v987 = vunpack.c.l.b16 %v341
    %v988 = vunpack.c.h.b16 %v341
    %v989 = vunpack.c.l.b16 %v342
    %v990 = vunpack.c.h.b16 %v342
    %v991 = vunpack.c.l.b16 %v343
    %v992 = vunpack.c.h.b16 %v343
    %v993 = vunpack.c.l.b16 %v344
    %v994 = vunpack.c.h.b16 %v344
    %v995 = vunpack.c.l.b16 %v345
    %v996 = vunpack.c.h.b16 %v345
    %v997 = vunpack.c.l.b16 %v346
    %v998 = vunpack.c.h.b16 %v346
    %v999 = vunpack.c.l.b16 %v347
    %v1000 = vunpack.c.h.b16 %v347
    %v1001 = vunpack.c.l.b16 %v348
    %v1002 = vunpack.c.h.b16 %v348
    %v1003 = vunpack.c.l.b16 %v349
    %v1004 = vunpack.c.h.b16 %v349
    %v1005 = vunpack.c.l.b16 %v350
    %v1006 = vunpack.c.h.b16 %v350
    %v1007 = vunpack.c.l.b16 %v351
    %v1008 = vunpack.c.h.b16 %v351
    %v1009 = vunpack.c.l.b16 %v352
    %v1010 = vunpack.c.h.b16 %v352
    %v1011 = vunpack.c.l.b16 %v353
    %v1012 = vunpack.c.h.b16 %v353
    %v1013 = vunpack.c.l.b16 %v354
    %v1014 = vunpack.c.h.b16 %v354
    %v1015 = vunpack.c.l.b16 %v355
    %v1016 = vunpack.c.h.b16 %v355
    %v1017 = vunpack.c.l.b16 %v356
    %v1018 = vunpack.c.h.b16 %v356
    %v1019 = vunpack.c.l.b16 %v357
    %v1020 = vunpack.c.h.b16 %v357
    %v1021 = vunpack.c.l.b16 %v358
    %v1022 = vunpack.c.h.b16 %v358
    %v1023 = vunpack.c.l.b16 %v359
    %v1024 = vunpack.c.h.b16 %v359
    %v1025 = vunpack.c.l.b16 %v360
    %v1026 = vunpack.c.h.b16 %v360
    %v1027 = vunpack.c.l.b16 %v361
    %v1028 = vunpack.c.h.b16 %v361
    %v1029 = vunpack.c.l.b16 %v362
    %v1030 = vunpack.c.h.b16 %v362
    %v1031 = vunpack.c.l.b16 %v363
    %v1032 = vunpack.c.h.b16 %v363
    %v1033 = vunpack.c.l.b16 %v364
    %v1034 = vunpack.c.h.b16 %v364
    %v1035 = vunpack.c.l.b16 %v365
    %v1036 = vunpack.c.h.b16 %v365
    %v1037 = vunpack.c.l.b16 %v366
    %v1038 = vunpack.c.h.b16 %v366
    %v1039 = vunpack.c.l.b16 %v367
    %v1040 = vunpack.c.h.b16 %v367
    %v1041 = vunpack.c.l.b16 %v368
    %v1042 = vunpack.c.h.b16 %v368
    %v1043 = vunpack.c.l.b16 %v369
    %v1044 = vunpack.c.h.b16 %v369
    %v1045 = vunpack.c.l.b16 %v370
    %v1046 = vunpack.c.h.b16 %v370
    %v1047 = vunpack.c.l.b16 %v371
    %v1048 = vunpack.c.h.b16 %v371
    %v1049 = vunpack.c.l.b16 %v372
    %v1050 = vunpack.c.h.b16 %v372
    %v1051 = vunpack.c.l.b16 %v373
    %v1052 = vunpack.c.h.b16 %v373
    %v1053 = vunpack.c.l.b16 %v374
    %v1054 = vunpack.c.h.b16 %v374
    %v1055 = vunpack.c.l.b16 %v375
    %v1056 = vunpack.c.h.b16 %v375
    %v1057 = vunpack.c.l.b16 %v376
    %v1058 = vunpack.c.h.b16 %v376
    %v1059 = vunpack.c.l.b16 %v377
    %v1060 = vunpack.c.h.b16 %v377
    %v1061 = vunpack.c.l.b16 %v378
    %v1062 = vunpack.c.h.b16 %v378
    %v1063 = vunpack.c.l.b16 %v379
    %v1064 = vunpack.c.h.b16 %v379
    %v1065 = vunpack.c.l.b16 %v380
    %v1066 = vunpack.c.h.b16 %v380
    %v1067 = vunpack.c.l.b16 %v381
    %v1068 = vunpack.c.h.b16 %v381
    %v1069 = vunpack.c.l.b16 %v382
    %v1070 = vunpack.c.h.b16 %v382
    %v1071 = vunpack.c.l.b16 %v383
    %v1072 = vunpack.c.h.b16 %v383
    %v1073 = vunpack.c.l.b16 %v384
    %v1074 = vunpack.c.h.b16 %v384
    %v1075 = vunpack.c.l.b16 %v385
    %v1076 = vunpack.c.h.b16 %v385
    %v1077 = vunpack.c.l.b16 %v386
    %v1078 = vunpack.c.h.b16 %v386
    %v1079 = vunpack.c.l.b16 %v387
    %v1080 = vunpack.c.h.b16 %v387
    %v1081 = vunpack.c.l.b16 %v388
    %v1082 = vunpack.c.h.b16 %v388
    %v1083 = vunpack.c.l.b16 %v389
    %v1084 = vunpack.c.h.b16 %v389
    %v1085 = vunpack.c.l.b16 %v390
    %v1086 = vunpack.c.h.b16 %v390
    %v1087 = vunpack.c.l.b16 %v391
    %v1088 = vunpack.c.h.b16 %v391
    %v1089 = vunpack.c.l.b16 %v392
    %v1090 = vunpack.c.h.b16 %v392
    %v1091 = vunpack.c.l.b16 %v393
    %v1092 = vunpack.c.h.b16 %v393
    %v1093 = vunpack.c.l.b16 %v394
    %v1094 = vunpack.c.h.b16 %v394
    %v1095 = vunpack.c.l.b16 %v395
    %v1096 = vunpack.c.h.b16 %v395
    %v1097 = vunpack.c.l.b16 %v396
    %v1098 = vunpack.c.h.b16 %v396
    %v1099 = vunpack.c.l.b16 %v397
    %v1100 = vunpack.c.h.b16 %v397
    %v1101 = vunpack.c.l.b16 %v398
    %v1102 = vunpack.c.h.b16 %v398
    %v1103 = vunpack.c.l.b16 %v399
    %v1104 = vunpack.c.h.b16 %v399
    %v1105 = vunpack.c.l.b16 %v400
    %v1106 = vunpack.c.h.b16 %v400
    %v1107 = vunpack.c.l.b16 %v401
    %v1108 = vunpack.c.h.b16 %v401
    %v1109 = vunpack.c.l.b16 %v402
    %v1110 = vunpack.c.h.b16 %v402
    %v1111 = vunpack.c.l.b16 %v403
    %v1112 = vunpack.c.h.b16 %v403
    %v1113 = vunpack.c.l.b16 %v404
    %v1114 = vunpack.c.h.b16 %v404
    %v1115 = vunpack.c.l.b16 %v405
    %v1116 = vunpack.c.h.b16 %v405
    %v1117 = vunpack.c.l.b16 %v406
    %v1118 = vunpack.c.h.b16 %v406
    %v1119 = vunpack.c.l.b16 %v407
    %v1120 = vunpack.c.h.b16 %v407
    %v1121 = vunpack.c.l.b16 %v408
    %v1122 = vunpack.c.h.b16 %v408
    %v1123 = vunpack.c.l.b16 %v409
    %v1124 = vunpack.c.h.b16 %v409
    %v1125 = vunpack.c.l.b16 %v410
    %v1126 = vunpack.c.h.b16 %v410
    %v1127 = vunpack.c.l.b16 %v411
    %v1128 = vunpack.c.h.b16 %v411
    %v1129 = vunpack.c.l.b16 %v412
    %v1130 = vunpack.c.h.b16 %v412
    %v1131 = vpack.c.b16 %v687, %v683
    %v1132 = vpack.c.b16 %v688, %v684
    %v1133 = vpack.c.b16 %v689, %v685
    %v1134 = vpack.c.b16 %v690, %v686
    %v1135 = vpack.c.b16 %v695, %v691
    %v1136 = vpack.c.b16 %v696, %v692
    %v1137 = vpack.c.b16 %v697, %v693
    %v1138 = vpack.c.b16 %v698, %v694
    %v1139 = vpack.c.b16 %v703, %v699
    %v1140 = vpack.c.b16 %v704, %v700
    %v1141 = vpack.c.b16 %v705, %v701
    %v1142 = vpack.c.b16 %v706, %v702
    %v1143 = vpack.c.b16 %v711, %v707
    %v1144 = vpack.c.b16 %v712, %v708
    %v1145 = vpack.c.b16 %v713, %v709
    %v1146 = vpack.c.b16 %v714, %v710
    %v1147 = vpack.c.b16 %v719, %v715
    %v1148 = vpack.c.b16 %v720, %v716
    %v1149 = vpack.c.b16 %v721, %v717
    %v1150 = vpack.c.b16 %v722, %v718
    %v1151 = vpack.c.b16 %v727, %v723
    %v1152 = vpack.c.b16 %v728, %v724
    %v1153 = vpack.c.b16 %v729, %v725
    %v1154 = vpack.c.b16 %v730, %v726
    %v1155 = vpack.c.b16 %v735, %v731
    %v1156 = vpack.c.b16 %v736, %v732
    %v1157 = vpack.c.b16 %v737, %v733
    %v1158 = vpack.c.b16 %v738, %v734
    %v1159 = vpack.c.b16 %v743, %v739
    %v1160 = vpack.c.b16 %v744, %v740
    %v1161 = vpack.c.b16 %v745, %v741
    %v1162 = vpack.c.b16 %v746, %v742
    %v1163 = vpack.c.b16 %v751, %v747
    %v1164 = vpack.c.b16 %v752, %v748
    %v1165 = vpack.c.b16 %v753, %v749
    %v1166 = vpack.c.b16 %v754, %v750
    %v1167 = vpack.c.b16 %v759, %v755
    %v1168 = vpack.c.b16 %v760, %v756
    %v1169 = vpack.c.b16 %v761, %v757
    %v1170 = vpack.c.b16 %v762, %v758
    %v1171 = vpack.c.b16 %v767, %v763
    %v1172 = vpack.c.b16 %v768, %v764
    %v1173 = vpack.c.b16 %v769, %v765
    %v1174 = vpack.c.b16 %v770, %v766
    %v1175 = vpack.c.b16 %v775, %v771
    %v1176 = vpack.c.b16 %v776, %v772
    %v1177 = vpack.c.b16 %v777, %v773
    %v1178 = vpack.c.b16 %v778, %v774
    %v1179 = vpack.c.b16 %v783, %v779
    %v1180 = vpack.c.b16 %v784, %v780
    %v1181 = vpack.c.b16 %v785, %v781
    %v1182 = vpack.c.b16 %v786, %v782
    %v1183 = vpack.c.b16 %v791, %v787
    %v1184 = vpack.c.b16 %v792, %v788
    %v1185 = vpack.c.b16 %v793, %v789
    %v1186 = vpack.c.b16 %v794, %v790
    %v1187 = vpack.c.b16 %v799, %v795
    %v1188 = vpack.c.b16 %v800, %v796
    %v1189 = vpack.c.b16 %v801, %v797
    %v1190 = vpack.c.b16 %v802, %v798
    %v1191 = vpack.c.b16 %v807, %v803
    %v1192 = vpack.c.b16 %v808, %v804
    %v1193 = vpack.c.b16 %v809, %v805
    %v1194 = vpack.c.b16 %v810, %v806
    %v1195 = vpack.c.b16 %v815, %v811
    %v1196 = vpack.c.b16 %v816, %v812
    %v1197 = vpack.c.b16 %v817, %v813
    %v1198 = vpack.c.b16 %v818, %v814
    %v1199 = vpack.c.b16 %v823, %v819
    %v1200 = vpack.c.b16 %v824, %v820
    %v1201 = vpack.c.b16 %v825, %v821
    %v1202 = vpack.c.b16 %v826, %v822
    %v1203 = vpack.c.b16 %v831, %v827
    %v1204 = vpack.c.b16 %v832, %v828
    %v1205 = vpack.c.b16 %v833, %v829
    %v1206 = vpack.c.b16 %v834, %v830
    %v1207 = vpack.c.b16 %v839, %v835
    %v1208 = vpack.c.b16 %v840, %v836
    %v1209 = vpack.c.b16 %v841, %v837
    %v1210 = vpack.c.b16 %v842, %v838
    %v1211 = vpack.c.b16 %v847, %v843
    %v1212 = vpack.c.b16 %v848, %v844
    %v1213 = vpack.c.b16 %v849, %v845
    %v1214 = vpack.c.b16 %v850, %v846
    %v1215 = vpack.c.b16 %v855, %v851
    %v1216 = vpack.c.b16 %v856, %v852
    %v1217 = vpack.c.b16 %v857, %v853
    %v1218 = vpack.c.b16 %v858, %v854
    %v1219 = vpack.c.b16 %v863, %v859
    %v1220 = vpack.c.b16 %v864, %v860
    %v1221 = vpack.c.b16 %v865, %v861
    %v1222 = vpack.c.b16 %v866, %v862
    %v1223 = vpack.c.b16 %v871, %v867
    %v1224 = vpack.c.b16 %v872, %v868
    %v1225 = vpack.c.b16 %v873, %v869
    %v1226 = vpack.c.b16 %v874, %v870
    %v1227 = vpack.c.b16 %v879, %v875
    %v1228 = vpack.c.b16 %v880, %v876
    %v1229 = vpack.c.b16 %v881, %v877
    %v1230 = vpack.c.b16 %v882, %v878
    %v1231 = vpack.c.b16 %v887, %v883
    %v1232 = vpack.c.b16 %v888, %v884
    %v1233 = vpack.c.b16 %v889, %v885
    %v1234 = vpack.c.b16 %v890, %v886
    %v1235 = vpack.c.b16 %v895, %v891
    %v1236 = vpack.c.b16 %v896, %v892
    %v1237 = vpack.c.b16 %v897, %v893
    %v1238 = vpack.c.b16 %v898, %v894
    %v1239 = vpack.c.b16 %v903, %v899
    %v1240 = vpack.c.b16 %v904, %v900
    %v1241 = vpack.c.b16 %v905, %v901
    %v1242 = vpack.c.b16 %v906, %v902
    %v1243 = vpack.c.b16 %v911, %v907
    %v1244 = vpack.c.b16 %v912, %v908
    %v1245 = vpack.c.b16 %v913, %v909
    %v1246 = vpack.c.b16 %v914, %v910
    %v1247 = vpack.c.b16 %v919, %v915
    %v1248 = vpack.c.b16 %v920, %v916
    %v1249 = vpack.c.b16 %v921, %v917
    %v1250 = vpack.c.b16 %v922, %v918
    %v1251 = vpack.c.b16 %v927, %v923
    %v1252 = vpack.c.b16 %v928, %v924
    %v1253 = vpack.c.b16 %v929, %v925
    %v1254 = vpack.c.b16 %v930, %v926
    %v1255 = vpack.c.b16 %v935, %v931
    %v1256 = vpack.c.b16 %v936, %v932
    %v1257 = vpack.c.b16 %v937, %v933
    %v1258 = vpack.c.b16 %v938, %v934
    %v1259 = vpack.c.b16 %v943, %v939
    %v1260 = vpack.c.b16 %v944, %v940
    %v1261 = vpack.c.b16 %v945, %v941
    %v1262 = vpack.c.b16 %v946, %v942
    %v1263 = vpack.c.b16 %v951, %v947
    %v1264 = vpack.c.b16 %v952, %v948
    %v1265 = vpack.c.b16 %v953, %v949
    %v1266 = vpack.c.b16 %v954, %v950
    %v1267 = vpack.c.b16 %v959, %v955
    %v1268 = vpack.c.b16 %v960, %v956
    %v1269 = vpack.c.b16 %v961, %v957
    %v1270 = vpack.c.b16 %v962, %v958
    %v1271 = vpack.c.b16 %v967, %v963
    %v1272 = vpack.c.b16 %v968, %v964
    %v1273 = vpack.c.b16 %v969, %v965
    %v1274 = vpack.c.b16 %v970, %v966
    %v1275 = vpack.c.b16 %v975, %v971
    %v1276 = vpack.c.b16 %v976, %v972
    %v1277 = vpack.c.b16 %v977, %v973
    %v1278 = vpack.c.b16 %v978, %v974
    %v1279 = vpack.c.b16 %v983, %v979
    %v1280 = vpack.c.b16 %v984, %v980
    %v1281 = vpack.c.b16 %v985, %v981
    %v1282 = vpack.c.b16 %v986, %v982
    %v1283 = vpack.c.b16 %v991, %v987
    %v1284 = vpack.c.b16 %v992, %v988
    %v1285 = vpack.c.b16 %v993, %v989
    %v1286 = vpack.c.b16 %v994, %v990
    %v1287 = vpack.c.b16 %v999, %v995
    %v1288 = vpack.c.b16 %v1000, %v996
    %v1289 = vpack.c.b16 %v1001, %v997
    %v1290 = vpack.c.b16 %v1002, %v998
    %v1291 = vpack.c.b16 %v1007, %v1003
    %v1292 = vpack.c.b16 %v1008, %v1004
    %v1293 = vpack.c.b16 %v1009, %v1005
    %v1294 = vpack.c.b16 %v1010, %v1006
    %v1295 = vpack.c.b16 %v1015, %v1011
    %v1296 = vpack.c.b16 %v1016, %v1012
    %v1297 = vpack.c.b16 %v1017, %v1013
    %v1298 = vpack.c.b16 %v1018, %v1014
    %v1299 = vpack.c.b16 %v1023, %v1019
    %v1300 = vpack.c.b16 %v1024, %v1020
    %v1301 = vpack.c.b16 %v1025, %v1021
    %v1302 = vpack.c.b16 %v1026, %v1022
    %v1303 = vpack.c.b16 %v1031, %v1027
    %v1304 = vpack.c.b16 %v1032, %v1028
    %v1305 = vpack.c.b16 %v1033, %v1029
    %v1306 = vpack.c.b16 %v1034, %v1030
    %v1307 = vpack.c.b16 %v1039, %v1035
    %v1308 = vpack.c.b16 %v1040, %v1036
    %v1309 = vpack.c.b16 %v1041, %v1037
    %v1310 = vpack.c.b16 %v1042, %v1038
    %v1311 = vpack.c.b16 %v1047, %v1043
    %v1312 = vpack.c.b16 %v1048, %v1044
    %v1313 = vpack.c.b16 %v1049, %v1045
    %v1314 = vpack.c.b16 %v1050, %v1046
    %v1315 = vpack.c.b16 %v1055, %v1051
    %v1316 = vpack.c.b16 %v1056, %v1052
    %v1317 = vpack.c.b16 %v1057, %v1053
    %v1318 = vpack.c.b16 %v1058, %v1054
    %v1319 = vpack.c.b16 %v1063, %v1059
    %v1320 = vpack.c.b16 %v1064, %v1060
    %v1321 = vpack.c.b16 %v1065, %v1061
    %v1322 = vpack.c.b16 %v1066, %v1062
    %v1323 = vpack.c.b16 %v1071, %v1067
    %v1324 = vpack.c.b16 %v1072, %v1068
    %v1325 = vpack.c.b16 %v1073, %v1069
    %v1326 = vpack.c.b16 %v1074, %v1070
    %v1327 = vpack.c.b16 %v1079, %v1075
    %v1328 = vpack.c.b16 %v1080, %v1076
    %v1329 = vpack.c.b16 %v1081, %v1077
    %v1330 = vpack.c.b16 %v1082, %v1078
    %v1331 = vpack.c.b16 %v1087, %v1083
    %v1332 = vpack.c.b16 %v1088, %v1084
    %v1333 = vpack.c.b16 %v1089, %v1085
    %v1334 = vpack.c.b16 %v1090, %v1086
    %v1335 = vpack.c.b16 %v1095, %v1091
    %v1336 = vpack.c.b16 %v1096, %v1092
    %v1337 = vpack.c.b16 %v1097, %v1093
    %v1338 = vpack.c.b16 %v1098, %v1094
    %v1339 = vpack.c.b16 %v1103, %v1099
    %v1340 = vpack.c.b16 %v1104, %v1100
    %v1341 = vpack.c.b16 %v1105, %v1101
    %v1342 = vpack.c.b16 %v1106, %v1102
    %v1343 = vpack.c.b16 %v1111, %v1107
    %v1344 = vpack.c.b16 %v1112, %v1108
    %v1345 = vpack.c.b16 %v1113, %v1109
    %v1346 = vpack.c.b16 %v1114, %v1110
    %v1347 = vpack.c.b16 %v1119, %v1115
    %v1348 = vpack.c.b16 %v1120, %v1116
    %v1349 = vpack.c.b16 %v1121, %v1117
    %v1350 = vpack.c.b16 %v1122, %v1118
    %v1351 = vpack.c.b16 %v1127, %v1123
    %v1352 = vpack.c.b16 %v1128, %v1124
    %v1353 = vpack.c.b16 %v1129, %v1125
    %v1354 = vpack.c.b16 %v1130, %v1126
    %1579 = vmatpush.bf16.msra.mxu0 %v1159
    %1580 = vmatpush.bf16.msra.mxu0 %v1155
    %1581 = vmatpush.bf16.msra.mxu0 %v1151
    %1582 = vmatpush.bf16.msra.mxu0 %v1147
    %1583 = vmatpush.bf16.msra.mxu0 %v1143
    %1584 = vmatpush.bf16.msra.mxu0 %v1139
    %1585 = vmatpush.bf16.msra.mxu0 %v1135
    %1586 = vmatpush.bf16.msra.mxu0 %v1131
    %1587 = vmatmul.bf16.gmra.mxu0 %v445
    %v1588 = vpop.f32.mrf.mxu0
    %v1589 = vadd.f32 %v415, %v1588
    %v1590 = vpop.f32.mrf.mxu0
    %v1591 = vadd.f32 %v415, %v1590
    %1592 = vdwg.mxu0
    %1593 = vmatpush.bf16.msra.mxu0 %v1191
    %1594 = vmatpush.bf16.msra.mxu0 %v1187
    %1595 = vmatpush.bf16.msra.mxu0 %v1183
    %1596 = vmatpush.bf16.msra.mxu0 %v1179
    %1597 = vmatpush.bf16.msra.mxu0 %v1175
    %1598 = vmatpush.bf16.msra.mxu0 %v1171
    %1599 = vmatpush.bf16.msra.mxu0 %v1167
    %1600 = vmatpush.bf16.msra.mxu0 %v1163
    %1601 = vmatmul.bf16.gmra.mxu0 %v446
    %v1602 = vpop.f32.mrf.mxu0
    %v1603 = vadd.f32 %v1589, %v1602
    %v1604 = vpop.f32.mrf.mxu0
    %v1605 = vadd.f32 %v1591, %v1604
    %1606 = vdwg.mxu0
    %1607 = vmatpush.bf16.msra.mxu0 %v1223
    %1608 = vmatpush.bf16.msra.mxu0 %v1219
    %1609 = vmatpush.bf16.msra.mxu0 %v1215
    %1610 = vmatpush.bf16.msra.mxu0 %v1211
    %1611 = vmatpush.bf16.msra.mxu0 %v1207
    %1612 = vmatpush.bf16.msra.mxu0 %v1203
    %1613 = vmatpush.bf16.msra.mxu0 %v1199
    %1614 = vmatpush.bf16.msra.mxu0 %v1195
    %1615 = vmatmul.bf16.gmra.mxu0 %v447
    %v1616 = vpop.f32.mrf.mxu0
    %v1617 = vadd.f32 %v1603, %v1616
    %v1618 = vpop.f32.mrf.mxu0
    %v1619 = vadd.f32 %v1605, %v1618
    %1620 = vdwg.mxu0
    %1621 = vmatpush.bf16.msra.mxu0 %v1255
    %1622 = vmatpush.bf16.msra.mxu0 %v1251
    %1623 = vmatpush.bf16.msra.mxu0 %v1247
    %1624 = vmatpush.bf16.msra.mxu0 %v1243
    %1625 = vmatpush.bf16.msra.mxu0 %v1239
    %1626 = vmatpush.bf16.msra.mxu0 %v1235
    %1627 = vmatpush.bf16.msra.mxu0 %v1231
    %1628 = vmatpush.bf16.msra.mxu0 %v1227
    %1629 = vmatmul.bf16.gmra.mxu0 %v448
    %v1630 = vpop.f32.mrf.mxu0
    %v1631 = vadd.f32 %v1617, %v1630
    %v1632 = vpop.f32.mrf.mxu0
    %v1633 = vadd.f32 %v1619, %v1632
    %1634 = vdwg.mxu0
    %1635 = vmatpush.bf16.msra.mxu0 %v1287
    %1636 = vmatpush.bf16.msra.mxu0 %v1283
    %1637 = vmatpush.bf16.msra.mxu0 %v1279
    %1638 = vmatpush.bf16.msra.mxu0 %v1275
    %1639 = vmatpush.bf16.msra.mxu0 %v1271
    %1640 = vmatpush.bf16.msra.mxu0 %v1267
    %1641 = vmatpush.bf16.msra.mxu0 %v1263
    %1642 = vmatpush.bf16.msra.mxu0 %v1259
    %1643 = vmatmul.bf16.gmra.mxu0 %v449
    %v1644 = vpop.f32.mrf.mxu0
    %v1645 = vadd.f32 %v1631, %v1644
    %v1646 = vpop.f32.mrf.mxu0
    %v1647 = vadd.f32 %v1633, %v1646
    %1648 = vdwg.mxu0
    %1649 = vmatpush.bf16.msra.mxu0 %v1319
    %1650 = vmatpush.bf16.msra.mxu0 %v1315
    %1651 = vmatpush.bf16.msra.mxu0 %v1311
    %1652 = vmatpush.bf16.msra.mxu0 %v1307
    %1653 = vmatpush.bf16.msra.mxu0 %v1303
    %1654 = vmatpush.bf16.msra.mxu0 %v1299
    %1655 = vmatpush.bf16.msra.mxu0 %v1295
    %1656 = vmatpush.bf16.msra.mxu0 %v1291
    %1657 = vmatmul.bf16.gmra.mxu0 %v450
    %v1658 = vpop.f32.mrf.mxu0
    %v1659 = vadd.f32 %v1645, %v1658
    %v1660 = vpop.f32.mrf.mxu0
    %v1661 = vadd.f32 %v1647, %v1660
    %1662 = vdwg.mxu0
    %1663 = vmatpush.bf16.msra.mxu0 %v1351
    %1664 = vmatpush.bf16.msra.mxu0 %v1347
    %1665 = vmatpush.bf16.msra.mxu0 %v1343
    %1666 = vmatpush.bf16.msra.mxu0 %v1339
    %1667 = vmatpush.bf16.msra.mxu0 %v1335
    %1668 = vmatpush.bf16.msra.mxu0 %v1331
    %1669 = vmatpush.bf16.msra.mxu0 %v1327
    %1670 = vmatpush.bf16.msra.mxu0 %v1323
    %1671 = vmatmul.bf16.gmra.mxu0 %v451
    %v1672 = vpop.f32.mrf.mxu0
    %v1673 = vadd.f32 %v1659, %v1672
    %v1674 = vpop.f32.mrf.mxu0
    %v1675 = vadd.f32 %v1661, %v1674
    %1676 = vdwg.mxu0
    %1677 = vmatpush.bf16.msra.mxu0 %v1160
    %1678 = vmatpush.bf16.msra.mxu0 %v1156
    %1679 = vmatpush.bf16.msra.mxu0 %v1152
    %1680 = vmatpush.bf16.msra.mxu0 %v1148
    %1681 = vmatpush.bf16.msra.mxu0 %v1144
    %1682 = vmatpush.bf16.msra.mxu0 %v1140
    %1683 = vmatpush.bf16.msra.mxu0 %v1136
    %1684 = vmatpush.bf16.msra.mxu0 %v1132
    %1685 = vmatmul.bf16.gmra.mxu0 %v445
    %v1686 = vpop.f32.mrf.mxu0
    %v1687 = vadd.f32 %v416, %v1686
    %v1688 = vpop.f32.mrf.mxu0
    %v1689 = vadd.f32 %v416, %v1688
    %1690 = vdwg.mxu0
    %1691 = vmatpush.bf16.msra.mxu0 %v1192
    %1692 = vmatpush.bf16.msra.mxu0 %v1188
    %1693 = vmatpush.bf16.msra.mxu0 %v1184
    %1694 = vmatpush.bf16.msra.mxu0 %v1180
    %1695 = vmatpush.bf16.msra.mxu0 %v1176
    %1696 = vmatpush.bf16.msra.mxu0 %v1172
    %1697 = vmatpush.bf16.msra.mxu0 %v1168
    %1698 = vmatpush.bf16.msra.mxu0 %v1164
    %1699 = vmatmul.bf16.gmra.mxu0 %v446
    %v1700 = vpop.f32.mrf.mxu0
    %v1701 = vadd.f32 %v1687, %v1700
    %v1702 = vpop.f32.mrf.mxu0
    %v1703 = vadd.f32 %v1689, %v1702
    %1704 = vdwg.mxu0
    %1705 = vmatpush.bf16.msra.mxu0 %v1224
    %1706 = vmatpush.bf16.msra.mxu0 %v1220
    %1707 = vmatpush.bf16.msra.mxu0 %v1216
    %1708 = vmatpush.bf16.msra.mxu0 %v1212
    %1709 = vmatpush.bf16.msra.mxu0 %v1208
    %1710 = vmatpush.bf16.msra.mxu0 %v1204
    %1711 = vmatpush.bf16.msra.mxu0 %v1200
    %1712 = vmatpush.bf16.msra.mxu0 %v1196
    %1713 = vmatmul.bf16.gmra.mxu0 %v447
    %v1714 = vpop.f32.mrf.mxu0
    %v1715 = vadd.f32 %v1701, %v1714
    %v1716 = vpop.f32.mrf.mxu0
    %v1717 = vadd.f32 %v1703, %v1716
    %1718 = vdwg.mxu0
    %1719 = vmatpush.bf16.msra.mxu0 %v1256
    %1720 = vmatpush.bf16.msra.mxu0 %v1252
    %1721 = vmatpush.bf16.msra.mxu0 %v1248
    %1722 = vmatpush.bf16.msra.mxu0 %v1244
    %1723 = vmatpush.bf16.msra.mxu0 %v1240
    %1724 = vmatpush.bf16.msra.mxu0 %v1236
    %1725 = vmatpush.bf16.msra.mxu0 %v1232
    %1726 = vmatpush.bf16.msra.mxu0 %v1228
    %1727 = vmatmul.bf16.gmra.mxu0 %v448
    %v1728 = vpop.f32.mrf.mxu0
    %v1729 = vadd.f32 %v1715, %v1728
    %v1730 = vpop.f32.mrf.mxu0
    %v1731 = vadd.f32 %v1717, %v1730
    %1732 = vdwg.mxu0
    %1733 = vmatpush.bf16.msra.mxu0 %v1288
    %1734 = vmatpush.bf16.msra.mxu0 %v1284
    %1735 = vmatpush.bf16.msra.mxu0 %v1280
    %1736 = vmatpush.bf16.msra.mxu0 %v1276
    %1737 = vmatpush.bf16.msra.mxu0 %v1272
    %1738 = vmatpush.bf16.msra.mxu0 %v1268
    %1739 = vmatpush.bf16.msra.mxu0 %v1264
    %1740 = vmatpush.bf16.msra.mxu0 %v1260
    %1741 = vmatmul.bf16.gmra.mxu0 %v449
    %v1742 = vpop.f32.mrf.mxu0
    %v1743 = vadd.f32 %v1729, %v1742
    %v1744 = vpop.f32.mrf.mxu0
    %v1745 = vadd.f32 %v1731, %v1744
    %1746 = vdwg.mxu0
    %1747 = vmatpush.bf16.msra.mxu0 %v1320
    %1748 = vmatpush.bf16.msra.mxu0 %v1316
    %1749 = vmatpush.bf16.msra.mxu0 %v1312
    %1750 = vmatpush.bf16.msra.mxu0 %v1308
    %1751 = vmatpush.bf16.msra.mxu0 %v1304
    %1752 = vmatpush.bf16.msra.mxu0 %v1300
    %1753 = vmatpush.bf16.msra.mxu0 %v1296
    %1754 = vmatpush.bf16.msra.mxu0 %v1292
    %1755 = vmatmul.bf16.gmra.mxu0 %v450
    %v1756 = vpop.f32.mrf.mxu0
    %v1757 = vadd.f32 %v1743, %v1756
    %v1758 = vpop.f32.mrf.mxu0
    %v1759 = vadd.f32 %v1745, %v1758
    %1760 = vdwg.mxu0
    %1761 = vmatpush.bf16.msra.mxu0 %v1352
    %1762 = vmatpush.bf16.msra.mxu0 %v1348
    %1763 = vmatpush.bf16.msra.mxu0 %v1344
    %1764 = vmatpush.bf16.msra.mxu0 %v1340
    %1765 = vmatpush.bf16.msra.mxu0 %v1336
    %1766 = vmatpush.bf16.msra.mxu0 %v1332
    %1767 = vmatpush.bf16.msra.mxu0 %v1328
    %1768 = vmatpush.bf16.msra.mxu0 %v1324
    %1769 = vmatmul.bf16.gmra.mxu0 %v451
    %v1770 = vpop.f32.mrf.mxu0
    %v1771 = vadd.f32 %v1757, %v1770
    %v1772 = vpop.f32.mrf.mxu0
    %v1773 = vadd.f32 %v1759, %v1772
    %1774 = vdwg.mxu0
    %1775 = vmatpush.bf16.msra.mxu0 %v1161
    %1776 = vmatpush.bf16.msra.mxu0 %v1157
    %1777 = vmatpush.bf16.msra.mxu0 %v1153
    %1778 = vmatpush.bf16.msra.mxu0 %v1149
    %1779 = vmatpush.bf16.msra.mxu0 %v1145
    %1780 = vmatpush.bf16.msra.mxu0 %v1141
    %1781 = vmatpush.bf16.msra.mxu0 %v1137
    %1782 = vmatpush.bf16.msra.mxu0 %v1133
    %1783 = vmatmul.bf16.gmra.mxu0 %v445
    %v1784 = vpop.f32.mrf.mxu0
    %v1785 = vadd.f32 %v417, %v1784
    %v1786 = vpop.f32.mrf.mxu0
    %v1787 = vadd.f32 %v417, %v1786
    %1788 = vdwg.mxu0
    %1789 = vmatpush.bf16.msra.mxu0 %v1193
    %1790 = vmatpush.bf16.msra.mxu0 %v1189
    %1791 = vmatpush.bf16.msra.mxu0 %v1185
    %1792 = vmatpush.bf16.msra.mxu0 %v1181
    %1793 = vmatpush.bf16.msra.mxu0 %v1177
    %1794 = vmatpush.bf16.msra.mxu0 %v1173
    %1795 = vmatpush.bf16.msra.mxu0 %v1169
    %1796 = vmatpush.bf16.msra.mxu0 %v1165
    %1797 = vmatmul.bf16.gmra.mxu0 %v446
    %v1798 = vpop.f32.mrf.mxu0
    %v1799 = vadd.f32 %v1785, %v1798
    %v1800 = vpop.f32.mrf.mxu0
    %v1801 = vadd.f32 %v1787, %v1800
    %1802 = vdwg.mxu0
    %1803 = vmatpush.bf16.msra.mxu0 %v1225
    %1804 = vmatpush.bf16.msra.mxu0 %v1221
    %1805 = vmatpush.bf16.msra.mxu0 %v1217
    %1806 = vmatpush.bf16.msra.mxu0 %v1213
    %1807 = vmatpush.bf16.msra.mxu0 %v1209
    %1808 = vmatpush.bf16.msra.mxu0 %v1205
    %1809 = vmatpush.bf16.msra.mxu0 %v1201
    %1810 = vmatpush.bf16.msra.mxu0 %v1197
    %1811 = vmatmul.bf16.gmra.mxu0 %v447
    %v1812 = vpop.f32.mrf.mxu0
    %v1813 = vadd.f32 %v1799, %v1812
    %v1814 = vpop.f32.mrf.mxu0
    %v1815 = vadd.f32 %v1801, %v1814
    %1816 = vdwg.mxu0
    %1817 = vmatpush.bf16.msra.mxu0 %v1257
    %1818 = vmatpush.bf16.msra.mxu0 %v1253
    %1819 = vmatpush.bf16.msra.mxu0 %v1249
    %1820 = vmatpush.bf16.msra.mxu0 %v1245
    %1821 = vmatpush.bf16.msra.mxu0 %v1241
    %1822 = vmatpush.bf16.msra.mxu0 %v1237
    %1823 = vmatpush.bf16.msra.mxu0 %v1233
    %1824 = vmatpush.bf16.msra.mxu0 %v1229
    %1825 = vmatmul.bf16.gmra.mxu0 %v448
    %v1826 = vpop.f32.mrf.mxu0
    %v1827 = vadd.f32 %v1813, %v1826
    %v1828 = vpop.f32.mrf.mxu0
    %v1829 = vadd.f32 %v1815, %v1828
    %1830 = vdwg.mxu0
    %1831 = vmatpush.bf16.msra.mxu0 %v1289
    %1832 = vmatpush.bf16.msra.mxu0 %v1285
    %1833 = vmatpush.bf16.msra.mxu0 %v1281
    %1834 = vmatpush.bf16.msra.mxu0 %v1277
    %1835 = vmatpush.bf16.msra.mxu0 %v1273
    %1836 = vmatpush.bf16.msra.mxu0 %v1269
    %1837 = vmatpush.bf16.msra.mxu0 %v1265
    %1838 = vmatpush.bf16.msra.mxu0 %v1261
    %1839 = vmatmul.bf16.gmra.mxu0 %v449
    %v1840 = vpop.f32.mrf.mxu0
    %v1841 = vadd.f32 %v1827, %v1840
    %v1842 = vpop.f32.mrf.mxu0
    %v1843 = vadd.f32 %v1829, %v1842
    %1844 = vdwg.mxu0
    %1845 = vmatpush.bf16.msra.mxu0 %v1321
    %1846 = vmatpush.bf16.msra.mxu0 %v1317
    %1847 = vmatpush.bf16.msra.mxu0 %v1313
    %1848 = vmatpush.bf16.msra.mxu0 %v1309
    %1849 = vmatpush.bf16.msra.mxu0 %v1305
    %1850 = vmatpush.bf16.msra.mxu0 %v1301
    %1851 = vmatpush.bf16.msra.mxu0 %v1297
    %1852 = vmatpush.bf16.msra.mxu0 %v1293
    %1853 = vmatmul.bf16.gmra.mxu0 %v450
    %v1854 = vpop.f32.mrf.mxu0
    %v1855 = vadd.f32 %v1841, %v1854
    %v1856 = vpop.f32.mrf.mxu0
    %v1857 = vadd.f32 %v1843, %v1856
    %1858 = vdwg.mxu0
    %1859 = vmatpush.bf16.msra.mxu0 %v1353
    %1860 = vmatpush.bf16.msra.mxu0 %v1349
    %1861 = vmatpush.bf16.msra.mxu0 %v1345
    %1862 = vmatpush.bf16.msra.mxu0 %v1341
    %1863 = vmatpush.bf16.msra.mxu0 %v1337
    %1864 = vmatpush.bf16.msra.mxu0 %v1333
    %1865 = vmatpush.bf16.msra.mxu0 %v1329
    %1866 = vmatpush.bf16.msra.mxu0 %v1325
    %1867 = vmatmul.bf16.gmra.mxu0 %v451
    %v1868 = vpop.f32.mrf.mxu0
    %v1869 = vadd.f32 %v1855, %v1868
    %v1870 = vpop.f32.mrf.mxu0
    %v1871 = vadd.f32 %v1857, %v1870
    %1872 = vdwg.mxu0
    %1873 = vmatpush.bf16.msra.mxu0 %v1162
    %1874 = vmatpush.bf16.msra.mxu0 %v1158
    %1875 = vmatpush.bf16.msra.mxu0 %v1154
    %1876 = vmatpush.bf16.msra.mxu0 %v1150
    %1877 = vmatpush.bf16.msra.mxu0 %v1146
    %1878 = vmatpush.bf16.msra.mxu0 %v1142
    %1879 = vmatpush.bf16.msra.mxu0 %v1138
    %1880 = vmatpush.bf16.msra.mxu0 %v1134
    %1881 = vmatmul.bf16.gmra.mxu0 %v445
    %v1882 = vpop.f32.mrf.mxu0
    %v1883 = vadd.f32 %v418, %v1882
    %v1884 = vpop.f32.mrf.mxu0
    %v1885 = vadd.f32 %v418, %v1884
    %1886 = vdwg.mxu0
    %1887 = vmatpush.bf16.msra.mxu0 %v1194
    %1888 = vmatpush.bf16.msra.mxu0 %v1190
    %1889 = vmatpush.bf16.msra.mxu0 %v1186
    %1890 = vmatpush.bf16.msra.mxu0 %v1182
    %1891 = vmatpush.bf16.msra.mxu0 %v1178
    %1892 = vmatpush.bf16.msra.mxu0 %v1174
    %1893 = vmatpush.bf16.msra.mxu0 %v1170
    %1894 = vmatpush.bf16.msra.mxu0 %v1166
    %1895 = vmatmul.bf16.gmra.mxu0 %v446
    %v1896 = vpop.f32.mrf.mxu0
    %v1897 = vadd.f32 %v1883, %v1896
    %v1898 = vpop.f32.mrf.mxu0
    %v1899 = vadd.f32 %v1885, %v1898
    %1900 = vdwg.mxu0
    %1901 = vmatpush.bf16.msra.mxu0 %v1226
    %1902 = vmatpush.bf16.msra.mxu0 %v1222
    %1903 = vmatpush.bf16.msra.mxu0 %v1218
    %1904 = vmatpush.bf16.msra.mxu0 %v1214
    %1905 = vmatpush.bf16.msra.mxu0 %v1210
    %1906 = vmatpush.bf16.msra.mxu0 %v1206
    %1907 = vmatpush.bf16.msra.mxu0 %v1202
    %1908 = vmatpush.bf16.msra.mxu0 %v1198
    %1909 = vmatmul.bf16.gmra.mxu0 %v447
    %v1910 = vpop.f32.mrf.mxu0
    %v1911 = vadd.f32 %v1897, %v1910
    %v1912 = vpop.f32.mrf.mxu0
    %v1913 = vadd.f32 %v1899, %v1912
    %1914 = vdwg.mxu0
    %1915 = vmatpush.bf16.msra.mxu0 %v1258
    %1916 = vmatpush.bf16.msra.mxu0 %v1254
    %1917 = vmatpush.bf16.msra.mxu0 %v1250
    %1918 = vmatpush.bf16.msra.mxu0 %v1246
    %1919 = vmatpush.bf16.msra.mxu0 %v1242
    %1920 = vmatpush.bf16.msra.mxu0 %v1238
    %1921 = vmatpush.bf16.msra.mxu0 %v1234
    %1922 = vmatpush.bf16.msra.mxu0 %v1230
    %1923 = vmatmul.bf16.gmra.mxu0 %v448
    %v1924 = vpop.f32.mrf.mxu0
    %v1925 = vadd.f32 %v1911, %v1924
    %v1926 = vpop.f32.mrf.mxu0
    %v1927 = vadd.f32 %v1913, %v1926
    %1928 = vdwg.mxu0
    %1929 = vmatpush.bf16.msra.mxu0 %v1290
    %1930 = vmatpush.bf16.msra.mxu0 %v1286
    %1931 = vmatpush.bf16.msra.mxu0 %v1282
    %1932 = vmatpush.bf16.msra.mxu0 %v1278
    %1933 = vmatpush.bf16.msra.mxu0 %v1274
    %1934 = vmatpush.bf16.msra.mxu0 %v1270
    %1935 = vmatpush.bf16.msra.mxu0 %v1266
    %1936 = vmatpush.bf16.msra.mxu0 %v1262
    %1937 = vmatmul.bf16.gmra.mxu0 %v449
    %v1938 = vpop.f32.mrf.mxu0
    %v1939 = vadd.f32 %v1925, %v1938
    %v1940 = vpop.f32.mrf.mxu0
    %v1941 = vadd.f32 %v1927, %v1940
    %1942 = vdwg.mxu0
    %1943 = vmatpush.bf16.msra.mxu0 %v1322
    %1944 = vmatpush.bf16.msra.mxu0 %v1318
    %1945 = vmatpush.bf16.msra.mxu0 %v1314
    %1946 = vmatpush.bf16.msra.mxu0 %v1310
    %1947 = vmatpush.bf16.msra.mxu0 %v1306
    %1948 = vmatpush.bf16.msra.mxu0 %v1302
    %1949 = vmatpush.bf16.msra.mxu0 %v1298
    %1950 = vmatpush.bf16.msra.mxu0 %v1294
    %1951 = vmatmul.bf16.gmra.mxu0 %v450
    %v1952 = vpop.f32.mrf.mxu0
    %v1953 = vadd.f32 %v1939, %v1952
    %v1954 = vpop.f32.mrf.mxu0
    %v1955 = vadd.f32 %v1941, %v1954
    %1956 = vdwg.mxu0
    %1957 = vmatpush.bf16.msra.mxu0 %v1354
    %1958 = vmatpush.bf16.msra.mxu0 %v1350
    %1959 = vmatpush.bf16.msra.mxu0 %v1346
    %1960 = vmatpush.bf16.msra.mxu0 %v1342
    %1961 = vmatpush.bf16.msra.mxu0 %v1338
    %1962 = vmatpush.bf16.msra.mxu0 %v1334
    %1963 = vmatpush.bf16.msra.mxu0 %v1330
    %1964 = vmatpush.bf16.msra.mxu0 %v1326
    %1965 = vmatmul.bf16.gmra.mxu0 %v451
    %v1966 = vpop.f32.mrf.mxu0
    %v1967 = vadd.f32 %v1953, %v1966
    %v1968 = vpop.f32.mrf.mxu0
    %v1969 = vadd.f32 %v1955, %v1968
    %1970 = vdwg.mxu0
    %v1971 = vmax.f32 %v1673, 0.0
    %v1972 = vmax.f32 %v1771, 0.0
    %v1973 = vmax.f32 %v1869, 0.0
    %v1974 = vmax.f32 %v1967, 0.0
    %v1975 = vmax.f32 %v1675, 0.0
    %v1976 = vmax.f32 %v1773, 0.0
    %v1977 = vmax.f32 %v1871, 0.0
    %v1978 = vmax.f32 %v1969, 0.0
    %v1979 = vpack.c.bf16 %v1975, %v1971
    %v1980 = vpack.c.bf16 %v1976, %v1972
    %v1981 = vpack.c.bf16 %v1977, %v1973
    %v1982 = vpack.c.bf16 %v1978, %v1974
    %v1983 = vld [vmem:[#allocation8] sm:$0xff]
    %v1984 = vld [vmem:[#allocation8 + $0x8] sm:$0xff]
    %v1985 = vld [vmem:[#allocation8 + $0x10] sm:$0xff]
    %v1986 = vld [vmem:[#allocation8 + $0x18] sm:$0xff]
    %v1987 = vld [vmem:[#allocation8 + $0x20] sm:$0xff]
    %v1988 = vld [vmem:[#allocation8 + $0x28] sm:$0xff]
    %v1989 = vld [vmem:[#allocation8 + $0x30] sm:$0xff]
    %v1990 = vld [vmem:[#allocation8 + $0x38] sm:$0xff]
    %v1991 = vld [vmem:[#allocation8 + $0x40] sm:$0xff]
    %v1992 = vld [vmem:[#allocation8 + $0x48] sm:$0xff]
    %v1993 = vld [vmem:[#allocation8 + $0x50] sm:$0xff]
    %v1994 = vld [vmem:[#allocation8 + $0x58] sm:$0xff]
    %v1995 = vld [vmem:[#allocation8 + $0x60] sm:$0xff]
    %v1996 = vld [vmem:[#allocation8 + $0x68] sm:$0xff]
    %v1997 = vld [vmem:[#allocation8 + $0x70] sm:$0xff]
    %v1998 = vld [vmem:[#allocation8 + $0x78] sm:$0xff]
    %v1999 = vld [vmem:[#allocation8 + $0x80] sm:$0xff]
    %v2000 = vld [vmem:[#allocation8 + $0x88] sm:$0xff]
    %v2001 = vld [vmem:[#allocation8 + $0x90] sm:$0xff]
    %v2002 = vld [vmem:[#allocation8 + $0x98] sm:$0xff]
    %v2003 = vld [vmem:[#allocation8 + $0xa0] sm:$0xff]
    %v2004 = vld [vmem:[#allocation8 + $0xa8] sm:$0xff]
    %v2005 = vld [vmem:[#allocation8 + $0xb0] sm:$0xff]
    %v2006 = vld [vmem:[#allocation8 + $0xb8] sm:$0xff]
    %v2007 = vld [vmem:[#allocation8 + $0xc0] sm:$0xff]
    %v2008 = vld [vmem:[#allocation8 + $0xc8] sm:$0xff]
    %v2009 = vld [vmem:[#allocation8 + $0xd0] sm:$0xff]
    %v2010 = vld [vmem:[#allocation8 + $0xd8] sm:$0xff]
    %v2011 = vld [vmem:[#allocation8 + $0xe0] sm:$0xff]
    %v2012 = vld [vmem:[#allocation8 + $0xe8] sm:$0xff]
    %v2013 = vld [vmem:[#allocation8 + $0xf0] sm:$0xff]
    %v2014 = vld [vmem:[#allocation8 + $0xf8] sm:$0xff]
    %v2015 = vld [vmem:[#allocation8 + $0x100] sm:$0xff]
    %v2016 = vld [vmem:[#allocation8 + $0x108] sm:$0xff]
    %v2017 = vld [vmem:[#allocation8 + $0x110] sm:$0xff]
    %v2018 = vld [vmem:[#allocation8 + $0x118] sm:$0xff]
    %v2019 = vld [vmem:[#allocation8 + $0x120] sm:$0xff]
    %v2020 = vld [vmem:[#allocation8 + $0x128] sm:$0xff]
    %v2021 = vld [vmem:[#allocation8 + $0x130] sm:$0xff]
    %v2022 = vld [vmem:[#allocation8 + $0x138] sm:$0xff]
    %v2023 = vld [vmem:[#allocation8 + $0x140] sm:$0xff]
    %v2024 = vld [vmem:[#allocation8 + $0x148] sm:$0xff]
    %v2025 = vld [vmem:[#allocation8 + $0x150] sm:$0xff]
    %v2026 = vld [vmem:[#allocation8 + $0x158] sm:$0xff]
    %v2027 = vld [vmem:[#allocation8 + $0x160] sm:$0xff]
    %v2028 = vld [vmem:[#allocation8 + $0x168] sm:$0xff]
    %v2029 = vld [vmem:[#allocation8 + $0x170] sm:$0xff]
    %v2030 = vld [vmem:[#allocation8 + $0x178] sm:$0xff]
    %v2031 = vld [vmem:[#allocation8 + $0x180] sm:$0xff]
    %v2032 = vld [vmem:[#allocation8 + $0x188] sm:$0xff]
    %v2033 = vld [vmem:[#allocation8 + $0x190] sm:$0xff]
    %v2034 = vld [vmem:[#allocation8 + $0x198] sm:$0xff]
    %v2035 = vld [vmem:[#allocation8 + $0x1a0] sm:$0xff]
    %v2036 = vld [vmem:[#allocation8 + $0x1a8] sm:$0xff]
    %v2037 = vld [vmem:[#allocation8 + $0x1b0] sm:$0xff]
    %v2038 = vld [vmem:[#allocation8 + $0x1b8] sm:$0xff]
    %v2039 = vld [vmem:[#allocation8 + $0x1c0] sm:$0xff]
    %v2040 = vld [vmem:[#allocation8 + $0x1c8] sm:$0xff]
    %v2041 = vld [vmem:[#allocation8 + $0x1d0] sm:$0xff]
    %v2042 = vld [vmem:[#allocation8 + $0x1d8] sm:$0xff]
    %v2043 = vld [vmem:[#allocation8 + $0x1e0] sm:$0xff]
    %v2044 = vld [vmem:[#allocation8 + $0x1e8] sm:$0xff]
    %v2045 = vld [vmem:[#allocation8 + $0x1f0] sm:$0xff]
    %v2046 = vld [vmem:[#allocation8 + $0x1f8] sm:$0xff]
    %v2047 = vld [vmem:[#allocation8 + $0x200] sm:$0xff]
    %v2048 = vld [vmem:[#allocation8 + $0x208] sm:$0xff]
    %v2049 = vld [vmem:[#allocation8 + $0x210] sm:$0xff]
    %v2050 = vld [vmem:[#allocation8 + $0x218] sm:$0xff]
    %v2051 = vld [vmem:[#allocation8 + $0x220] sm:$0xff]
    %v2052 = vld [vmem:[#allocation8 + $0x228] sm:$0xff]
    %v2053 = vld [vmem:[#allocation8 + $0x230] sm:$0xff]
    %v2054 = vld [vmem:[#allocation8 + $0x238] sm:$0xff]
    %v2055 = vld [vmem:[#allocation8 + $0x240] sm:$0xff]
    %v2056 = vld [vmem:[#allocation8 + $0x248] sm:$0xff]
    %v2057 = vld [vmem:[#allocation8 + $0x250] sm:$0xff]
    %v2058 = vld [vmem:[#allocation8 + $0x258] sm:$0xff]
    %v2059 = vld [vmem:[#allocation8 + $0x260] sm:$0xff]
    %v2060 = vld [vmem:[#allocation8 + $0x268] sm:$0xff]
    %v2061 = vld [vmem:[#allocation8 + $0x270] sm:$0xff]
    %v2062 = vld [vmem:[#allocation8 + $0x278] sm:$0xff]
    %v2063 = vld [vmem:[#allocation8 + $0x280] sm:$0xff]
    %v2064 = vld [vmem:[#allocation8 + $0x288] sm:$0xff]
    %v2065 = vld [vmem:[#allocation8 + $0x290] sm:$0xff]
    %v2066 = vld [vmem:[#allocation8 + $0x298] sm:$0xff]
    %v2067 = vld [vmem:[#allocation8 + $0x2a0] sm:$0xff]
    %v2068 = vld [vmem:[#allocation8 + $0x2a8] sm:$0xff]
    %v2069 = vld [vmem:[#allocation8 + $0x2b0] sm:$0xff]
    %v2070 = vld [vmem:[#allocation8 + $0x2b8] sm:$0xff]
    %v2071 = vld [vmem:[#allocation8 + $0x2c0] sm:$0xff]
    %v2072 = vld [vmem:[#allocation8 + $0x2c8] sm:$0xff]
    %v2073 = vld [vmem:[#allocation8 + $0x2d0] sm:$0xff]
    %v2074 = vld [vmem:[#allocation8 + $0x2d8] sm:$0xff]
    %v2075 = vld [vmem:[#allocation8 + $0x2e0] sm:$0xff]
    %v2076 = vld [vmem:[#allocation8 + $0x2e8] sm:$0xff]
    %v2077 = vld [vmem:[#allocation8 + $0x2f0] sm:$0xff]
    %v2078 = vld [vmem:[#allocation8 + $0x2f8] sm:$0xff]
    %v2079 = vld [vmem:[#allocation8 + $0x300] sm:$0xff]
    %v2080 = vld [vmem:[#allocation8 + $0x308] sm:$0xff]
    %v2081 = vld [vmem:[#allocation8 + $0x310] sm:$0xff]
    %v2082 = vld [vmem:[#allocation8 + $0x318] sm:$0xff]
    %v2083 = vld [vmem:[#allocation8 + $0x320] sm:$0xff]
    %v2084 = vld [vmem:[#allocation8 + $0x328] sm:$0xff]
    %v2085 = vld [vmem:[#allocation8 + $0x330] sm:$0xff]
    %v2086 = vld [vmem:[#allocation8 + $0x338] sm:$0xff]
    %v2087 = vld [vmem:[#allocation8 + $0x340] sm:$0xff]
    %v2088 = vld [vmem:[#allocation8 + $0x348] sm:$0xff]
    %v2089 = vld [vmem:[#allocation8 + $0x350] sm:$0xff]
    %v2090 = vld [vmem:[#allocation8 + $0x358] sm:$0xff]
    %v2091 = vld [vmem:[#allocation8 + $0x360] sm:$0xff]
    %v2092 = vld [vmem:[#allocation8 + $0x368] sm:$0xff]
    %v2093 = vld [vmem:[#allocation8 + $0x370] sm:$0xff]
    %v2094 = vld [vmem:[#allocation8 + $0x378] sm:$0xff]
    %v2095 = vld [vmem:[#allocation8 + $0x380] sm:$0xff]
    %v2096 = vld [vmem:[#allocation8 + $0x388] sm:$0xff]
    %v2097 = vld [vmem:[#allocation8 + $0x390] sm:$0xff]
    %v2098 = vld [vmem:[#allocation8 + $0x398] sm:$0xff]
    %v2099 = vld [vmem:[#allocation8 + $0x3a0] sm:$0xff]
    %v2100 = vld [vmem:[#allocation8 + $0x3a8] sm:$0xff]
    %v2101 = vld [vmem:[#allocation8 + $0x3b0] sm:$0xff]
    %v2102 = vld [vmem:[#allocation8 + $0x3b8] sm:$0xff]
    %v2103 = vld [vmem:[#allocation8 + $0x3c0] sm:$0xff]
    %v2104 = vld [vmem:[#allocation8 + $0x3c8] sm:$0xff]
    %v2105 = vld [vmem:[#allocation8 + $0x3d0] sm:$0xff]
    %v2106 = vld [vmem:[#allocation8 + $0x3d8] sm:$0xff]
    %v2107 = vld [vmem:[#allocation8 + $0x3e0] sm:$0xff]
    %v2108 = vld [vmem:[#allocation8 + $0x3e8] sm:$0xff]
    %v2109 = vld [vmem:[#allocation8 + $0x3f0] sm:$0xff]
    %v2110 = vld [vmem:[#allocation8 + $0x3f8] sm:$0xff]
    %v2111 = vld [vmem:[#allocation10] sm:$0xf]
    %v2113 = vperm.slane %v2111, 0
    %v2114 = vperm.slane %v2111, 1
    %v2115 = vperm.slane %v2111, 2
    %v2116 = vperm.slane %v2111, 3
    %v2249 = vunpack.c.l.b16 %v1983
    %v2250 = vunpack.c.h.b16 %v1983
    %v2251 = vunpack.c.l.b16 %v1984
    %v2252 = vunpack.c.h.b16 %v1984
    %v2253 = vunpack.c.l.b16 %v1985
    %v2254 = vunpack.c.h.b16 %v1985
    %v2255 = vunpack.c.l.b16 %v1986
    %v2256 = vunpack.c.h.b16 %v1986
    %v2257 = vunpack.c.l.b16 %v1987
    %v2258 = vunpack.c.h.b16 %v1987
    %v2259 = vunpack.c.l.b16 %v1988
    %v2260 = vunpack.c.h.b16 %v1988
    %v2261 = vunpack.c.l.b16 %v1989
    %v2262 = vunpack.c.h.b16 %v1989
    %v2263 = vunpack.c.l.b16 %v1990
    %v2264 = vunpack.c.h.b16 %v1990
    %v2265 = vunpack.c.l.b16 %v1991
    %v2266 = vunpack.c.h.b16 %v1991
    %v2267 = vunpack.c.l.b16 %v1992
    %v2268 = vunpack.c.h.b16 %v1992
    %v2269 = vunpack.c.l.b16 %v1993
    %v2270 = vunpack.c.h.b16 %v1993
    %v2271 = vunpack.c.l.b16 %v1994
    %v2272 = vunpack.c.h.b16 %v1994
    %v2273 = vunpack.c.l.b16 %v1995
    %v2274 = vunpack.c.h.b16 %v1995
    %v2275 = vunpack.c.l.b16 %v1996
    %v2276 = vunpack.c.h.b16 %v1996
    %v2277 = vunpack.c.l.b16 %v1997
    %v2278 = vunpack.c.h.b16 %v1997
    %v2279 = vunpack.c.l.b16 %v1998
    %v2280 = vunpack.c.h.b16 %v1998
    %v2281 = vunpack.c.l.b16 %v1999
    %v2282 = vunpack.c.h.b16 %v1999
    %v2283 = vunpack.c.l.b16 %v2000
    %v2284 = vunpack.c.h.b16 %v2000
    %v2285 = vunpack.c.l.b16 %v2001
    %v2286 = vunpack.c.h.b16 %v2001
    %v2287 = vunpack.c.l.b16 %v2002
    %v2288 = vunpack.c.h.b16 %v2002
    %v2289 = vunpack.c.l.b16 %v2003
    %v2290 = vunpack.c.h.b16 %v2003
    %v2291 = vunpack.c.l.b16 %v2004
    %v2292 = vunpack.c.h.b16 %v2004
    %v2293 = vunpack.c.l.b16 %v2005
    %v2294 = vunpack.c.h.b16 %v2005
    %v2295 = vunpack.c.l.b16 %v2006
    %v2296 = vunpack.c.h.b16 %v2006
    %v2297 = vunpack.c.l.b16 %v2007
    %v2298 = vunpack.c.h.b16 %v2007
    %v2299 = vunpack.c.l.b16 %v2008
    %v2300 = vunpack.c.h.b16 %v2008
    %v2301 = vunpack.c.l.b16 %v2009
    %v2302 = vunpack.c.h.b16 %v2009
    %v2303 = vunpack.c.l.b16 %v2010
    %v2304 = vunpack.c.h.b16 %v2010
    %v2305 = vunpack.c.l.b16 %v2011
    %v2306 = vunpack.c.h.b16 %v2011
    %v2307 = vunpack.c.l.b16 %v2012
    %v2308 = vunpack.c.h.b16 %v2012
    %v2309 = vunpack.c.l.b16 %v2013
    %v2310 = vunpack.c.h.b16 %v2013
    %v2311 = vunpack.c.l.b16 %v2014
    %v2312 = vunpack.c.h.b16 %v2014
    %v2313 = vunpack.c.l.b16 %v2015
    %v2314 = vunpack.c.h.b16 %v2015
    %v2315 = vunpack.c.l.b16 %v2016
    %v2316 = vunpack.c.h.b16 %v2016
    %v2317 = vunpack.c.l.b16 %v2017
    %v2318 = vunpack.c.h.b16 %v2017
    %v2319 = vunpack.c.l.b16 %v2018
    %v2320 = vunpack.c.h.b16 %v2018
    %v2321 = vunpack.c.l.b16 %v2019
    %v2322 = vunpack.c.h.b16 %v2019
    %v2323 = vunpack.c.l.b16 %v2020
    %v2324 = vunpack.c.h.b16 %v2020
    %v2325 = vunpack.c.l.b16 %v2021
    %v2326 = vunpack.c.h.b16 %v2021
    %v2327 = vunpack.c.l.b16 %v2022
    %v2328 = vunpack.c.h.b16 %v2022
    %v2329 = vunpack.c.l.b16 %v2023
    %v2330 = vunpack.c.h.b16 %v2023
    %v2331 = vunpack.c.l.b16 %v2024
    %v2332 = vunpack.c.h.b16 %v2024
    %v2333 = vunpack.c.l.b16 %v2025
    %v2334 = vunpack.c.h.b16 %v2025
    %v2335 = vunpack.c.l.b16 %v2026
    %v2336 = vunpack.c.h.b16 %v2026
    %v2337 = vunpack.c.l.b16 %v2027
    %v2338 = vunpack.c.h.b16 %v2027
    %v2339 = vunpack.c.l.b16 %v2028
    %v2340 = vunpack.c.h.b16 %v2028
    %v2341 = vunpack.c.l.b16 %v2029
    %v2342 = vunpack.c.h.b16 %v2029
    %v2343 = vunpack.c.l.b16 %v2030
    %v2344 = vunpack.c.h.b16 %v2030
    %v2345 = vunpack.c.l.b16 %v2031
    %v2346 = vunpack.c.h.b16 %v2031
    %v2347 = vunpack.c.l.b16 %v2032
    %v2348 = vunpack.c.h.b16 %v2032
    %v2349 = vunpack.c.l.b16 %v2033
    %v2350 = vunpack.c.h.b16 %v2033
    %v2351 = vunpack.c.l.b16 %v2034
    %v2352 = vunpack.c.h.b16 %v2034
    %v2353 = vunpack.c.l.b16 %v2035
    %v2354 = vunpack.c.h.b16 %v2035
    %v2355 = vunpack.c.l.b16 %v2036
    %v2356 = vunpack.c.h.b16 %v2036
    %v2357 = vunpack.c.l.b16 %v2037
    %v2358 = vunpack.c.h.b16 %v2037
    %v2359 = vunpack.c.l.b16 %v2038
    %v2360 = vunpack.c.h.b16 %v2038
    %v2361 = vunpack.c.l.b16 %v2039
    %v2362 = vunpack.c.h.b16 %v2039
    %v2363 = vunpack.c.l.b16 %v2040
    %v2364 = vunpack.c.h.b16 %v2040
    %v2365 = vunpack.c.l.b16 %v2041
    %v2366 = vunpack.c.h.b16 %v2041
    %v2367 = vunpack.c.l.b16 %v2042
    %v2368 = vunpack.c.h.b16 %v2042
    %v2369 = vunpack.c.l.b16 %v2043
    %v2370 = vunpack.c.h.b16 %v2043
    %v2371 = vunpack.c.l.b16 %v2044
    %v2372 = vunpack.c.h.b16 %v2044
    %v2373 = vunpack.c.l.b16 %v2045
    %v2374 = vunpack.c.h.b16 %v2045
    %v2375 = vunpack.c.l.b16 %v2046
    %v2376 = vunpack.c.h.b16 %v2046
    %v2377 = vunpack.c.l.b16 %v2047
    %v2378 = vunpack.c.h.b16 %v2047
    %v2379 = vunpack.c.l.b16 %v2048
    %v2380 = vunpack.c.h.b16 %v2048
    %v2381 = vunpack.c.l.b16 %v2049
    %v2382 = vunpack.c.h.b16 %v2049
    %v2383 = vunpack.c.l.b16 %v2050
    %v2384 = vunpack.c.h.b16 %v2050
    %v2385 = vunpack.c.l.b16 %v2051
    %v2386 = vunpack.c.h.b16 %v2051
    %v2387 = vunpack.c.l.b16 %v2052
    %v2388 = vunpack.c.h.b16 %v2052
    %v2389 = vunpack.c.l.b16 %v2053
    %v2390 = vunpack.c.h.b16 %v2053
    %v2391 = vunpack.c.l.b16 %v2054
    %v2392 = vunpack.c.h.b16 %v2054
    %v2393 = vunpack.c.l.b16 %v2055
    %v2394 = vunpack.c.h.b16 %v2055
    %v2395 = vunpack.c.l.b16 %v2056
    %v2396 = vunpack.c.h.b16 %v2056
    %v2397 = vunpack.c.l.b16 %v2057
    %v2398 = vunpack.c.h.b16 %v2057
    %v2399 = vunpack.c.l.b16 %v2058
    %v2400 = vunpack.c.h.b16 %v2058
    %v2401 = vunpack.c.l.b16 %v2059
    %v2402 = vunpack.c.h.b16 %v2059
    %v2403 = vunpack.c.l.b16 %v2060
    %v2404 = vunpack.c.h.b16 %v2060
    %v2405 = vunpack.c.l.b16 %v2061
    %v2406 = vunpack.c.h.b16 %v2061
    %v2407 = vunpack.c.l.b16 %v2062
    %v2408 = vunpack.c.h.b16 %v2062
    %v2409 = vunpack.c.l.b16 %v2063
    %v2410 = vunpack.c.h.b16 %v2063
    %v2411 = vunpack.c.l.b16 %v2064
    %v2412 = vunpack.c.h.b16 %v2064
    %v2413 = vunpack.c.l.b16 %v2065
    %v2414 = vunpack.c.h.b16 %v2065
    %v2415 = vunpack.c.l.b16 %v2066
    %v2416 = vunpack.c.h.b16 %v2066
    %v2417 = vunpack.c.l.b16 %v2067
    %v2418 = vunpack.c.h.b16 %v2067
    %v2419 = vunpack.c.l.b16 %v2068
    %v2420 = vunpack.c.h.b16 %v2068
    %v2421 = vunpack.c.l.b16 %v2069
    %v2422 = vunpack.c.h.b16 %v2069
    %v2423 = vunpack.c.l.b16 %v2070
    %v2424 = vunpack.c.h.b16 %v2070
    %v2425 = vunpack.c.l.b16 %v2071
    %v2426 = vunpack.c.h.b16 %v2071
    %v2427 = vunpack.c.l.b16 %v2072
    %v2428 = vunpack.c.h.b16 %v2072
    %v2429 = vunpack.c.l.b16 %v2073
    %v2430 = vunpack.c.h.b16 %v2073
    %v2431 = vunpack.c.l.b16 %v2074
    %v2432 = vunpack.c.h.b16 %v2074
    %v2433 = vunpack.c.l.b16 %v2075
    %v2434 = vunpack.c.h.b16 %v2075
    %v2435 = vunpack.c.l.b16 %v2076
    %v2436 = vunpack.c.h.b16 %v2076
    %v2437 = vunpack.c.l.b16 %v2077
    %v2438 = vunpack.c.h.b16 %v2077
    %v2439 = vunpack.c.l.b16 %v2078
    %v2440 = vunpack.c.h.b16 %v2078
    %v2441 = vunpack.c.l.b16 %v2079
    %v2442 = vunpack.c.h.b16 %v2079
    %v2443 = vunpack.c.l.b16 %v2080
    %v2444 = vunpack.c.h.b16 %v2080
    %v2445 = vunpack.c.l.b16 %v2081
    %v2446 = vunpack.c.h.b16 %v2081
    %v2447 = vunpack.c.l.b16 %v2082
    %v2448 = vunpack.c.h.b16 %v2082
    %v2449 = vunpack.c.l.b16 %v2083
    %v2450 = vunpack.c.h.b16 %v2083
    %v2451 = vunpack.c.l.b16 %v2084
    %v2452 = vunpack.c.h.b16 %v2084
    %v2453 = vunpack.c.l.b16 %v2085
    %v2454 = vunpack.c.h.b16 %v2085
    %v2455 = vunpack.c.l.b16 %v2086
    %v2456 = vunpack.c.h.b16 %v2086
    %v2457 = vunpack.c.l.b16 %v2087
    %v2458 = vunpack.c.h.b16 %v2087
    %v2459 = vunpack.c.l.b16 %v2088
    %v2460 = vunpack.c.h.b16 %v2088
    %v2461 = vunpack.c.l.b16 %v2089
    %v2462 = vunpack.c.h.b16 %v2089
    %v2463 = vunpack.c.l.b16 %v2090
    %v2464 = vunpack.c.h.b16 %v2090
    %v2465 = vunpack.c.l.b16 %v2091
    %v2466 = vunpack.c.h.b16 %v2091
    %v2467 = vunpack.c.l.b16 %v2092
    %v2468 = vunpack.c.h.b16 %v2092
    %v2469 = vunpack.c.l.b16 %v2093
    %v2470 = vunpack.c.h.b16 %v2093
    %v2471 = vunpack.c.l.b16 %v2094
    %v2472 = vunpack.c.h.b16 %v2094
    %v2473 = vunpack.c.l.b16 %v2095
    %v2474 = vunpack.c.h.b16 %v2095
    %v2475 = vunpack.c.l.b16 %v2096
    %v2476 = vunpack.c.h.b16 %v2096
    %v2477 = vunpack.c.l.b16 %v2097
    %v2478 = vunpack.c.h.b16 %v2097
    %v2479 = vunpack.c.l.b16 %v2098
    %v2480 = vunpack.c.h.b16 %v2098
    %v2481 = vunpack.c.l.b16 %v2099
    %v2482 = vunpack.c.h.b16 %v2099
    %v2483 = vunpack.c.l.b16 %v2100
    %v2484 = vunpack.c.h.b16 %v2100
    %v2485 = vunpack.c.l.b16 %v2101
    %v2486 = vunpack.c.h.b16 %v2101
    %v2487 = vunpack.c.l.b16 %v2102
    %v2488 = vunpack.c.h.b16 %v2102
    %v2489 = vunpack.c.l.b16 %v2103
    %v2490 = vunpack.c.h.b16 %v2103
    %v2491 = vunpack.c.l.b16 %v2104
    %v2492 = vunpack.c.h.b16 %v2104
    %v2493 = vunpack.c.l.b16 %v2105
    %v2494 = vunpack.c.h.b16 %v2105
    %v2495 = vunpack.c.l.b16 %v2106
    %v2496 = vunpack.c.h.b16 %v2106
    %v2497 = vunpack.c.l.b16 %v2107
    %v2498 = vunpack.c.h.b16 %v2107
    %v2499 = vunpack.c.l.b16 %v2108
    %v2500 = vunpack.c.h.b16 %v2108
    %v2501 = vunpack.c.l.b16 %v2109
    %v2502 = vunpack.c.h.b16 %v2109
    %v2503 = vunpack.c.l.b16 %v2110
    %v2504 = vunpack.c.h.b16 %v2110
    %v2505 = vpack.c.b16 %v2253, %v2249
    %v2506 = vpack.c.b16 %v2254, %v2250
    %v2507 = vpack.c.b16 %v2255, %v2251
    %v2508 = vpack.c.b16 %v2256, %v2252
    %v2509 = vpack.c.b16 %v2261, %v2257
    %v2510 = vpack.c.b16 %v2262, %v2258
    %v2511 = vpack.c.b16 %v2263, %v2259
    %v2512 = vpack.c.b16 %v2264, %v2260
    %v2513 = vpack.c.b16 %v2269, %v2265
    %v2514 = vpack.c.b16 %v2270, %v2266
    %v2515 = vpack.c.b16 %v2271, %v2267
    %v2516 = vpack.c.b16 %v2272, %v2268
    %v2517 = vpack.c.b16 %v2277, %v2273
    %v2518 = vpack.c.b16 %v2278, %v2274
    %v2519 = vpack.c.b16 %v2279, %v2275
    %v2520 = vpack.c.b16 %v2280, %v2276
    %v2521 = vpack.c.b16 %v2285, %v2281
    %v2522 = vpack.c.b16 %v2286, %v2282
    %v2523 = vpack.c.b16 %v2287, %v2283
    %v2524 = vpack.c.b16 %v2288, %v2284
    %v2525 = vpack.c.b16 %v2293, %v2289
    %v2526 = vpack.c.b16 %v2294, %v2290
    %v2527 = vpack.c.b16 %v2295, %v2291
    %v2528 = vpack.c.b16 %v2296, %v2292
    %v2529 = vpack.c.b16 %v2301, %v2297
    %v2530 = vpack.c.b16 %v2302, %v2298
    %v2531 = vpack.c.b16 %v2303, %v2299
    %v2532 = vpack.c.b16 %v2304, %v2300
    %v2533 = vpack.c.b16 %v2309, %v2305
    %v2534 = vpack.c.b16 %v2310, %v2306
    %v2535 = vpack.c.b16 %v2311, %v2307
    %v2536 = vpack.c.b16 %v2312, %v2308
    %v2537 = vpack.c.b16 %v2317, %v2313
    %v2538 = vpack.c.b16 %v2318, %v2314
    %v2539 = vpack.c.b16 %v2319, %v2315
    %v2540 = vpack.c.b16 %v2320, %v2316
    %v2541 = vpack.c.b16 %v2325, %v2321
    %v2542 = vpack.c.b16 %v2326, %v2322
    %v2543 = vpack.c.b16 %v2327, %v2323
    %v2544 = vpack.c.b16 %v2328, %v2324
    %v2545 = vpack.c.b16 %v2333, %v2329
    %v2546 = vpack.c.b16 %v2334, %v2330
    %v2547 = vpack.c.b16 %v2335, %v2331
    %v2548 = vpack.c.b16 %v2336, %v2332
    %v2549 = vpack.c.b16 %v2341, %v2337
    %v2550 = vpack.c.b16 %v2342, %v2338
    %v2551 = vpack.c.b16 %v2343, %v2339
    %v2552 = vpack.c.b16 %v2344, %v2340
    %v2553 = vpack.c.b16 %v2349, %v2345
    %v2554 = vpack.c.b16 %v2350, %v2346
    %v2555 = vpack.c.b16 %v2351, %v2347
    %v2556 = vpack.c.b16 %v2352, %v2348
    %v2557 = vpack.c.b16 %v2357, %v2353
    %v2558 = vpack.c.b16 %v2358, %v2354
    %v2559 = vpack.c.b16 %v2359, %v2355
    %v2560 = vpack.c.b16 %v2360, %v2356
    %v2561 = vpack.c.b16 %v2365, %v2361
    %v2562 = vpack.c.b16 %v2366, %v2362
    %v2563 = vpack.c.b16 %v2367, %v2363
    %v2564 = vpack.c.b16 %v2368, %v2364
    %v2565 = vpack.c.b16 %v2373, %v2369
    %v2566 = vpack.c.b16 %v2374, %v2370
    %v2567 = vpack.c.b16 %v2375, %v2371
    %v2568 = vpack.c.b16 %v2376, %v2372
    %v2569 = vpack.c.b16 %v2381, %v2377
    %v2570 = vpack.c.b16 %v2382, %v2378
    %v2571 = vpack.c.b16 %v2383, %v2379
    %v2572 = vpack.c.b16 %v2384, %v2380
    %v2573 = vpack.c.b16 %v2389, %v2385
    %v2574 = vpack.c.b16 %v2390, %v2386
    %v2575 = vpack.c.b16 %v2391, %v2387
    %v2576 = vpack.c.b16 %v2392, %v2388
    %v2577 = vpack.c.b16 %v2397, %v2393
    %v2578 = vpack.c.b16 %v2398, %v2394
    %v2579 = vpack.c.b16 %v2399, %v2395
    %v2580 = vpack.c.b16 %v2400, %v2396
    %v2581 = vpack.c.b16 %v2405, %v2401
    %v2582 = vpack.c.b16 %v2406, %v2402
    %v2583 = vpack.c.b16 %v2407, %v2403
    %v2584 = vpack.c.b16 %v2408, %v2404
    %v2585 = vpack.c.b16 %v2413, %v2409
    %v2586 = vpack.c.b16 %v2414, %v2410
    %v2587 = vpack.c.b16 %v2415, %v2411
    %v2588 = vpack.c.b16 %v2416, %v2412
    %v2589 = vpack.c.b16 %v2421, %v2417
    %v2590 = vpack.c.b16 %v2422, %v2418
    %v2591 = vpack.c.b16 %v2423, %v2419
    %v2592 = vpack.c.b16 %v2424, %v2420
    %v2593 = vpack.c.b16 %v2429, %v2425
    %v2594 = vpack.c.b16 %v2430, %v2426
    %v2595 = vpack.c.b16 %v2431, %v2427
    %v2596 = vpack.c.b16 %v2432, %v2428
    %v2597 = vpack.c.b16 %v2437, %v2433
    %v2598 = vpack.c.b16 %v2438, %v2434
    %v2599 = vpack.c.b16 %v2439, %v2435
    %v2600 = vpack.c.b16 %v2440, %v2436
    %v2601 = vpack.c.b16 %v2445, %v2441
    %v2602 = vpack.c.b16 %v2446, %v2442
    %v2603 = vpack.c.b16 %v2447, %v2443
    %v2604 = vpack.c.b16 %v2448, %v2444
    %v2605 = vpack.c.b16 %v2453, %v2449
    %v2606 = vpack.c.b16 %v2454, %v2450
    %v2607 = vpack.c.b16 %v2455, %v2451
    %v2608 = vpack.c.b16 %v2456, %v2452
    %v2609 = vpack.c.b16 %v2461, %v2457
    %v2610 = vpack.c.b16 %v2462, %v2458
    %v2611 = vpack.c.b16 %v2463, %v2459
    %v2612 = vpack.c.b16 %v2464, %v2460
    %v2613 = vpack.c.b16 %v2469, %v2465
    %v2614 = vpack.c.b16 %v2470, %v2466
    %v2615 = vpack.c.b16 %v2471, %v2467
    %v2616 = vpack.c.b16 %v2472, %v2468
    %v2617 = vpack.c.b16 %v2477, %v2473
    %v2618 = vpack.c.b16 %v2478, %v2474
    %v2619 = vpack.c.b16 %v2479, %v2475
    %v2620 = vpack.c.b16 %v2480, %v2476
    %v2621 = vpack.c.b16 %v2485, %v2481
    %v2622 = vpack.c.b16 %v2486, %v2482
    %v2623 = vpack.c.b16 %v2487, %v2483
    %v2624 = vpack.c.b16 %v2488, %v2484
    %v2625 = vpack.c.b16 %v2493, %v2489
    %v2626 = vpack.c.b16 %v2494, %v2490
    %v2627 = vpack.c.b16 %v2495, %v2491
    %v2628 = vpack.c.b16 %v2496, %v2492
    %v2629 = vpack.c.b16 %v2501, %v2497
    %v2630 = vpack.c.b16 %v2502, %v2498
    %v2631 = vpack.c.b16 %v2503, %v2499
    %v2632 = vpack.c.b16 %v2504, %v2500
    %2761 = vmatpush.bf16.msra.mxu0 %v2533
    %2762 = vmatpush.bf16.msra.mxu0 %v2529
    %2763 = vmatpush.bf16.msra.mxu0 %v2525
    %2764 = vmatpush.bf16.msra.mxu0 %v2521
    %2765 = vmatpush.bf16.msra.mxu0 %v2517
    %2766 = vmatpush.bf16.msra.mxu0 %v2513
    %2767 = vmatpush.bf16.msra.mxu0 %v2509
    %2768 = vmatpush.bf16.msra.mxu0 %v2505
    %2769 = vmatmul.bf16.gmra.mxu0 %v1979
    %v2770 = vpop.f32.mrf.mxu0
    %v2771 = vadd.f32 %v2113, %v2770
    %v2772 = vpop.f32.mrf.mxu0
    %v2773 = vadd.f32 %v2113, %v2772
    %2774 = vdwg.mxu0
    %2775 = vmatpush.bf16.msra.mxu0 %v2565
    %2776 = vmatpush.bf16.msra.mxu0 %v2561
    %2777 = vmatpush.bf16.msra.mxu0 %v2557
    %2778 = vmatpush.bf16.msra.mxu0 %v2553
    %2779 = vmatpush.bf16.msra.mxu0 %v2549
    %2780 = vmatpush.bf16.msra.mxu0 %v2545
    %2781 = vmatpush.bf16.msra.mxu0 %v2541
    %2782 = vmatpush.bf16.msra.mxu0 %v2537
    %2783 = vmatmul.bf16.gmra.mxu0 %v1980
    %v2784 = vpop.f32.mrf.mxu0
    %v2785 = vadd.f32 %v2771, %v2784
    %v2786 = vpop.f32.mrf.mxu0
    %v2787 = vadd.f32 %v2773, %v2786
    %2788 = vdwg.mxu0
    %2789 = vmatpush.bf16.msra.mxu0 %v2597
    %2790 = vmatpush.bf16.msra.mxu0 %v2593
    %2791 = vmatpush.bf16.msra.mxu0 %v2589
    %2792 = vmatpush.bf16.msra.mxu0 %v2585
    %2793 = vmatpush.bf16.msra.mxu0 %v2581
    %2794 = vmatpush.bf16.msra.mxu0 %v2577
    %2795 = vmatpush.bf16.msra.mxu0 %v2573
    %2796 = vmatpush.bf16.msra.mxu0 %v2569
    %2797 = vmatmul.bf16.gmra.mxu0 %v1981
    %v2798 = vpop.f32.mrf.mxu0
    %v2799 = vadd.f32 %v2785, %v2798
    %v2800 = vpop.f32.mrf.mxu0
    %v2801 = vadd.f32 %v2787, %v2800
    %2802 = vdwg.mxu0
    %2803 = vmatpush.bf16.msra.mxu0 %v2629
    %2804 = vmatpush.bf16.msra.mxu0 %v2625
    %2805 = vmatpush.bf16.msra.mxu0 %v2621
    %2806 = vmatpush.bf16.msra.mxu0 %v2617
    %2807 = vmatpush.bf16.msra.mxu0 %v2613
    %2808 = vmatpush.bf16.msra.mxu0 %v2609
    %2809 = vmatpush.bf16.msra.mxu0 %v2605
    %2810 = vmatpush.bf16.msra.mxu0 %v2601
    %2811 = vmatmul.bf16.gmra.mxu0 %v1982
    %v2812 = vpop.f32.mrf.mxu0
    %v2813 = vadd.f32 %v2799, %v2812
    %v2814 = vpop.f32.mrf.mxu0
    %v2815 = vadd.f32 %v2801, %v2814
    %2816 = vdwg.mxu0
    %2817 = vmatpush.bf16.msra.mxu0 %v2534
    %2818 = vmatpush.bf16.msra.mxu0 %v2530
    %2819 = vmatpush.bf16.msra.mxu0 %v2526
    %2820 = vmatpush.bf16.msra.mxu0 %v2522
    %2821 = vmatpush.bf16.msra.mxu0 %v2518
    %2822 = vmatpush.bf16.msra.mxu0 %v2514
    %2823 = vmatpush.bf16.msra.mxu0 %v2510
    %2824 = vmatpush.bf16.msra.mxu0 %v2506
    %2825 = vmatmul.bf16.gmra.mxu0 %v1979
    %v2826 = vpop.f32.mrf.mxu0
    %v2827 = vadd.f32 %v2114, %v2826
    %v2828 = vpop.f32.mrf.mxu0
    %v2829 = vadd.f32 %v2114, %v2828
    %2830 = vdwg.mxu0
    %2831 = vmatpush.bf16.msra.mxu0 %v2566
    %2832 = vmatpush.bf16.msra.mxu0 %v2562
    %2833 = vmatpush.bf16.msra.mxu0 %v2558
    %2834 = vmatpush.bf16.msra.mxu0 %v2554
    %2835 = vmatpush.bf16.msra.mxu0 %v2550
    %2836 = vmatpush.bf16.msra.mxu0 %v2546
    %2837 = vmatpush.bf16.msra.mxu0 %v2542
    %2838 = vmatpush.bf16.msra.mxu0 %v2538
    %2839 = vmatmul.bf16.gmra.mxu0 %v1980
    %v2840 = vpop.f32.mrf.mxu0
    %v2841 = vadd.f32 %v2827, %v2840
    %v2842 = vpop.f32.mrf.mxu0
    %v2843 = vadd.f32 %v2829, %v2842
    %2844 = vdwg.mxu0
    %2845 = vmatpush.bf16.msra.mxu0 %v2598
    %2846 = vmatpush.bf16.msra.mxu0 %v2594
    %2847 = vmatpush.bf16.msra.mxu0 %v2590
    %2848 = vmatpush.bf16.msra.mxu0 %v2586
    %2849 = vmatpush.bf16.msra.mxu0 %v2582
    %2850 = vmatpush.bf16.msra.mxu0 %v2578
    %2851 = vmatpush.bf16.msra.mxu0 %v2574
    %2852 = vmatpush.bf16.msra.mxu0 %v2570
    %2853 = vmatmul.bf16.gmra.mxu0 %v1981
    %v2854 = vpop.f32.mrf.mxu0
    %v2855 = vadd.f32 %v2841, %v2854
    %v2856 = vpop.f32.mrf.mxu0
    %v2857 = vadd.f32 %v2843, %v2856
    %2858 = vdwg.mxu0
    %2859 = vmatpush.bf16.msra.mxu0 %v2630
    %2860 = vmatpush.bf16.msra.mxu0 %v2626
    %2861 = vmatpush.bf16.msra.mxu0 %v2622
    %2862 = vmatpush.bf16.msra.mxu0 %v2618
    %2863 = vmatpush.bf16.msra.mxu0 %v2614
    %2864 = vmatpush.bf16.msra.mxu0 %v2610
    %2865 = vmatpush.bf16.msra.mxu0 %v2606
    %2866 = vmatpush.bf16.msra.mxu0 %v2602
    %2867 = vmatmul.bf16.gmra.mxu0 %v1982
    %v2868 = vpop.f32.mrf.mxu0
    %v2869 = vadd.f32 %v2855, %v2868
    %v2870 = vpop.f32.mrf.mxu0
    %v2871 = vadd.f32 %v2857, %v2870
    %2872 = vdwg.mxu0
    %2873 = vmatpush.bf16.msra.mxu0 %v2535
    %2874 = vmatpush.bf16.msra.mxu0 %v2531
    %2875 = vmatpush.bf16.msra.mxu0 %v2527
    %2876 = vmatpush.bf16.msra.mxu0 %v2523
    %2877 = vmatpush.bf16.msra.mxu0 %v2519
    %2878 = vmatpush.bf16.msra.mxu0 %v2515
    %2879 = vmatpush.bf16.msra.mxu0 %v2511
    %2880 = vmatpush.bf16.msra.mxu0 %v2507
    %2881 = vmatmul.bf16.gmra.mxu0 %v1979
    %v2882 = vpop.f32.mrf.mxu0
    %v2883 = vadd.f32 %v2115, %v2882
    %v2884 = vpop.f32.mrf.mxu0
    %v2885 = vadd.f32 %v2115, %v2884
    %2886 = vdwg.mxu0
    %2887 = vmatpush.bf16.msra.mxu0 %v2567
    %2888 = vmatpush.bf16.msra.mxu0 %v2563
    %2889 = vmatpush.bf16.msra.mxu0 %v2559
    %2890 = vmatpush.bf16.msra.mxu0 %v2555
    %2891 = vmatpush.bf16.msra.mxu0 %v2551
    %2892 = vmatpush.bf16.msra.mxu0 %v2547
    %2893 = vmatpush.bf16.msra.mxu0 %v2543
    %2894 = vmatpush.bf16.msra.mxu0 %v2539
    %2895 = vmatmul.bf16.gmra.mxu0 %v1980
    %v2896 = vpop.f32.mrf.mxu0
    %v2897 = vadd.f32 %v2883, %v2896
    %v2898 = vpop.f32.mrf.mxu0
    %v2899 = vadd.f32 %v2885, %v2898
    %2900 = vdwg.mxu0
    %2901 = vmatpush.bf16.msra.mxu0 %v2599
    %2902 = vmatpush.bf16.msra.mxu0 %v2595
    %2903 = vmatpush.bf16.msra.mxu0 %v2591
    %2904 = vmatpush.bf16.msra.mxu0 %v2587
    %2905 = vmatpush.bf16.msra.mxu0 %v2583
    %2906 = vmatpush.bf16.msra.mxu0 %v2579
    %2907 = vmatpush.bf16.msra.mxu0 %v2575
    %2908 = vmatpush.bf16.msra.mxu0 %v2571
    %2909 = vmatmul.bf16.gmra.mxu0 %v1981
    %v2910 = vpop.f32.mrf.mxu0
    %v2911 = vadd.f32 %v2897, %v2910
    %v2912 = vpop.f32.mrf.mxu0
    %v2913 = vadd.f32 %v2899, %v2912
    %2914 = vdwg.mxu0
    %2915 = vmatpush.bf16.msra.mxu0 %v2631
    %2916 = vmatpush.bf16.msra.mxu0 %v2627
    %2917 = vmatpush.bf16.msra.mxu0 %v2623
    %2918 = vmatpush.bf16.msra.mxu0 %v2619
    %2919 = vmatpush.bf16.msra.mxu0 %v2615
    %2920 = vmatpush.bf16.msra.mxu0 %v2611
    %2921 = vmatpush.bf16.msra.mxu0 %v2607
    %2922 = vmatpush.bf16.msra.mxu0 %v2603
    %2923 = vmatmul.bf16.gmra.mxu0 %v1982
    %v2924 = vpop.f32.mrf.mxu0
    %v2925 = vadd.f32 %v2911, %v2924
    %v2926 = vpop.f32.mrf.mxu0
    %v2927 = vadd.f32 %v2913, %v2926
    %2928 = vdwg.mxu0
    %2929 = vmatpush.bf16.msra.mxu0 %v2536
    %2930 = vmatpush.bf16.msra.mxu0 %v2532
    %2931 = vmatpush.bf16.msra.mxu0 %v2528
    %2932 = vmatpush.bf16.msra.mxu0 %v2524
    %2933 = vmatpush.bf16.msra.mxu0 %v2520
    %2934 = vmatpush.bf16.msra.mxu0 %v2516
    %2935 = vmatpush.bf16.msra.mxu0 %v2512
    %2936 = vmatpush.bf16.msra.mxu0 %v2508
    %2937 = vmatmul.bf16.gmra.mxu0 %v1979
    %v2938 = vpop.f32.mrf.mxu0
    %v2939 = vadd.f32 %v2116, %v2938
    %v2940 = vpop.f32.mrf.mxu0
    %v2941 = vadd.f32 %v2116, %v2940
    %2942 = vdwg.mxu0
    %2943 = vmatpush.bf16.msra.mxu0 %v2568
    %2944 = vmatpush.bf16.msra.mxu0 %v2564
    %2945 = vmatpush.bf16.msra.mxu0 %v2560
    %2946 = vmatpush.bf16.msra.mxu0 %v2556
    %2947 = vmatpush.bf16.msra.mxu0 %v2552
    %2948 = vmatpush.bf16.msra.mxu0 %v2548
    %2949 = vmatpush.bf16.msra.mxu0 %v2544
    %2950 = vmatpush.bf16.msra.mxu0 %v2540
    %2951 = vmatmul.bf16.gmra.mxu0 %v1980
    %v2952 = vpop.f32.mrf.mxu0
    %v2953 = vadd.f32 %v2939, %v2952
    %v2954 = vpop.f32.mrf.mxu0
    %v2955 = vadd.f32 %v2941, %v2954
    %2956 = vdwg.mxu0
    %2957 = vmatpush.bf16.msra.mxu0 %v2600
    %2958 = vmatpush.bf16.msra.mxu0 %v2596
    %2959 = vmatpush.bf16.msra.mxu0 %v2592
    %2960 = vmatpush.bf16.msra.mxu0 %v2588
    %2961 = vmatpush.bf16.msra.mxu0 %v2584
    %2962 = vmatpush.bf16.msra.mxu0 %v2580
    %2963 = vmatpush.bf16.msra.mxu0 %v2576
    %2964 = vmatpush.bf16.msra.mxu0 %v2572
    %2965 = vmatmul.bf16.gmra.mxu0 %v1981
    %v2966 = vpop.f32.mrf.mxu0
    %v2967 = vadd.f32 %v2953, %v2966
    %v2968 = vpop.f32.mrf.mxu0
    %v2969 = vadd.f32 %v2955, %v2968
    %2970 = vdwg.mxu0
    %2971 = vmatpush.bf16.msra.mxu0 %v2632
    %2972 = vmatpush.bf16.msra.mxu0 %v2628
    %2973 = vmatpush.bf16.msra.mxu0 %v2624
    %2974 = vmatpush.bf16.msra.mxu0 %v2620
    %2975 = vmatpush.bf16.msra.mxu0 %v2616
    %2976 = vmatpush.bf16.msra.mxu0 %v2612
    %2977 = vmatpush.bf16.msra.mxu0 %v2608
    %2978 = vmatpush.bf16.msra.mxu0 %v2604
    %2979 = vmatmul.bf16.gmra.mxu0 %v1982
    %v2980 = vpop.f32.mrf.mxu0
    %v2981 = vadd.f32 %v2967, %v2980
    %v2982 = vpop.f32.mrf.mxu0
    %v2983 = vadd.f32 %v2969, %v2982
    %2984 = vdwg.mxu0
    %v2985 = vmax.f32 %v2813, 0.0
    %v2986 = vmax.f32 %v2869, 0.0
    %v2987 = vmax.f32 %v2925, 0.0
    %v2988 = vmax.f32 %v2981, 0.0
    %v2989 = vmax.f32 %v2815, 0.0
    %v2990 = vmax.f32 %v2871, 0.0
    %v2991 = vmax.f32 %v2927, 0.0
    %v2992 = vmax.f32 %v2983, 0.0
    %v2993 = vpack.c.bf16 %v2989, %v2985
    %v2994 = vpack.c.bf16 %v2990, %v2986
    %v2995 = vpack.c.bf16 %v2991, %v2987
    %v2996 = vpack.c.bf16 %v2992, %v2988
    %v2997 = vld [vmem:[#allocation11] sm:$0xf]
    %v2998 = vld [vmem:[#allocation11 + $0x4] sm:$0xf]
    %v2999 = vld [vmem:[#allocation11 + $0x8] sm:$0xf]
    %v3000 = vld [vmem:[#allocation11 + $0xc] sm:$0xf]
    %v3001 = vld [vmem:[#allocation11 + $0x10] sm:$0xf]
    %v3002 = vld [vmem:[#allocation11 + $0x14] sm:$0xf]
    %v3003 = vld [vmem:[#allocation11 + $0x18] sm:$0xf]
    %v3004 = vld [vmem:[#allocation11 + $0x1c] sm:$0xf]
    %v3005 = vld [vmem:[#allocation11 + $0x20] sm:$0xf]
    %v3006 = vld [vmem:[#allocation11 + $0x24] sm:$0xf]
    %v3007 = vld [vmem:[#allocation11 + $0x28] sm:$0xf]
    %v3008 = vld [vmem:[#allocation11 + $0x2c] sm:$0xf]
    %v3009 = vld [vmem:[#allocation11 + $0x30] sm:$0xf]
    %v3010 = vld [vmem:[#allocation11 + $0x34] sm:$0xf]
    %v3011 = vld [vmem:[#allocation11 + $0x38] sm:$0xf]
    %v3012 = vld [vmem:[#allocation11 + $0x3c] sm:$0xf]
    %v3013 = vld [vmem:[#allocation11 + $0x40] sm:$0xf]
    %v3014 = vld [vmem:[#allocation11 + $0x44] sm:$0xf]
    %v3015 = vld [vmem:[#allocation11 + $0x48] sm:$0xf]
    %v3016 = vld [vmem:[#allocation11 + $0x4c] sm:$0xf]
    %v3017 = vld [vmem:[#allocation11 + $0x50] sm:$0xf]
    %v3018 = vld [vmem:[#allocation11 + $0x54] sm:$0xf]
    %v3019 = vld [vmem:[#allocation11 + $0x58] sm:$0xf]
    %v3020 = vld [vmem:[#allocation11 + $0x5c] sm:$0xf]
    %v3021 = vld [vmem:[#allocation11 + $0x60] sm:$0xf]
    %v3022 = vld [vmem:[#allocation11 + $0x64] sm:$0xf]
    %v3023 = vld [vmem:[#allocation11 + $0x68] sm:$0xf]
    %v3024 = vld [vmem:[#allocation11 + $0x6c] sm:$0xf]
    %v3025 = vld [vmem:[#allocation11 + $0x70] sm:$0xf]
    %v3026 = vld [vmem:[#allocation11 + $0x74] sm:$0xf]
    %v3027 = vld [vmem:[#allocation11 + $0x78] sm:$0xf]
    %v3028 = vld [vmem:[#allocation11 + $0x7c] sm:$0xf]
    %v3029 = vld [vmem:[#allocation11 + $0x80] sm:$0xf]
    %v3030 = vld [vmem:[#allocation11 + $0x84] sm:$0xf]
    %v3031 = vld [vmem:[#allocation11 + $0x88] sm:$0xf]
    %v3032 = vld [vmem:[#allocation11 + $0x8c] sm:$0xf]
    %v3033 = vld [vmem:[#allocation11 + $0x90] sm:$0xf]
    %v3034 = vld [vmem:[#allocation11 + $0x94] sm:$0xf]
    %v3035 = vld [vmem:[#allocation11 + $0x98] sm:$0xf]
    %v3036 = vld [vmem:[#allocation11 + $0x9c] sm:$0xf]
    %v3037 = vld [vmem:[#allocation11 + $0xa0] sm:$0xf]
    %v3038 = vld [vmem:[#allocation11 + $0xa4] sm:$0xf]
    %v3039 = vld [vmem:[#allocation11 + $0xa8] sm:$0xf]
    %v3040 = vld [vmem:[#allocation11 + $0xac] sm:$0xf]
    %v3041 = vld [vmem:[#allocation11 + $0xb0] sm:$0xf]
    %v3042 = vld [vmem:[#allocation11 + $0xb4] sm:$0xf]
    %v3043 = vld [vmem:[#allocation11 + $0xb8] sm:$0xf]
    %v3044 = vld [vmem:[#allocation11 + $0xbc] sm:$0xf]
    %v3045 = vld [vmem:[#allocation11 + $0xc0] sm:$0xf]
    %v3046 = vld [vmem:[#allocation11 + $0xc4] sm:$0xf]
    %v3047 = vld [vmem:[#allocation11 + $0xc8] sm:$0xf]
    %v3048 = vld [vmem:[#allocation11 + $0xcc] sm:$0xf]
    %v3049 = vld [vmem:[#allocation11 + $0xd0] sm:$0xf]
    %v3050 = vld [vmem:[#allocation11 + $0xd4] sm:$0xf]
    %v3051 = vld [vmem:[#allocation11 + $0xd8] sm:$0xf]
    %v3052 = vld [vmem:[#allocation11 + $0xdc] sm:$0xf]
    %v3053 = vld [vmem:[#allocation11 + $0xe0] sm:$0xf]
    %v3054 = vld [vmem:[#allocation11 + $0xe4] sm:$0xf]
    %v3055 = vld [vmem:[#allocation11 + $0xe8] sm:$0xf]
    %v3056 = vld [vmem:[#allocation11 + $0xec] sm:$0xf]
    %v3057 = vld [vmem:[#allocation11 + $0xf0] sm:$0xf]
    %v3058 = vld [vmem:[#allocation11 + $0xf4] sm:$0xf]
    %v3059 = vld [vmem:[#allocation11 + $0xf8] sm:$0xf]
    %v3060 = vld [vmem:[#allocation11 + $0xfc] sm:$0xf]
    %v3061 = vld [vmem:[%s6] sm:$0x1]
    %v3063 = vperm.slane %v3061, 0
    %v3129 = vunpack.c.l.b16 %v2997
    %v3130 = vunpack.c.l.b16 %v2998
    %v3131 = vunpack.c.l.b16 %v2999
    %v3132 = vunpack.c.l.b16 %v3000
    %v3133 = vunpack.c.l.b16 %v3001
    %v3134 = vunpack.c.l.b16 %v3002
    %v3135 = vunpack.c.l.b16 %v3003
    %v3136 = vunpack.c.l.b16 %v3004
    %v3137 = vunpack.c.l.b16 %v3005
    %v3138 = vunpack.c.l.b16 %v3006
    %v3139 = vunpack.c.l.b16 %v3007
    %v3140 = vunpack.c.l.b16 %v3008
    %v3141 = vunpack.c.l.b16 %v3009
    %v3142 = vunpack.c.l.b16 %v3010
    %v3143 = vunpack.c.l.b16 %v3011
    %v3144 = vunpack.c.l.b16 %v3012
    %v3145 = vunpack.c.l.b16 %v3013
    %v3146 = vunpack.c.l.b16 %v3014
    %v3147 = vunpack.c.l.b16 %v3015
    %v3148 = vunpack.c.l.b16 %v3016
    %v3149 = vunpack.c.l.b16 %v3017
    %v3150 = vunpack.c.l.b16 %v3018
    %v3151 = vunpack.c.l.b16 %v3019
    %v3152 = vunpack.c.l.b16 %v3020
    %v3153 = vunpack.c.l.b16 %v3021
    %v3154 = vunpack.c.l.b16 %v3022
    %v3155 = vunpack.c.l.b16 %v3023
    %v3156 = vunpack.c.l.b16 %v3024
    %v3157 = vunpack.c.l.b16 %v3025
    %v3158 = vunpack.c.l.b16 %v3026
    %v3159 = vunpack.c.l.b16 %v3027
    %v3160 = vunpack.c.l.b16 %v3028
    %v3161 = vunpack.c.l.b16 %v3029
    %v3162 = vunpack.c.l.b16 %v3030
    %v3163 = vunpack.c.l.b16 %v3031
    %v3164 = vunpack.c.l.b16 %v3032
    %v3165 = vunpack.c.l.b16 %v3033
    %v3166 = vunpack.c.l.b16 %v3034
    %v3167 = vunpack.c.l.b16 %v3035
    %v3168 = vunpack.c.l.b16 %v3036
    %v3169 = vunpack.c.l.b16 %v3037
    %v3170 = vunpack.c.l.b16 %v3038
    %v3171 = vunpack.c.l.b16 %v3039
    %v3172 = vunpack.c.l.b16 %v3040
    %v3173 = vunpack.c.l.b16 %v3041
    %v3174 = vunpack.c.l.b16 %v3042
    %v3175 = vunpack.c.l.b16 %v3043
    %v3176 = vunpack.c.l.b16 %v3044
    %v3177 = vunpack.c.l.b16 %v3045
    %v3178 = vunpack.c.l.b16 %v3046
    %v3179 = vunpack.c.l.b16 %v3047
    %v3180 = vunpack.c.l.b16 %v3048
    %v3181 = vunpack.c.l.b16 %v3049
    %v3182 = vunpack.c.l.b16 %v3050
    %v3183 = vunpack.c.l.b16 %v3051
    %v3184 = vunpack.c.l.b16 %v3052
    %v3185 = vunpack.c.l.b16 %v3053
    %v3186 = vunpack.c.l.b16 %v3054
    %v3187 = vunpack.c.l.b16 %v3055
    %v3188 = vunpack.c.l.b16 %v3056
    %v3189 = vunpack.c.l.b16 %v3057
    %v3190 = vunpack.c.l.b16 %v3058
    %v3191 = vunpack.c.l.b16 %v3059
    %v3192 = vunpack.c.l.b16 %v3060
    %v3193 = vpack.c.b16 %v3130, %v3129
    %v3194 = vpack.c.b16 %v3132, %v3131
    %v3195 = vpack.c.b16 %v3134, %v3133
    %v3196 = vpack.c.b16 %v3136, %v3135
    %v3197 = vpack.c.b16 %v3138, %v3137
    %v3198 = vpack.c.b16 %v3140, %v3139
    %v3199 = vpack.c.b16 %v3142, %v3141
    %v3200 = vpack.c.b16 %v3144, %v3143
    %v3201 = vpack.c.b16 %v3146, %v3145
    %v3202 = vpack.c.b16 %v3148, %v3147
    %v3203 = vpack.c.b16 %v3150, %v3149
    %v3204 = vpack.c.b16 %v3152, %v3151
    %v3205 = vpack.c.b16 %v3154, %v3153
    %v3206 = vpack.c.b16 %v3156, %v3155
    %v3207 = vpack.c.b16 %v3158, %v3157
    %v3208 = vpack.c.b16 %v3160, %v3159
    %v3209 = vpack.c.b16 %v3162, %v3161
    %v3210 = vpack.c.b16 %v3164, %v3163
    %v3211 = vpack.c.b16 %v3166, %v3165
    %v3212 = vpack.c.b16 %v3168, %v3167
    %v3213 = vpack.c.b16 %v3170, %v3169
    %v3214 = vpack.c.b16 %v3172, %v3171
    %v3215 = vpack.c.b16 %v3174, %v3173
    %v3216 = vpack.c.b16 %v3176, %v3175
    %v3217 = vpack.c.b16 %v3178, %v3177
    %v3218 = vpack.c.b16 %v3180, %v3179
    %v3219 = vpack.c.b16 %v3182, %v3181
    %v3220 = vpack.c.b16 %v3184, %v3183
    %v3221 = vpack.c.b16 %v3186, %v3185
    %v3222 = vpack.c.b16 %v3188, %v3187
    %v3223 = vpack.c.b16 %v3190, %v3189
    %v3224 = vpack.c.b16 %v3192, %v3191
    %3257 = vmatpush.bf16.msra.mxu0 %v3200
    %3258 = vmatpush.bf16.msra.mxu0 %v3199
    %3259 = vmatpush.bf16.msra.mxu0 %v3198
    %3260 = vmatpush.bf16.msra.mxu0 %v3197
    %3261 = vmatpush.bf16.msra.mxu0 %v3196
    %3262 = vmatpush.bf16.msra.mxu0 %v3195
    %3263 = vmatpush.bf16.msra.mxu0 %v3194
    %3264 = vmatpush.bf16.msra.mxu0 %v3193
    %3265 = vmatmul.bf16.gmra.mxu0 %v2993
    %v3266 = vpop.f32.mrf.mxu0
    %v3267 = vadd.f32 %v3063, %v3266
    %v3268 = vpop.f32.mrf.mxu0
    %v3269 = vadd.f32 %v3063, %v3268
    %3270 = vdwg.mxu0
    %3271 = vmatpush.bf16.msra.mxu0 %v3208
    %3272 = vmatpush.bf16.msra.mxu0 %v3207
    %3273 = vmatpush.bf16.msra.mxu0 %v3206
    %3274 = vmatpush.bf16.msra.mxu0 %v3205
    %3275 = vmatpush.bf16.msra.mxu0 %v3204
    %3276 = vmatpush.bf16.msra.mxu0 %v3203
    %3277 = vmatpush.bf16.msra.mxu0 %v3202
    %3278 = vmatpush.bf16.msra.mxu0 %v3201
    %3279 = vmatmul.bf16.gmra.mxu0 %v2994
    %v3280 = vpop.f32.mrf.mxu0
    %v3281 = vadd.f32 %v3267, %v3280
    %v3282 = vpop.f32.mrf.mxu0
    %v3283 = vadd.f32 %v3269, %v3282
    %3284 = vdwg.mxu0
    %3285 = vmatpush.bf16.msra.mxu0 %v3216
    %3286 = vmatpush.bf16.msra.mxu0 %v3215
    %3287 = vmatpush.bf16.msra.mxu0 %v3214
    %3288 = vmatpush.bf16.msra.mxu0 %v3213
    %3289 = vmatpush.bf16.msra.mxu0 %v3212
    %3290 = vmatpush.bf16.msra.mxu0 %v3211
    %3291 = vmatpush.bf16.msra.mxu0 %v3210
    %3292 = vmatpush.bf16.msra.mxu0 %v3209
    %3293 = vmatmul.bf16.gmra.mxu0 %v2995
    %v3294 = vpop.f32.mrf.mxu0
    %v3295 = vadd.f32 %v3281, %v3294
    %v3296 = vpop.f32.mrf.mxu0
    %v3297 = vadd.f32 %v3283, %v3296
    %3298 = vdwg.mxu0
    %3299 = vmatpush.bf16.msra.mxu0 %v3224
    %3300 = vmatpush.bf16.msra.mxu0 %v3223
    %3301 = vmatpush.bf16.msra.mxu0 %v3222
    %3302 = vmatpush.bf16.msra.mxu0 %v3221
    %3303 = vmatpush.bf16.msra.mxu0 %v3220
    %3304 = vmatpush.bf16.msra.mxu0 %v3219
    %3305 = vmatpush.bf16.msra.mxu0 %v3218
    %3306 = vmatpush.bf16.msra.mxu0 %v3217
    %3307 = vmatmul.bf16.gmra.mxu0 %v2996
    %v3308 = vpop.f32.mrf.mxu0
    %v3309 = vadd.f32 %v3295, %v3308
    %v3310 = vpop.f32.mrf.mxu0
    %v3311 = vadd.f32 %v3297, %v3310
    %3312 = vdwg.mxu0
    %v3313 = vmax.f32 %v3309, 0.0
    %v3314 = vmax.f32 %v3311, 0.0
    %v3315 = vpack.c.bf16 %v3314, %v3313
    %v3316 = vld [vmem:[#allocation13] sm:$0xf]
    %v3317 = vld [vmem:[#allocation13 + $0x4] sm:$0xf]
    %v3318 = vld [vmem:[#allocation13 + $0x8] sm:$0xf]
    %v3319 = vld [vmem:[#allocation13 + $0xc] sm:$0xf]
    %v3320 = vld [vmem:[#allocation13 + $0x10] sm:$0xf]
    %v3321 = vld [vmem:[#allocation13 + $0x14] sm:$0xf]
    %v3322 = vld [vmem:[#allocation13 + $0x18] sm:$0xf]
    %v3323 = vld [vmem:[#allocation13 + $0x1c] sm:$0xf]
    %v3324 = vld [vmem:[#allocation13 + $0x20] sm:$0xf]
    %v3325 = vld [vmem:[#allocation13 + $0x24] sm:$0xf]
    %v3326 = vld [vmem:[#allocation13 + $0x28] sm:$0xf]
    %v3327 = vld [vmem:[#allocation13 + $0x2c] sm:$0xf]
    %v3328 = vld [vmem:[#allocation13 + $0x30] sm:$0xf]
    %v3329 = vld [vmem:[#allocation13 + $0x34] sm:$0xf]
    %v3330 = vld [vmem:[#allocation13 + $0x38] sm:$0xf]
    %v3331 = vld [vmem:[#allocation13 + $0x3c] sm:$0xf]
    %v3332 = vld [vmem:[%s8] sm:$0x1]
    %v3334 = vperm.slane %v3332, 0
    %v3352 = vunpack.c.l.b16 %v3316
    %v3353 = vunpack.c.l.b16 %v3317
    %v3354 = vunpack.c.l.b16 %v3318
    %v3355 = vunpack.c.l.b16 %v3319
    %v3356 = vunpack.c.l.b16 %v3320
    %v3357 = vunpack.c.l.b16 %v3321
    %v3358 = vunpack.c.l.b16 %v3322
    %v3359 = vunpack.c.l.b16 %v3323
    %v3360 = vunpack.c.l.b16 %v3324
    %v3361 = vunpack.c.l.b16 %v3325
    %v3362 = vunpack.c.l.b16 %v3326
    %v3363 = vunpack.c.l.b16 %v3327
    %v3364 = vunpack.c.l.b16 %v3328
    %v3365 = vunpack.c.l.b16 %v3329
    %v3366 = vunpack.c.l.b16 %v3330
    %v3367 = vunpack.c.l.b16 %v3331
    %v3368 = vpack.c.b16 %v3353, %v3352
    %v3369 = vpack.c.b16 %v3355, %v3354
    %v3370 = vpack.c.b16 %v3357, %v3356
    %v3371 = vpack.c.b16 %v3359, %v3358
    %v3372 = vpack.c.b16 %v3361, %v3360
    %v3373 = vpack.c.b16 %v3363, %v3362
    %v3374 = vpack.c.b16 %v3365, %v3364
    %v3375 = vpack.c.b16 %v3367, %v3366
    %3384 = vmatpush.bf16.msra.mxu0 %v3375
    %3385 = vmatpush.bf16.msra.mxu0 %v3374
    %3386 = vmatpush.bf16.msra.mxu0 %v3373
    %3387 = vmatpush.bf16.msra.mxu0 %v3372
    %3388 = vmatpush.bf16.msra.mxu0 %v3371
    %3389 = vmatpush.bf16.msra.mxu0 %v3370
    %3390 = vmatpush.bf16.msra.mxu0 %v3369
    %3391 = vmatpush.bf16.msra.mxu0 %v3368
    %3392 = vmatmul.bf16.gmra.mxu0 %v3315
    %v3393 = vpop.f32.mrf.mxu0
    %v3394 = vadd.f32 %v3334, %v3393
    %v3395 = vpop.f32.mrf.mxu0
    %v3396 = vadd.f32 %v3334, %v3395
    %3397 = vdwg.mxu0
    %v3398 = vmax.f32 %v3394, 0.0
    %v3399 = vmax.f32 %v3396, 0.0
    %v3400 = vpack.c.bf16 %v3399, %v3398
    %v3401 = vld [vmem:[#allocation14] sm:$0xf]
    %v3402 = vld [vmem:[#allocation14 + $0x4] sm:$0xf]
    %v3403 = vld [vmem:[#allocation14 + $0x8] sm:$0xf]
    %v3404 = vld [vmem:[#allocation14 + $0xc] sm:$0xf]
    %v3405 = vld [vmem:[#allocation14 + $0x10] sm:$0xf]
    %v3406 = vld [vmem:[#allocation14 + $0x14] sm:$0xf]
    %v3407 = vld [vmem:[#allocation14 + $0x18] sm:$0xf]
    %v3408 = vld [vmem:[#allocation14 + $0x1c] sm:$0xf]
    %v3409 = vld [vmem:[#allocation14 + $0x20] sm:$0xf]
    %v3410 = vld [vmem:[#allocation14 + $0x24] sm:$0xf]
    %v3411 = vld [vmem:[#allocation14 + $0x28] sm:$0xf]
    %v3412 = vld [vmem:[#allocation14 + $0x2c] sm:$0xf]
    %v3413 = vld [vmem:[#allocation14 + $0x30] sm:$0xf]
    %v3414 = vld [vmem:[#allocation14 + $0x34] sm:$0xf]
    %v3415 = vld [vmem:[#allocation14 + $0x38] sm:$0xf]
    %v3416 = vld [vmem:[#allocation14 + $0x3c] sm:$0xf]
    %v3417 = vld [vmem:[%s10] sm:$0x1]
    %v3419 = vperm.slane %v3417, 0
    %v3437 = vunpack.c.l.b16 %v3401
    %v3438 = vunpack.c.l.b16 %v3402
    %v3439 = vunpack.c.l.b16 %v3403
    %v3440 = vunpack.c.l.b16 %v3404
    %v3441 = vunpack.c.l.b16 %v3405
    %v3442 = vunpack.c.l.b16 %v3406
    %v3443 = vunpack.c.l.b16 %v3407
    %v3444 = vunpack.c.l.b16 %v3408
    %v3445 = vunpack.c.l.b16 %v3409
    %v3446 = vunpack.c.l.b16 %v3410
    %v3447 = vunpack.c.l.b16 %v3411
    %v3448 = vunpack.c.l.b16 %v3412
    %v3449 = vunpack.c.l.b16 %v3413
    %v3450 = vunpack.c.l.b16 %v3414
    %v3451 = vunpack.c.l.b16 %v3415
    %v3452 = vunpack.c.l.b16 %v3416
    %v3453 = vpack.c.b16 %v3438, %v3437
    %v3454 = vpack.c.b16 %v3440, %v3439
    %v3455 = vpack.c.b16 %v3442, %v3441
    %v3456 = vpack.c.b16 %v3444, %v3443
    %v3457 = vpack.c.b16 %v3446, %v3445
    %v3458 = vpack.c.b16 %v3448, %v3447
    %v3459 = vpack.c.b16 %v3450, %v3449
    %v3460 = vpack.c.b16 %v3452, %v3451
    %3469 = vmatpush.bf16.msra.mxu0 %v3460
    %3470 = vmatpush.bf16.msra.mxu0 %v3459
    %3471 = vmatpush.bf16.msra.mxu0 %v3458
    %3472 = vmatpush.bf16.msra.mxu0 %v3457
    %3473 = vmatpush.bf16.msra.mxu0 %v3456
    %3474 = vmatpush.bf16.msra.mxu0 %v3455
    %3475 = vmatpush.bf16.msra.mxu0 %v3454
    %3476 = vmatpush.bf16.msra.mxu0 %v3453
    %3477 = vmatmul.bf16.gmra.mxu0 %v3400
    %v3478 = vpop.f32.mrf.mxu0
    %v3479 = vadd.f32 %v3419, %v3478
    %v3480 = vpop.f32.mrf.mxu0
    %v3481 = vadd.f32 %v3419, %v3480
    %3482 = vdwg.mxu0
    %v3483 = vmax.f32 %v3479, 0.0
    %v3484 = vmax.f32 %v3481, 0.0
    %v3485 = vpack.c.bf16 %v3484, %v3483
    %v3486 = vld [vmem:[#allocation16] sm:$0xf]
    %v3487 = vld [vmem:[#allocation16 + $0x4] sm:$0xf]
    %v3488 = vld [vmem:[#allocation16 + $0x8] sm:$0xf]
    %v3489 = vld [vmem:[#allocation16 + $0xc] sm:$0xf]
    %v3490 = vld [vmem:[#allocation16 + $0x10] sm:$0xf]
    %v3491 = vld [vmem:[#allocation16 + $0x14] sm:$0xf]
    %v3492 = vld [vmem:[#allocation16 + $0x18] sm:$0xf]
    %v3493 = vld [vmem:[#allocation16 + $0x1c] sm:$0xf]
    %v3494 = vld [vmem:[#allocation16 + $0x20] sm:$0xf]
    %v3495 = vld [vmem:[#allocation16 + $0x24] sm:$0xf]
    %v3496 = vld [vmem:[#allocation16 + $0x28] sm:$0xf]
    %v3497 = vld [vmem:[#allocation16 + $0x2c] sm:$0xf]
    %v3498 = vld [vmem:[#allocation16 + $0x30] sm:$0xf]
    %v3499 = vld [vmem:[#allocation16 + $0x34] sm:$0xf]
    %v3500 = vld [vmem:[#allocation16 + $0x38] sm:$0xf]
    %v3501 = vld [vmem:[#allocation16 + $0x3c] sm:$0xf]
    %v3502 = vld [vmem:[%s12] sm:$0x1]
    %v3504 = vperm.slane %v3502, 0
    %v3522 = vunpack.c.l.b16 %v3486
    %v3523 = vunpack.c.l.b16 %v3487
    %v3524 = vunpack.c.l.b16 %v3488
    %v3525 = vunpack.c.l.b16 %v3489
    %v3526 = vunpack.c.l.b16 %v3490
    %v3527 = vunpack.c.l.b16 %v3491
    %v3528 = vunpack.c.l.b16 %v3492
    %v3529 = vunpack.c.l.b16 %v3493
    %v3530 = vunpack.c.l.b16 %v3494
    %v3531 = vunpack.c.l.b16 %v3495
    %v3532 = vunpack.c.l.b16 %v3496
    %v3533 = vunpack.c.l.b16 %v3497
    %v3534 = vunpack.c.l.b16 %v3498
    %v3535 = vunpack.c.l.b16 %v3499
    %v3536 = vunpack.c.l.b16 %v3500
    %v3537 = vunpack.c.l.b16 %v3501
    %v3538 = vpack.c.b16 %v3523, %v3522
    %v3539 = vpack.c.b16 %v3525, %v3524
    %v3540 = vpack.c.b16 %v3527, %v3526
    %v3541 = vpack.c.b16 %v3529, %v3528
    %v3542 = vpack.c.b16 %v3531, %v3530
    %v3543 = vpack.c.b16 %v3533, %v3532
    %v3544 = vpack.c.b16 %v3535, %v3534
    %v3545 = vpack.c.b16 %v3537, %v3536
    %3554 = vmatpush.bf16.msra.mxu0 %v3545
    %3555 = vmatpush.bf16.msra.mxu0 %v3544
    %3556 = vmatpush.bf16.msra.mxu0 %v3543
    %3557 = vmatpush.bf16.msra.mxu0 %v3542
    %3558 = vmatpush.bf16.msra.mxu0 %v3541
    %3559 = vmatpush.bf16.msra.mxu0 %v3540
    %3560 = vmatpush.bf16.msra.mxu0 %v3539
    %3561 = vmatpush.bf16.msra.mxu0 %v3538
    %3562 = vmatmul.bf16.gmra.mxu0 %v3485
    %v3563 = vpop.f32.mrf.mxu0
    %v3564 = vadd.f32 %v3504, %v3563
    %v3565 = vpop.f32.mrf.mxu0
    %v3566 = vadd.f32 %v3504, %v3565
    %3567 = vdwg.mxu0
    %v3568 = vmax.f32 %v3564, 0.0
    %v3569 = vmax.f32 %v3566, 0.0
    %v3570 = vpack.c.bf16 %v3568, %v3568
    %v3571 = vpack.c.bf16 %v3569, %v3569
    %3572 = vst [vmem:[#allocation17] sm:$0xf] %v3570
    %3573 = vst [vmem:[#allocation17 + $0x4] sm:$0xf] %v3571
    // Predicated region
    $region90: #{tpu_custom_call.1} parent=1 // pred_check
      _
    $region91: #{tpu_custom_call.1} parent=1 // pred_check_branch
      %3575 = sbr.rel (0) target = $region93
    $region92: #{tpu_custom_call.1} parent=1 // pred_region
      %3577 = vsyncadd [#allocation4], 0
      %s3578 = sshll.u32 [#allocation17], 4
      %s3579 = int_to_ptr.vmem [resolvable:$true] %s3578
      %s3580 = sshll.u32 %s13, 4
      %s3581 = int_to_ptr.hbm [resolvable:$true] %s3580
      %3586 = dma.vmem_to_hbm [thread:$0]  %s3579, 128, %s3581, [#allocation4], 64, 64, 4
    $region93: #{tpu_custom_call.1} parent=1 // pred_fallthru
      _
    // Predicated region
    $region94: #{tpu_custom_call.1} parent=1 // pred_check
      _
    $region95: #{tpu_custom_call.1} parent=1 // pred_check_branch
      %3588 = sbr.rel (0) target = $region97
    $region96: #{tpu_custom_call.1} parent=1 // pred_region
      %3590 = dma.done [#allocation4], 128
    $region97: #{tpu_custom_call.1} parent=1 // pred_fallthru
      _
    %3591 = vsyncpa [#allocation3], 1
    %3592 = vsyncpa [#allocation6], 1
    %3593 = vsyncpa [#allocation9], 1
    %3594 = vsyncpa [#allocation12], 1
    %3595 = vsyncpa [#allocation15], 1
    %3596 = vsyncpa [#allocation4], 1

</llo_original>
